<compile_context>
chip_gen: v5e
topology: v5e:2x2
jax: 0.10.0
libtpu: 0.0.40
codegen_flags: <defaults>
</compile_context>

<pallas_src>
import numpy as np

import jax
import jax.numpy as jnp
from jax.experimental import pallas as pl
from jax.experimental.pallas import tpu as pltpu


# ----------------------------- fused Pallas kernel -----------------------------

def _fused_cnn_kernel(x_ref, m1_ref, b1_ref, m2_ref, b2_ref,
                      wf1_ref, bf1_ref, wf2_ref, bf2_ref, o_ref,
                      a1_s, pw1_s, p1_s, a2_s, pw2_s, flat_s):
    bf16 = jnp.bfloat16
    f32 = jnp.float32

    x = x_ref[0]                                          # (32, 32) f32, one image

    # ---- conv1 (1 -> 32, k=5) + bias + ReLU ------------------------------------
    # a1[h, kh*32 + w_in] = x[h+kh, w_in]   (im2col over H, assembled in VMEM)
    for kh in range(5):
        a1_s[:, kh * 32:(kh + 1) * 32] = x[kh:kh + 28, :].astype(bf16)
    y1 = jnp.dot(a1_s[...], m1_ref[...], preferred_element_type=f32)   # (28, 896)
    y1 = jnp.maximum(y1 + b1_ref[...], 0.0)               # lanes = w*32 + c

    # ---- 2x2 max pool #1: (28, 28, 32) -> (14, 14, 32) in (H, W*C) layout ------
    mw = jnp.maximum(y1[:, :864], y1[:, 32:])             # max over w-pairs (shifted)
    for wo in range(14):
        pw1_s[:, wo * 32:(wo + 1) * 32] = mw[:, 64 * wo:64 * wo + 32]
    pw1 = pw1_s[...]                                      # (28, 448)
    mh = jnp.maximum(pw1[:27, :], pw1[1:, :])             # max over h-pairs (shifted)
    for ho in range(14):
        p1_s[ho:ho + 1, :] = mh[2 * ho:2 * ho + 1, :]
    p1 = p1_s[...]                                        # (14, 448)

    # ---- conv2 (32 -> 32, k=5) + bias + ReLU -----------------------------------
    # a2[h, kh*448 + w_in*32 + c] = p1[h+kh, w_in*32 + c]
    for kh in range(5):
        a2_s[:, kh * 448:(kh + 1) * 448] = p1[kh:kh + 10, :].astype(bf16)
    y2 = jnp.dot(a2_s[...], m2_ref[...], preferred_element_type=f32)   # (10, 320)
    y2 = jnp.maximum(y2 + b2_ref[...], 0.0)               # lanes = w*32 + c

    # ---- 2x2 max pool #2 + flatten to (1, 800) in (h, w, c) order --------------
    mw2 = jnp.maximum(y2[:, :288], y2[:, 32:])
    for wo in range(5):
        pw2_s[:, wo * 32:(wo + 1) * 32] = mw2[:, 64 * wo:64 * wo + 32]
    pw2 = pw2_s[...]                                      # (10, 160)
    mh2 = jnp.maximum(pw2[:9, :], pw2[1:, :])
    for h in range(5):
        flat_s[:, h * 160:(h + 1) * 160] = mh2[2 * h:2 * h + 1, :].astype(bf16)
    flat = flat_s[...]                                    # (1, 800) bf16

    # ---- fc1 + ReLU, fc2 (output padded to 128 lanes for a lane-dense store) ---
    h1 = jnp.dot(flat, wf1_ref[...], preferred_element_type=f32) + bf1_ref[...]
    h1 = jnp.maximum(h1, 0.0)                             # (1, 256)
    out = jnp.dot(h1.astype(bf16), wf2_ref[...],
                  preferred_element_type=f32) + bf2_ref[...]           # (1, 128)
    o_ref[0] = out


# ------------------------------ parameter prep ---------------------------------

def _banded_conv_matrix(w_hwio, w_in, w_out):
    """Banded matrix M so that conv over W and Cin becomes a plain matmul.

    M[kh*(w_in*cin) + wi*cin + c, wo*cout + co] = w_hwio[kh, wi - wo, c, co]
    whenever 0 <= wi - wo < KW, else 0.
    """
    khs, kws, cin, cout = w_hwio.shape
    m = np.zeros((khs * w_in * cin, w_out * cout), np.float32)
    for kh in range(khs):
        for kw in range(kws):
            for wo in range(w_out):
                wi = wo + kw
                r = kh * (w_in * cin) + wi * cin
                c = wo * cout
                m[r:r + cin, c:c + cout] = w_hwio[kh, kw]
    return m


def init_params(key):
    """Deterministic synthetic parameters with PyTorch layouts:
    conv weights (Cout, Cin, KH, KW), linear weights (out, in)."""
    ks = jax.random.split(key, 8)
    s = 0.05
    return {
        "w1": s * jax.random.normal(ks[0], (32, 1, 5, 5), jnp.float32),
        "b1": s * jax.random.normal(ks[1], (32,), jnp.float32),
        "w2": s * jax.random.normal(ks[2], (32, 32, 5, 5), jnp.float32),
        "b2": s * jax.random.normal(ks[3], (32,), jnp.float32),
        "wf1": s * jax.random.normal(ks[4], (256, 800), jnp.float32),
        "bf1": s * jax.random.normal(ks[5], (256,), jnp.float32),
        "wf2": s * jax.random.normal(ks[6], (10, 256), jnp.float32),
        "bf2": s * jax.random.normal(ks[7], (10,), jnp.float32),
    }


def prepare_params(params):
    """One-time host-side conversion of PyTorch-layout params to kernel layouts."""
    w1 = np.asarray(params["w1"], np.float32)     # (32, 1, 5, 5)
    w2 = np.asarray(params["w2"], np.float32)     # (32, 32, 5, 5)
    b1 = np.asarray(params["b1"], np.float32)
    b2 = np.asarray(params["b2"], np.float32)
    wf1 = np.asarray(params["wf1"], np.float32)   # (256, 800)
    bf1 = np.asarray(params["bf1"], np.float32)
    wf2 = np.asarray(params["wf2"], np.float32)   # (10, 256)
    bf2 = np.asarray(params["bf2"], np.float32)

    w1_hwio = np.transpose(w1, (2, 3, 1, 0))      # (5, 5, 1, 32)
    w2_hwio = np.transpose(w2, (2, 3, 1, 0))      # (5, 5, 32, 32)
    m1 = _banded_conv_matrix(w1_hwio, w_in=32, w_out=28)   # (160, 896)
    m2 = _banded_conv_matrix(w2_hwio, w_in=14, w_out=10)   # (2240, 320)

    # fc1: reorder input rows from PyTorch (c, h, w) flatten to our (h, w, c) flatten.
    wf1_k = wf1.T.reshape(32, 5, 5, 256).transpose(1, 2, 0, 3).reshape(800, 256)
    # fc2: transpose + pad output dim to 128 lanes (lane-dense HBM store).
    wf2_k = np.zeros((256, 128), np.float32)
    wf2_k[:, :10] = wf2.T
    bf2_k = np.zeros((1, 128), np.float32)
    bf2_k[0, :10] = bf2

    return {
        "m1": jnp.asarray(m1, jnp.bfloat16),
        "b1": jnp.asarray(np.tile(b1, 28)[None, :], jnp.float32),   # (1, 896)
        "m2": jnp.asarray(m2, jnp.bfloat16),
        "b2": jnp.asarray(np.tile(b2, 10)[None, :], jnp.float32),   # (1, 320)
        "wf1": jnp.asarray(wf1_k, jnp.bfloat16),
        "bf1": jnp.asarray(bf1[None, :], jnp.float32),              # (1, 256)
        "wf2": jnp.asarray(wf2_k, jnp.bfloat16),
        "bf2": jnp.asarray(bf2_k, jnp.float32),                     # (1, 128)
    }


# ------------------------------ forward wrapper ---------------------------------

def cnn_forward(prep, x_nchw):
    B, Cin, H, W = x_nchw.shape
    assert (Cin, H, W) == (1, 32, 32)
    x = x_nchw.reshape(B, 32, 32)                  # Cin == 1

    out_padded = pl.pallas_call(
        _fused_cnn_kernel,
        out_shape=jax.ShapeDtypeStruct((B, 1, 128), jnp.float32),
        grid=(B,),
        in_specs=[
            pl.BlockSpec((1, 32, 32), lambda b: (b, 0, 0)),     # image
            pl.BlockSpec((160, 896), lambda b: (0, 0)),         # banded conv1 weights
            pl.BlockSpec((1, 896), lambda b: (0, 0)),           # conv1 bias (tiled)
            pl.BlockSpec((2240, 320), lambda b: (0, 0)),        # banded conv2 weights
            pl.BlockSpec((1, 320), lambda b: (0, 0)),           # conv2 bias (tiled)
            pl.BlockSpec((800, 256), lambda b: (0, 0)),         # fc1 weights
            pl.BlockSpec((1, 256), lambda b: (0, 0)),           # fc1 bias
            pl.BlockSpec((256, 128), lambda b: (0, 0)),         # fc2 weights (padded)
            pl.BlockSpec((1, 128), lambda b: (0, 0)),           # fc2 bias (padded)
        ],
        out_specs=pl.BlockSpec((1, 1, 128), lambda b: (b, 0, 0)),
        scratch_shapes=[
            pltpu.VMEM((28, 160), jnp.bfloat16),   # conv1 im2col
            pltpu.VMEM((28, 448), jnp.float32),    # pool1 (W direction)
            pltpu.VMEM((14, 448), jnp.float32),    # pool1 result
            pltpu.VMEM((10, 2240), jnp.bfloat16),  # conv2 im2col
            pltpu.VMEM((10, 160), jnp.float32),    # pool2 (W direction)
            pltpu.VMEM((1, 800), jnp.bfloat16),    # flattened features
        ],
        compiler_params=pltpu.CompilerParams(
            dimension_semantics=("parallel",)),
    )(x, prep["m1"], prep["b1"], prep["m2"], prep["b2"],
      prep["wf1"], prep["bf1"], prep["wf2"], prep["bf2"])

    return out_padded.reshape(B, 128)[:, :10]


# ------------------------------ plain-JAX reference ------------------------------

def reference_forward(params, x_nchw):
    x = jnp.transpose(x_nchw, (0, 2, 3, 1))        # NCHW -> NHWC

    def conv(x, w, b):                             # w: (Cout, Cin, KH, KW)
        y = jax.lax.conv_general_dilated(
            x, jnp.transpose(w, (2, 3, 1, 0)), (1, 1), "VALID",
            dimension_numbers=("NHWC", "HWIO", "NHWC"))
        return jax.nn.relu(y + b)

    def pool(y):
        B, H, W, C = y.shape
        return jnp.max(y.reshape(B, H // 2, 2, W // 2, 2, C), axis=(2, 4))

    y = pool(conv(x, params["w1"], params["b1"]))
    y = pool(conv(y, params["w2"], params["b2"]))
    flat = jnp.transpose(y, (0, 3, 1, 2)).reshape(y.shape[0], -1)
    h = jax.nn.relu(flat @ params["wf1"].T + params["bf1"])
    return h @ params["wf2"].T + params["bf2"]


# ------------------------------------ main ---------------------------------------

if __name__ == "__main__":
    key = jax.random.PRNGKey(0)
    kx, kp = jax.random.split(key)
    # fc1 expects 800 = 32*5*5 features -> input spatial size is 32x32, Cin = 1.
    x = jax.random.normal(kx, (2, 1, 32, 32), jnp.float32)
    params = init_params(kp)
    prep = prepare_params(params)       # one-time weight layout transform (host side)

    out = jax.block_until_ready(jax.jit(cnn_forward)(prep, x))

    assert out.shape == (2, 10)
    assert bool(jnp.all(jnp.isfinite(out)))

    # Loose check vs f32 reference (kernel matmuls run in bf16 on the MXU).
    ref = reference_forward(params, x)
    err = float(jnp.max(jnp.abs(out - ref)))
    assert err < 0.1, f"max abs error vs reference: {err}"
    print("KERNEL_OK")
</pallas_src>

<mosaic_0001>
module attributes {stable_mosaic.version = 11 : i64} {
  func.func @_fused_cnn_kernel(%arg0: i32, %arg1: memref<1x32x32xf32, #tpu.memory_space<vmem>>, %arg2: memref<160x896xbf16, #tpu.memory_space<vmem>>, %arg3: memref<1x896xf32, #tpu.memory_space<vmem>>, %arg4: memref<2240x320xbf16, #tpu.memory_space<vmem>>, %arg5: memref<1x320xf32, #tpu.memory_space<vmem>>, %arg6: memref<800x256xbf16, #tpu.memory_space<vmem>>, %arg7: memref<1x256xf32, #tpu.memory_space<vmem>>, %arg8: memref<256x128xbf16, #tpu.memory_space<vmem>>, %arg9: memref<1x128xf32, #tpu.memory_space<vmem>>, %arg10: memref<1x1x128xf32, #tpu.memory_space<vmem>>, %arg11: memref<28x160xbf16, #tpu.memory_space<vmem>>, %arg12: memref<28x448xf32, #tpu.memory_space<vmem>>, %arg13: memref<14x448xf32, #tpu.memory_space<vmem>>, %arg14: memref<10x2240xbf16, #tpu.memory_space<vmem>>, %arg15: memref<10x160xf32, #tpu.memory_space<vmem>>, %arg16: memref<1x800xbf16, #tpu.memory_space<vmem>>) attributes {dimension_semantics = [#tpu.dimension_semantics<parallel>], iteration_bounds = array<i64: 2>, scalar_prefetch = 0 : i64, scratch_operands = 6 : i64, tpu.core_type = #tpu.core_type<tc>, window_params = [{transform_indices = @transform_0, window_bounds = array<i64: 1, 32, 32>}, {pipeline_mode = #tpu.pipeline_mode<synchronous>, transform_indices = @transform_1, window_bounds = array<i64: 160, 896>}, {pipeline_mode = #tpu.pipeline_mode<synchronous>, transform_indices = @transform_2, window_bounds = array<i64: 1, 896>}, {pipeline_mode = #tpu.pipeline_mode<synchronous>, transform_indices = @transform_3, window_bounds = array<i64: 2240, 320>}, {pipeline_mode = #tpu.pipeline_mode<synchronous>, transform_indices = @transform_4, window_bounds = array<i64: 1, 320>}, {pipeline_mode = #tpu.pipeline_mode<synchronous>, transform_indices = @transform_5, window_bounds = array<i64: 800, 256>}, {pipeline_mode = #tpu.pipeline_mode<synchronous>, transform_indices = @transform_6, window_bounds = array<i64: 1, 256>}, {pipeline_mode = #tpu.pipeline_mode<synchronous>, transform_indices = @transform_7, window_bounds = array<i64: 256, 128>}, {pipeline_mode = #tpu.pipeline_mode<synchronous>, transform_indices = @transform_8, window_bounds = array<i64: 1, 128>}, {transform_indices = @transform_9, window_bounds = array<i64: 1, 1, 128>}]} {
    %c0 = arith.constant 0 : index
    %c0_0 = arith.constant 0 : index
    %c0_1 = arith.constant 0 : index
    %0 = vector.load %arg1[%c0, %c0_0, %c0_1] : memref<1x32x32xf32, #tpu.memory_space<vmem>>, vector<1x32x32xf32>
    %1 = vector.shape_cast %0 : vector<1x32x32xf32> to vector<32x32xf32>
    %2 = vector.extract_strided_slice %1 {offsets = [0, 0], sizes = [28, 32], strides = [1, 1]} : vector<32x32xf32> to vector<28x32xf32>
    %3 = arith.truncf %2 : vector<28x32xf32> to vector<28x32xbf16>
    %c0_2 = arith.constant 0 : index
    %c0_3 = arith.constant 0 : index
    %4 = vector.load %arg11[%c0_2, %c0_3] : memref<28x160xbf16, #tpu.memory_space<vmem>>, vector<28x32xbf16>
    tpu.vector_store %arg11[%c0_2, %c0_3], %3 {strides = array<i32>} : memref<28x160xbf16, #tpu.memory_space<vmem>>, vector<28x32xbf16>,
    %5 = vector.extract_strided_slice %1 {offsets = [1, 0], sizes = [28, 32], strides = [1, 1]} : vector<32x32xf32> to vector<28x32xf32>
    %6 = arith.truncf %5 : vector<28x32xf32> to vector<28x32xbf16>
    %c0_4 = arith.constant 0 : index
    %c32 = arith.constant 32 : index
    %7 = vector.load %arg11[%c0_4, %c32] : memref<28x160xbf16, #tpu.memory_space<vmem>>, vector<28x32xbf16>
    tpu.vector_store %arg11[%c0_4, %c32], %6 {strides = array<i32>} : memref<28x160xbf16, #tpu.memory_space<vmem>>, vector<28x32xbf16>,
    %8 = vector.extract_strided_slice %1 {offsets = [2, 0], sizes = [28, 32], strides = [1, 1]} : vector<32x32xf32> to vector<28x32xf32>
    %9 = arith.truncf %8 : vector<28x32xf32> to vector<28x32xbf16>
    %c0_5 = arith.constant 0 : index
    %c64 = arith.constant 64 : index
    %10 = vector.load %arg11[%c0_5, %c64] : memref<28x160xbf16, #tpu.memory_space<vmem>>, vector<28x32xbf16>
    tpu.vector_store %arg11[%c0_5, %c64], %9 {strides = array<i32>} : memref<28x160xbf16, #tpu.memory_space<vmem>>, vector<28x32xbf16>,
    %11 = vector.extract_strided_slice %1 {offsets = [3, 0], sizes = [28, 32], strides = [1, 1]} : vector<32x32xf32> to vector<28x32xf32>
    %12 = arith.truncf %11 : vector<28x32xf32> to vector<28x32xbf16>
    %c0_6 = arith.constant 0 : index
    %c96 = arith.constant 96 : index
    %13 = vector.load %arg11[%c0_6, %c96] : memref<28x160xbf16, #tpu.memory_space<vmem>>, vector<28x32xbf16>
    tpu.vector_store %arg11[%c0_6, %c96], %12 {strides = array<i32>} : memref<28x160xbf16, #tpu.memory_space<vmem>>, vector<28x32xbf16>,
    %14 = vector.extract_strided_slice %1 {offsets = [4, 0], sizes = [28, 32], strides = [1, 1]} : vector<32x32xf32> to vector<28x32xf32>
    %15 = arith.truncf %14 : vector<28x32xf32> to vector<28x32xbf16>
    %c0_7 = arith.constant 0 : index
    %c128 = arith.constant 128 : index
    %16 = vector.load %arg11[%c0_7, %c128] : memref<28x160xbf16, #tpu.memory_space<vmem>>, vector<28x32xbf16>
    tpu.vector_store %arg11[%c0_7, %c128], %15 {strides = array<i32>} : memref<28x160xbf16, #tpu.memory_space<vmem>>, vector<28x32xbf16>,
    %c0_8 = arith.constant 0 : index
    %c0_9 = arith.constant 0 : index
    %17 = vector.load %arg11[%c0_8, %c0_9] : memref<28x160xbf16, #tpu.memory_space<vmem>>, vector<28x160xbf16>
    %c0_10 = arith.constant 0 : index
    %c0_11 = arith.constant 0 : index
    %18 = vector.load %arg2[%c0_10, %c0_11] : memref<160x896xbf16, #tpu.memory_space<vmem>>, vector<160x896xbf16>
    %cst = arith.constant dense<0.000000e+00> : vector<28x896xf32>
    %19 = tpu.matmul %17, %18, %cst {dimension_numbers = #tpu.dot_dimension_numbers<[1], [0], [0], [1], [0, 0, 1, 1], [], []>} : vector<28x160xbf16>, vector<160x896xbf16>, vector<28x896xf32> -> vector<28x896xf32>
    %c0_12 = arith.constant 0 : index
    %c0_13 = arith.constant 0 : index
    %20 = vector.load %arg3[%c0_12, %c0_13] : memref<1x896xf32, #tpu.memory_space<vmem>>, vector<1x896xf32>
    %21 = vector.broadcast %20 : vector<1x896xf32> to vector<28x896xf32>
    %22 = arith.addf %19, %21 : vector<28x896xf32>
    %cst_14 = arith.constant 0.000000e+00 : f32
    %23 = vector.broadcast %cst_14 : f32 to vector<28x896xf32>
    %24 = arith.maximumf %22, %23 : vector<28x896xf32>
    %25 = vector.extract_strided_slice %24 {offsets = [0, 0], sizes = [28, 864], strides = [1, 1]} : vector<28x896xf32> to vector<28x864xf32>
    %26 = vector.extract_strided_slice %24 {offsets = [0, 32], sizes = [28, 864], strides = [1, 1]} : vector<28x896xf32> to vector<28x864xf32>
    %27 = arith.maximumf %25, %26 : vector<28x864xf32>
    %28 = vector.extract_strided_slice %27 {offsets = [0, 0], sizes = [28, 32], strides = [1, 1]} : vector<28x864xf32> to vector<28x32xf32>
    %c0_15 = arith.constant 0 : index
    %c0_16 = arith.constant 0 : index
    %29 = vector.load %arg12[%c0_15, %c0_16] : memref<28x448xf32, #tpu.memory_space<vmem>>, vector<28x32xf32>
    tpu.vector_store %arg12[%c0_15, %c0_16], %28 {strides = array<i32>} : memref<28x448xf32, #tpu.memory_space<vmem>>, vector<28x32xf32>,
    %30 = vector.extract_strided_slice %27 {offsets = [0, 64], sizes = [28, 32], strides = [1, 1]} : vector<28x864xf32> to vector<28x32xf32>
    %c0_17 = arith.constant 0 : index
    %c32_18 = arith.constant 32 : index
    %31 = vector.load %arg12[%c0_17, %c32_18] : memref<28x448xf32, #tpu.memory_space<vmem>>, vector<28x32xf32>
    tpu.vector_store %arg12[%c0_17, %c32_18], %30 {strides = array<i32>} : memref<28x448xf32, #tpu.memory_space<vmem>>, vector<28x32xf32>,
    %32 = vector.extract_strided_slice %27 {offsets = [0, 128], sizes = [28, 32], strides = [1, 1]} : vector<28x864xf32> to vector<28x32xf32>
    %c0_19 = arith.constant 0 : index
    %c64_20 = arith.constant 64 : index
    %33 = vector.load %arg12[%c0_19, %c64_20] : memref<28x448xf32, #tpu.memory_space<vmem>>, vector<28x32xf32>
    tpu.vector_store %arg12[%c0_19, %c64_20], %32 {strides = array<i32>} : memref<28x448xf32, #tpu.memory_space<vmem>>, vector<28x32xf32>,
    %34 = vector.extract_strided_slice %27 {offsets = [0, 192], sizes = [28, 32], strides = [1, 1]} : vector<28x864xf32> to vector<28x32xf32>
    %c0_21 = arith.constant 0 : index
    %c96_22 = arith.constant 96 : index
    %35 = vector.load %arg12[%c0_21, %c96_22] : memref<28x448xf32, #tpu.memory_space<vmem>>, vector<28x32xf32>
    tpu.vector_store %arg12[%c0_21, %c96_22], %34 {strides = array<i32>} : memref<28x448xf32, #tpu.memory_space<vmem>>, vector<28x32xf32>,
    %36 = vector.extract_strided_slice %27 {offsets = [0, 256], sizes = [28, 32], strides = [1, 1]} : vector<28x864xf32> to vector<28x32xf32>
    %c0_23 = arith.constant 0 : index
    %c128_24 = arith.constant 128 : index
    %37 = vector.load %arg12[%c0_23, %c128_24] : memref<28x448xf32, #tpu.memory_space<vmem>>, vector<28x32xf32>
    tpu.vector_store %arg12[%c0_23, %c128_24], %36 {strides = array<i32>} : memref<28x448xf32, #tpu.memory_space<vmem>>, vector<28x32xf32>,
    %38 = vector.extract_strided_slice %27 {offsets = [0, 320], sizes = [28, 32], strides = [1, 1]} : vector<28x864xf32> to vector<28x32xf32>
    %c0_25 = arith.constant 0 : index
    %c160 = arith.constant 160 : index
    %39 = vector.load %arg12[%c0_25, %c160] : memref<28x448xf32, #tpu.memory_space<vmem>>, vector<28x32xf32>
    tpu.vector_store %arg12[%c0_25, %c160], %38 {strides = array<i32>} : memref<28x448xf32, #tpu.memory_space<vmem>>, vector<28x32xf32>,
    %40 = vector.extract_strided_slice %27 {offsets = [0, 384], sizes = [28, 32], strides = [1, 1]} : vector<28x864xf32> to vector<28x32xf32>
    %c0_26 = arith.constant 0 : index
    %c192 = arith.constant 192 : index
    %41 = vector.load %arg12[%c0_26, %c192] : memref<28x448xf32, #tpu.memory_space<vmem>>, vector<28x32xf32>
    tpu.vector_store %arg12[%c0_26, %c192], %40 {strides = array<i32>} : memref<28x448xf32, #tpu.memory_space<vmem>>, vector<28x32xf32>,
    %42 = vector.extract_strided_slice %27 {offsets = [0, 448], sizes = [28, 32], strides = [1, 1]} : vector<28x864xf32> to vector<28x32xf32>
    %c0_27 = arith.constant 0 : index
    %c224 = arith.constant 224 : index
    %43 = vector.load %arg12[%c0_27, %c224] : memref<28x448xf32, #tpu.memory_space<vmem>>, vector<28x32xf32>
    tpu.vector_store %arg12[%c0_27, %c224], %42 {strides = array<i32>} : memref<28x448xf32, #tpu.memory_space<vmem>>, vector<28x32xf32>,
    %44 = vector.extract_strided_slice %27 {offsets = [0, 512], sizes = [28, 32], strides = [1, 1]} : vector<28x864xf32> to vector<28x32xf32>
    %c0_28 = arith.constant 0 : index
    %c256 = arith.constant 256 : index
    %45 = vector.load %arg12[%c0_28, %c256] : memref<28x448xf32, #tpu.memory_space<vmem>>, vector<28x32xf32>
    tpu.vector_store %arg12[%c0_28, %c256], %44 {strides = array<i32>} : memref<28x448xf32, #tpu.memory_space<vmem>>, vector<28x32xf32>,
    %46 = vector.extract_strided_slice %27 {offsets = [0, 576], sizes = [28, 32], strides = [1, 1]} : vector<28x864xf32> to vector<28x32xf32>
    %c0_29 = arith.constant 0 : index
    %c288 = arith.constant 288 : index
    %47 = vector.load %arg12[%c0_29, %c288] : memref<28x448xf32, #tpu.memory_space<vmem>>, vector<28x32xf32>
    tpu.vector_store %arg12[%c0_29, %c288], %46 {strides = array<i32>} : memref<28x448xf32, #tpu.memory_space<vmem>>, vector<28x32xf32>,
    %48 = vector.extract_strided_slice %27 {offsets = [0, 640], sizes = [28, 32], strides = [1, 1]} : vector<28x864xf32> to vector<28x32xf32>
    %c0_30 = arith.constant 0 : index
    %c320 = arith.constant 320 : index
    %49 = vector.load %arg12[%c0_30, %c320] : memref<28x448xf32, #tpu.memory_space<vmem>>, vector<28x32xf32>
    tpu.vector_store %arg12[%c0_30, %c320], %48 {strides = array<i32>} : memref<28x448xf32, #tpu.memory_space<vmem>>, vector<28x32xf32>,
    %50 = vector.extract_strided_slice %27 {offsets = [0, 704], sizes = [28, 32], strides = [1, 1]} : vector<28x864xf32> to vector<28x32xf32>
    %c0_31 = arith.constant 0 : index
    %c352 = arith.constant 352 : index
    %51 = vector.load %arg12[%c0_31, %c352] : memref<28x448xf32, #tpu.memory_space<vmem>>, vector<28x32xf32>
    tpu.vector_store %arg12[%c0_31, %c352], %50 {strides = array<i32>} : memref<28x448xf32, #tpu.memory_space<vmem>>, vector<28x32xf32>,
    %52 = vector.extract_strided_slice %27 {offsets = [0, 768], sizes = [28, 32], strides = [1, 1]} : vector<28x864xf32> to vector<28x32xf32>
    %c0_32 = arith.constant 0 : index
    %c384 = arith.constant 384 : index
    %53 = vector.load %arg12[%c0_32, %c384] : memref<28x448xf32, #tpu.memory_space<vmem>>, vector<28x32xf32>
    tpu.vector_store %arg12[%c0_32, %c384], %52 {strides = array<i32>} : memref<28x448xf32, #tpu.memory_space<vmem>>, vector<28x32xf32>,
    %54 = vector.extract_strided_slice %27 {offsets = [0, 832], sizes = [28, 32], strides = [1, 1]} : vector<28x864xf32> to vector<28x32xf32>
    %c0_33 = arith.constant 0 : index
    %c416 = arith.constant 416 : index
    %55 = vector.load %arg12[%c0_33, %c416] : memref<28x448xf32, #tpu.memory_space<vmem>>, vector<28x32xf32>
    tpu.vector_store %arg12[%c0_33, %c416], %54 {strides = array<i32>} : memref<28x448xf32, #tpu.memory_space<vmem>>, vector<28x32xf32>,
    %c0_34 = arith.constant 0 : index
    %c0_35 = arith.constant 0 : index
    %56 = vector.load %arg12[%c0_34, %c0_35] : memref<28x448xf32, #tpu.memory_space<vmem>>, vector<28x448xf32>
    %57 = vector.extract_strided_slice %56 {offsets = [0, 0], sizes = [27, 448], strides = [1, 1]} : vector<28x448xf32> to vector<27x448xf32>
    %58 = vector.extract_strided_slice %56 {offsets = [1, 0], sizes = [27, 448], strides = [1, 1]} : vector<28x448xf32> to vector<27x448xf32>
    %59 = arith.maximumf %57, %58 : vector<27x448xf32>
    %60 = vector.extract_strided_slice %59 {offsets = [0, 0], sizes = [1, 448], strides = [1, 1]} : vector<27x448xf32> to vector<1x448xf32>
    %c0_36 = arith.constant 0 : index
    %c0_37 = arith.constant 0 : index
    %61 = vector.load %arg13[%c0_36, %c0_37] : memref<14x448xf32, #tpu.memory_space<vmem>>, vector<1x448xf32>
    tpu.vector_store %arg13[%c0_36, %c0_37], %60 {strides = array<i32>} : memref<14x448xf32, #tpu.memory_space<vmem>>, vector<1x448xf32>,
    %62 = vector.extract_strided_slice %59 {offsets = [2, 0], sizes = [1, 448], strides = [1, 1]} : vector<27x448xf32> to vector<1x448xf32>
    %c1 = arith.constant 1 : index
    %c0_38 = arith.constant 0 : index
    %63 = vector.load %arg13[%c1, %c0_38] : memref<14x448xf32, #tpu.memory_space<vmem>>, vector<1x448xf32>
    tpu.vector_store %arg13[%c1, %c0_38], %62 {strides = array<i32>} : memref<14x448xf32, #tpu.memory_space<vmem>>, vector<1x448xf32>,
    %64 = vector.extract_strided_slice %59 {offsets = [4, 0], sizes = [1, 448], strides = [1, 1]} : vector<27x448xf32> to vector<1x448xf32>
    %c2 = arith.constant 2 : index
    %c0_39 = arith.constant 0 : index
    %65 = vector.load %arg13[%c2, %c0_39] : memref<14x448xf32, #tpu.memory_space<vmem>>, vector<1x448xf32>
    tpu.vector_store %arg13[%c2, %c0_39], %64 {strides = array<i32>} : memref<14x448xf32, #tpu.memory_space<vmem>>, vector<1x448xf32>,
    %66 = vector.extract_strided_slice %59 {offsets = [6, 0], sizes = [1, 448], strides = [1, 1]} : vector<27x448xf32> to vector<1x448xf32>
    %c3 = arith.constant 3 : index
    %c0_40 = arith.constant 0 : index
    %67 = vector.load %arg13[%c3, %c0_40] : memref<14x448xf32, #tpu.memory_space<vmem>>, vector<1x448xf32>
    tpu.vector_store %arg13[%c3, %c0_40], %66 {strides = array<i32>} : memref<14x448xf32, #tpu.memory_space<vmem>>, vector<1x448xf32>,
    %68 = vector.extract_strided_slice %59 {offsets = [8, 0], sizes = [1, 448], strides = [1, 1]} : vector<27x448xf32> to vector<1x448xf32>
    %c4 = arith.constant 4 : index
    %c0_41 = arith.constant 0 : index
    %69 = vector.load %arg13[%c4, %c0_41] : memref<14x448xf32, #tpu.memory_space<vmem>>, vector<1x448xf32>
    tpu.vector_store %arg13[%c4, %c0_41], %68 {strides = array<i32>} : memref<14x448xf32, #tpu.memory_space<vmem>>, vector<1x448xf32>,
    %70 = vector.extract_strided_slice %59 {offsets = [10, 0], sizes = [1, 448], strides = [1, 1]} : vector<27x448xf32> to vector<1x448xf32>
    %c5 = arith.constant 5 : index
    %c0_42 = arith.constant 0 : index
    %71 = vector.load %arg13[%c5, %c0_42] : memref<14x448xf32, #tpu.memory_space<vmem>>, vector<1x448xf32>
    tpu.vector_store %arg13[%c5, %c0_42], %70 {strides = array<i32>} : memref<14x448xf32, #tpu.memory_space<vmem>>, vector<1x448xf32>,
    %72 = vector.extract_strided_slice %59 {offsets = [12, 0], sizes = [1, 448], strides = [1, 1]} : vector<27x448xf32> to vector<1x448xf32>
    %c6 = arith.constant 6 : index
    %c0_43 = arith.constant 0 : index
    %73 = vector.load %arg13[%c6, %c0_43] : memref<14x448xf32, #tpu.memory_space<vmem>>, vector<1x448xf32>
    tpu.vector_store %arg13[%c6, %c0_43], %72 {strides = array<i32>} : memref<14x448xf32, #tpu.memory_space<vmem>>, vector<1x448xf32>,
    %74 = vector.extract_strided_slice %59 {offsets = [14, 0], sizes = [1, 448], strides = [1, 1]} : vector<27x448xf32> to vector<1x448xf32>
    %c7 = arith.constant 7 : index
    %c0_44 = arith.constant 0 : index
    %75 = vector.load %arg13[%c7, %c0_44] : memref<14x448xf32, #tpu.memory_space<vmem>>, vector<1x448xf32>
    tpu.vector_store %arg13[%c7, %c0_44], %74 {strides = array<i32>} : memref<14x448xf32, #tpu.memory_space<vmem>>, vector<1x448xf32>,
    %76 = vector.extract_strided_slice %59 {offsets = [16, 0], sizes = [1, 448], strides = [1, 1]} : vector<27x448xf32> to vector<1x448xf32>
    %c8 = arith.constant 8 : index
    %c0_45 = arith.constant 0 : index
    %77 = vector.load %arg13[%c8, %c0_45] : memref<14x448xf32, #tpu.memory_space<vmem>>, vector<1x448xf32>
    tpu.vector_store %arg13[%c8, %c0_45], %76 {strides = array<i32>} : memref<14x448xf32, #tpu.memory_space<vmem>>, vector<1x448xf32>,
    %78 = vector.extract_strided_slice %59 {offsets = [18, 0], sizes = [1, 448], strides = [1, 1]} : vector<27x448xf32> to vector<1x448xf32>
    %c9 = arith.constant 9 : index
    %c0_46 = arith.constant 0 : index
    %79 = vector.load %arg13[%c9, %c0_46] : memref<14x448xf32, #tpu.memory_space<vmem>>, vector<1x448xf32>
    tpu.vector_store %arg13[%c9, %c0_46], %78 {strides = array<i32>} : memref<14x448xf32, #tpu.memory_space<vmem>>, vector<1x448xf32>,
    %80 = vector.extract_strided_slice %59 {offsets = [20, 0], sizes = [1, 448], strides = [1, 1]} : vector<27x448xf32> to vector<1x448xf32>
    %c10 = arith.constant 10 : index
    %c0_47 = arith.constant 0 : index
    %81 = vector.load %arg13[%c10, %c0_47] : memref<14x448xf32, #tpu.memory_space<vmem>>, vector<1x448xf32>
    tpu.vector_store %arg13[%c10, %c0_47], %80 {strides = array<i32>} : memref<14x448xf32, #tpu.memory_space<vmem>>, vector<1x448xf32>,
    %82 = vector.extract_strided_slice %59 {offsets = [22, 0], sizes = [1, 448], strides = [1, 1]} : vector<27x448xf32> to vector<1x448xf32>
    %c11 = arith.constant 11 : index
    %c0_48 = arith.constant 0 : index
    %83 = vector.load %arg13[%c11, %c0_48] : memref<14x448xf32, #tpu.memory_space<vmem>>, vector<1x448xf32>
    tpu.vector_store %arg13[%c11, %c0_48], %82 {strides = array<i32>} : memref<14x448xf32, #tpu.memory_space<vmem>>, vector<1x448xf32>,
    %84 = vector.extract_strided_slice %59 {offsets = [24, 0], sizes = [1, 448], strides = [1, 1]} : vector<27x448xf32> to vector<1x448xf32>
    %c12 = arith.constant 12 : index
    %c0_49 = arith.constant 0 : index
    %85 = vector.load %arg13[%c12, %c0_49] : memref<14x448xf32, #tpu.memory_space<vmem>>, vector<1x448xf32>
    tpu.vector_store %arg13[%c12, %c0_49], %84 {strides = array<i32>} : memref<14x448xf32, #tpu.memory_space<vmem>>, vector<1x448xf32>,
    %86 = vector.extract_strided_slice %59 {offsets = [26, 0], sizes = [1, 448], strides = [1, 1]} : vector<27x448xf32> to vector<1x448xf32>
    %c13 = arith.constant 13 : index
    %c0_50 = arith.constant 0 : index
    %87 = vector.load %arg13[%c13, %c0_50] : memref<14x448xf32, #tpu.memory_space<vmem>>, vector<1x448xf32>
    tpu.vector_store %arg13[%c13, %c0_50], %86 {strides = array<i32>} : memref<14x448xf32, #tpu.memory_space<vmem>>, vector<1x448xf32>,
    %c0_51 = arith.constant 0 : index
    %c0_52 = arith.constant 0 : index
    %88 = vector.load %arg13[%c0_51, %c0_52] : memref<14x448xf32, #tpu.memory_space<vmem>>, vector<14x448xf32>
    %89 = vector.extract_strided_slice %88 {offsets = [0, 0], sizes = [10, 448], strides = [1, 1]} : vector<14x448xf32> to vector<10x448xf32>
    %90 = arith.truncf %89 : vector<10x448xf32> to vector<10x448xbf16>
    %c0_53 = arith.constant 0 : index
    %c0_54 = arith.constant 0 : index
    %91 = vector.load %arg14[%c0_53, %c0_54] : memref<10x2240xbf16, #tpu.memory_space<vmem>>, vector<10x448xbf16>
    tpu.vector_store %arg14[%c0_53, %c0_54], %90 {strides = array<i32>} : memref<10x2240xbf16, #tpu.memory_space<vmem>>, vector<10x448xbf16>,
    %92 = vector.extract_strided_slice %88 {offsets = [1, 0], sizes = [10, 448], strides = [1, 1]} : vector<14x448xf32> to vector<10x448xf32>
    %93 = arith.truncf %92 : vector<10x448xf32> to vector<10x448xbf16>
    %c0_55 = arith.constant 0 : index
    %c448 = arith.constant 448 : index
    %94 = vector.load %arg14[%c0_55, %c448] : memref<10x2240xbf16, #tpu.memory_space<vmem>>, vector<10x448xbf16>
    tpu.vector_store %arg14[%c0_55, %c448], %93 {strides = array<i32>} : memref<10x2240xbf16, #tpu.memory_space<vmem>>, vector<10x448xbf16>,
    %95 = vector.extract_strided_slice %88 {offsets = [2, 0], sizes = [10, 448], strides = [1, 1]} : vector<14x448xf32> to vector<10x448xf32>
    %96 = arith.truncf %95 : vector<10x448xf32> to vector<10x448xbf16>
    %c0_56 = arith.constant 0 : index
    %c896 = arith.constant 896 : index
    %97 = vector.load %arg14[%c0_56, %c896] : memref<10x2240xbf16, #tpu.memory_space<vmem>>, vector<10x448xbf16>
    tpu.vector_store %arg14[%c0_56, %c896], %96 {strides = array<i32>} : memref<10x2240xbf16, #tpu.memory_space<vmem>>, vector<10x448xbf16>,
    %98 = vector.extract_strided_slice %88 {offsets = [3, 0], sizes = [10, 448], strides = [1, 1]} : vector<14x448xf32> to vector<10x448xf32>
    %99 = arith.truncf %98 : vector<10x448xf32> to vector<10x448xbf16>
    %c0_57 = arith.constant 0 : index
    %c1344 = arith.constant 1344 : index
    %100 = vector.load %arg14[%c0_57, %c1344] : memref<10x2240xbf16, #tpu.memory_space<vmem>>, vector<10x448xbf16>
    tpu.vector_store %arg14[%c0_57, %c1344], %99 {strides = array<i32>} : memref<10x2240xbf16, #tpu.memory_space<vmem>>, vector<10x448xbf16>,
    %101 = vector.extract_strided_slice %88 {offsets = [4, 0], sizes = [10, 448], strides = [1, 1]} : vector<14x448xf32> to vector<10x448xf32>
    %102 = arith.truncf %101 : vector<10x448xf32> to vector<10x448xbf16>
    %c0_58 = arith.constant 0 : index
    %c1792 = arith.constant 1792 : index
    %103 = vector.load %arg14[%c0_58, %c1792] : memref<10x2240xbf16, #tpu.memory_space<vmem>>, vector<10x448xbf16>
    tpu.vector_store %arg14[%c0_58, %c1792], %102 {strides = array<i32>} : memref<10x2240xbf16, #tpu.memory_space<vmem>>, vector<10x448xbf16>,
    %c0_59 = arith.constant 0 : index
    %c0_60 = arith.constant 0 : index
    %104 = vector.load %arg14[%c0_59, %c0_60] : memref<10x2240xbf16, #tpu.memory_space<vmem>>, vector<10x2240xbf16>
    %c0_61 = arith.constant 0 : index
    %c0_62 = arith.constant 0 : index
    %105 = vector.load %arg4[%c0_61, %c0_62] : memref<2240x320xbf16, #tpu.memory_space<vmem>>, vector<2240x320xbf16>
    %cst_63 = arith.constant dense<0.000000e+00> : vector<10x320xf32>
    %106 = tpu.matmul %104, %105, %cst_63 {dimension_numbers = #tpu.dot_dimension_numbers<[1], [0], [0], [1], [0, 0, 1, 1], [], []>} : vector<10x2240xbf16>, vector<2240x320xbf16>, vector<10x320xf32> -> vector<10x320xf32>
    %c0_64 = arith.constant 0 : index
    %c0_65 = arith.constant 0 : index
    %107 = vector.load %arg5[%c0_64, %c0_65] : memref<1x320xf32, #tpu.memory_space<vmem>>, vector<1x320xf32>
    %108 = vector.broadcast %107 : vector<1x320xf32> to vector<10x320xf32>
    %109 = arith.addf %106, %108 : vector<10x320xf32>
    %cst_66 = arith.constant 0.000000e+00 : f32
    %110 = vector.broadcast %cst_66 : f32 to vector<10x320xf32>
    %111 = arith.maximumf %109, %110 : vector<10x320xf32>
    %112 = vector.extract_strided_slice %111 {offsets = [0, 0], sizes = [10, 288], strides = [1, 1]} : vector<10x320xf32> to vector<10x288xf32>
    %113 = vector.extract_strided_slice %111 {offsets = [0, 32], sizes = [10, 288], strides = [1, 1]} : vector<10x320xf32> to vector<10x288xf32>
    %114 = arith.maximumf %112, %113 : vector<10x288xf32>
    %115 = vector.extract_strided_slice %114 {offsets = [0, 0], sizes = [10, 32], strides = [1, 1]} : vector<10x288xf32> to vector<10x32xf32>
    %c0_67 = arith.constant 0 : index
    %c0_68 = arith.constant 0 : index
    %116 = vector.load %arg15[%c0_67, %c0_68] : memref<10x160xf32, #tpu.memory_space<vmem>>, vector<10x32xf32>
    tpu.vector_store %arg15[%c0_67, %c0_68], %115 {strides = array<i32>} : memref<10x160xf32, #tpu.memory_space<vmem>>, vector<10x32xf32>,
    %117 = vector.extract_strided_slice %114 {offsets = [0, 64], sizes = [10, 32], strides = [1, 1]} : vector<10x288xf32> to vector<10x32xf32>
    %c0_69 = arith.constant 0 : index
    %c32_70 = arith.constant 32 : index
    %118 = vector.load %arg15[%c0_69, %c32_70] : memref<10x160xf32, #tpu.memory_space<vmem>>, vector<10x32xf32>
    tpu.vector_store %arg15[%c0_69, %c32_70], %117 {strides = array<i32>} : memref<10x160xf32, #tpu.memory_space<vmem>>, vector<10x32xf32>,
    %119 = vector.extract_strided_slice %114 {offsets = [0, 128], sizes = [10, 32], strides = [1, 1]} : vector<10x288xf32> to vector<10x32xf32>
    %c0_71 = arith.constant 0 : index
    %c64_72 = arith.constant 64 : index
    %120 = vector.load %arg15[%c0_71, %c64_72] : memref<10x160xf32, #tpu.memory_space<vmem>>, vector<10x32xf32>
    tpu.vector_store %arg15[%c0_71, %c64_72], %119 {strides = array<i32>} : memref<10x160xf32, #tpu.memory_space<vmem>>, vector<10x32xf32>,
    %121 = vector.extract_strided_slice %114 {offsets = [0, 192], sizes = [10, 32], strides = [1, 1]} : vector<10x288xf32> to vector<10x32xf32>
    %c0_73 = arith.constant 0 : index
    %c96_74 = arith.constant 96 : index
    %122 = vector.load %arg15[%c0_73, %c96_74] : memref<10x160xf32, #tpu.memory_space<vmem>>, vector<10x32xf32>
    tpu.vector_store %arg15[%c0_73, %c96_74], %121 {strides = array<i32>} : memref<10x160xf32, #tpu.memory_space<vmem>>, vector<10x32xf32>,
    %123 = vector.extract_strided_slice %114 {offsets = [0, 256], sizes = [10, 32], strides = [1, 1]} : vector<10x288xf32> to vector<10x32xf32>
    %c0_75 = arith.constant 0 : index
    %c128_76 = arith.constant 128 : index
    %124 = vector.load %arg15[%c0_75, %c128_76] : memref<10x160xf32, #tpu.memory_space<vmem>>, vector<10x32xf32>
    tpu.vector_store %arg15[%c0_75, %c128_76], %123 {strides = array<i32>} : memref<10x160xf32, #tpu.memory_space<vmem>>, vector<10x32xf32>,
    %c0_77 = arith.constant 0 : index
    %c0_78 = arith.constant 0 : index
    %125 = vector.load %arg15[%c0_77, %c0_78] : memref<10x160xf32, #tpu.memory_space<vmem>>, vector<10x160xf32>
    %126 = vector.extract_strided_slice %125 {offsets = [0, 0], sizes = [9, 160], strides = [1, 1]} : vector<10x160xf32> to vector<9x160xf32>
    %127 = vector.extract_strided_slice %125 {offsets = [1, 0], sizes = [9, 160], strides = [1, 1]} : vector<10x160xf32> to vector<9x160xf32>
    %128 = arith.maximumf %126, %127 : vector<9x160xf32>
    %129 = vector.extract_strided_slice %128 {offsets = [0, 0], sizes = [1, 160], strides = [1, 1]} : vector<9x160xf32> to vector<1x160xf32>
    %130 = arith.truncf %129 : vector<1x160xf32> to vector<1x160xbf16>
    %c0_79 = arith.constant 0 : index
    %c0_80 = arith.constant 0 : index
    %131 = vector.load %arg16[%c0_79, %c0_80] : memref<1x800xbf16, #tpu.memory_space<vmem>>, vector<1x160xbf16>
    tpu.vector_store %arg16[%c0_79, %c0_80], %130 {strides = array<i32>} : memref<1x800xbf16, #tpu.memory_space<vmem>>, vector<1x160xbf16>,
    %132 = vector.extract_strided_slice %128 {offsets = [2, 0], sizes = [1, 160], strides = [1, 1]} : vector<9x160xf32> to vector<1x160xf32>
    %133 = arith.truncf %132 : vector<1x160xf32> to vector<1x160xbf16>
    %c0_81 = arith.constant 0 : index
    %c160_82 = arith.constant 160 : index
    %134 = vector.load %arg16[%c0_81, %c160_82] : memref<1x800xbf16, #tpu.memory_space<vmem>>, vector<1x160xbf16>
    tpu.vector_store %arg16[%c0_81, %c160_82], %133 {strides = array<i32>} : memref<1x800xbf16, #tpu.memory_space<vmem>>, vector<1x160xbf16>,
    %135 = vector.extract_strided_slice %128 {offsets = [4, 0], sizes = [1, 160], strides = [1, 1]} : vector<9x160xf32> to vector<1x160xf32>
    %136 = arith.truncf %135 : vector<1x160xf32> to vector<1x160xbf16>
    %c0_83 = arith.constant 0 : index
    %c320_84 = arith.constant 320 : index
    %137 = vector.load %arg16[%c0_83, %c320_84] : memref<1x800xbf16, #tpu.memory_space<vmem>>, vector<1x160xbf16>
    tpu.vector_store %arg16[%c0_83, %c320_84], %136 {strides = array<i32>} : memref<1x800xbf16, #tpu.memory_space<vmem>>, vector<1x160xbf16>,
    %138 = vector.extract_strided_slice %128 {offsets = [6, 0], sizes = [1, 160], strides = [1, 1]} : vector<9x160xf32> to vector<1x160xf32>
    %139 = arith.truncf %138 : vector<1x160xf32> to vector<1x160xbf16>
    %c0_85 = arith.constant 0 : index
    %c480 = arith.constant 480 : index
    %140 = vector.load %arg16[%c0_85, %c480] : memref<1x800xbf16, #tpu.memory_space<vmem>>, vector<1x160xbf16>
    tpu.vector_store %arg16[%c0_85, %c480], %139 {strides = array<i32>} : memref<1x800xbf16, #tpu.memory_space<vmem>>, vector<1x160xbf16>,
    %141 = vector.extract_strided_slice %128 {offsets = [8, 0], sizes = [1, 160], strides = [1, 1]} : vector<9x160xf32> to vector<1x160xf32>
    %142 = arith.truncf %141 : vector<1x160xf32> to vector<1x160xbf16>
    %c0_86 = arith.constant 0 : index
    %c640 = arith.constant 640 : index
    %143 = vector.load %arg16[%c0_86, %c640] : memref<1x800xbf16, #tpu.memory_space<vmem>>, vector<1x160xbf16>
    tpu.vector_store %arg16[%c0_86, %c640], %142 {strides = array<i32>} : memref<1x800xbf16, #tpu.memory_space<vmem>>, vector<1x160xbf16>,
    %c0_87 = arith.constant 0 : index
    %c0_88 = arith.constant 0 : index
    %144 = vector.load %arg16[%c0_87, %c0_88] : memref<1x800xbf16, #tpu.memory_space<vmem>>, vector<1x800xbf16>
    %c0_89 = arith.constant 0 : index
    %c0_90 = arith.constant 0 : index
    %145 = vector.load %arg6[%c0_89, %c0_90] : memref<800x256xbf16, #tpu.memory_space<vmem>>, vector<800x256xbf16>
    %cst_91 = arith.constant dense<0.000000e+00> : vector<1x256xf32>
    %146 = tpu.matmul %144, %145, %cst_91 {dimension_numbers = #tpu.dot_dimension_numbers<[1], [0], [0], [1], [0, 0, 1, 1], [], []>} : vector<1x800xbf16>, vector<800x256xbf16>, vector<1x256xf32> -> vector<1x256xf32>
    %c0_92 = arith.constant 0 : index
    %c0_93 = arith.constant 0 : index
    %147 = vector.load %arg7[%c0_92, %c0_93] : memref<1x256xf32, #tpu.memory_space<vmem>>, vector<1x256xf32>
    %148 = arith.addf %146, %147 : vector<1x256xf32>
    %cst_94 = arith.constant 0.000000e+00 : f32
    %149 = vector.broadcast %cst_94 : f32 to vector<1x256xf32>
    %150 = arith.maximumf %148, %149 : vector<1x256xf32>
    %151 = arith.truncf %150 : vector<1x256xf32> to vector<1x256xbf16>
    %c0_95 = arith.constant 0 : index
    %c0_96 = arith.constant 0 : index
    %152 = vector.load %arg8[%c0_95, %c0_96] : memref<256x128xbf16, #tpu.memory_space<vmem>>, vector<256x128xbf16>
    %cst_97 = arith.constant dense<0.000000e+00> : vector<1x128xf32>
    %153 = tpu.matmul %151, %152, %cst_97 {dimension_numbers = #tpu.dot_dimension_numbers<[1], [0], [0], [1], [0, 0, 1, 1], [], []>} : vector<1x256xbf16>, vector<256x128xbf16>, vector<1x128xf32> -> vector<1x128xf32>
    %c0_98 = arith.constant 0 : index
    %c0_99 = arith.constant 0 : index
    %154 = vector.load %arg9[%c0_98, %c0_99] : memref<1x128xf32, #tpu.memory_space<vmem>>, vector<1x128xf32>
    %155 = arith.addf %153, %154 : vector<1x128xf32>
    %c0_100 = arith.constant 0 : index
    %c0_101 = arith.constant 0 : index
    %c0_102 = arith.constant 0 : index
    %156 = vector.load %arg10[%c0_100, %c0_101, %c0_102] : memref<1x1x128xf32, #tpu.memory_space<vmem>>, vector<1x1x128xf32>
    %157 = vector.shape_cast %156 : vector<1x1x128xf32> to vector<1x128xf32>
    %158 = vector.shape_cast %155 : vector<1x128xf32> to vector<1x1x128xf32>
    tpu.vector_store %arg10[%c0_100, %c0_101, %c0_102], %158 {strides = array<i32>} : memref<1x1x128xf32, #tpu.memory_space<vmem>>, vector<1x1x128xf32>,
    return
  }
  func.func @transform_0(%arg0: i32) -> (i32, i32, i32) {
    %c0_i32 = arith.constant 0 : i32
    %c0_i32_0 = arith.constant 0 : i32
    %c0_i32_1 = arith.constant 0 : i32
    return %arg0, %c0_i32, %c0_i32_0 : i32, i32, i32
  }
  func.func @transform_1(%arg0: i32) -> (i32, i32) {
    %c0_i32 = arith.constant 0 : i32
    %c0_i32_0 = arith.constant 0 : i32
    %c0_i32_1 = arith.constant 0 : i32
    return %c0_i32, %c0_i32_0 : i32, i32
  }
  func.func @transform_2(%arg0: i32) -> (i32, i32) {
    %c0_i32 = arith.constant 0 : i32
    %c0_i32_0 = arith.constant 0 : i32
    %c0_i32_1 = arith.constant 0 : i32
    return %c0_i32, %c0_i32_0 : i32, i32
  }
  func.func @transform_3(%arg0: i32) -> (i32, i32) {
    %c0_i32 = arith.constant 0 : i32
    %c0_i32_0 = arith.constant 0 : i32
    %c0_i32_1 = arith.constant 0 : i32
    return %c0_i32, %c0_i32_0 : i32, i32
  }
  func.func @transform_4(%arg0: i32) -> (i32, i32) {
    %c0_i32 = arith.constant 0 : i32
    %c0_i32_0 = arith.constant 0 : i32
    %c0_i32_1 = arith.constant 0 : i32
    return %c0_i32, %c0_i32_0 : i32, i32
  }
  func.func @transform_5(%arg0: i32) -> (i32, i32) {
    %c0_i32 = arith.constant 0 : i32
    %c0_i32_0 = arith.constant 0 : i32
    %c0_i32_1 = arith.constant 0 : i32
    return %c0_i32, %c0_i32_0 : i32, i32
  }
  func.func @transform_6(%arg0: i32) -> (i32, i32) {
    %c0_i32 = arith.constant 0 : i32
    %c0_i32_0 = arith.constant 0 : i32
    %c0_i32_1 = arith.constant 0 : i32
    return %c0_i32, %c0_i32_0 : i32, i32
  }
  func.func @transform_7(%arg0: i32) -> (i32, i32) {
    %c0_i32 = arith.constant 0 : i32
    %c0_i32_0 = arith.constant 0 : i32
    %c0_i32_1 = arith.constant 0 : i32
    return %c0_i32, %c0_i32_0 : i32, i32
  }
  func.func @transform_8(%arg0: i32) -> (i32, i32) {
    %c0_i32 = arith.constant 0 : i32
    %c0_i32_0 = arith.constant 0 : i32
    %c0_i32_1 = arith.constant 0 : i32
    return %c0_i32, %c0_i32_0 : i32, i32
  }
  func.func @transform_9(%arg0: i32) -> (i32, i32, i32) {
    %c0_i32 = arith.constant 0 : i32
    %c0_i32_0 = arith.constant 0 : i32
    %c0_i32_1 = arith.constant 0 : i32
    return %arg0, %c0_i32, %c0_i32_0 : i32, i32, i32
  }
}

</mosaic_0001>

<llo_original>
// kernel: cnn_forward.1
$region0: #{cnn_forward.1}
  #allocation0 [shape = 'u32[]', space=smem, size = 0x4, offset = 0x4, fixed_abs, tag = 'smem constant byte address 0x4 - core index']
  #allocation1 [shape = 'u32[72,128]{1,0:T(1,128)}', space=vmem, size = 0x9000, scoped, tag = 'internal scratch']
  #allocation2 [shape = 'bf16[28,160]{1,0:T(8,128)(2,1)}', space=vmem, size = 0x4000, scoped, tag = 'scratch operand']
  #allocation3 [shape = 'f32[28,448]{1,0:T(8,128)}', space=vmem, size = 0x10000, scoped, tag = 'scratch operand']
  #allocation4 [shape = 'f32[14,448]{1,0:T(8,128)}', space=vmem, size = 0x8000, scoped, tag = 'scratch operand']
  #allocation5 [shape = 'bf16[10,2240]{1,0:T(8,128)(2,1)}', space=vmem, size = 0x12000, scoped, tag = 'scratch operand']
  #allocation6 [shape = 'f32[10,160]{1,0:T(8,128)}', space=vmem, size = 0x4000, scoped, tag = 'scratch operand']
  #allocation7 [shape = 'bf16[1,800]{1,0:T(2,128)(2,1)}', space=vmem, size = 0xe00, scoped, tag = 'scratch operand']
  %s0 = inlined_call_operand.vmem [shape: f32[2,32,32], index: 0, kind: input, shape index: {}]
  %s1 = inlined_call_operand.vmem [shape: bf16[160,896], index: 1, kind: input, shape index: {}]
  %s2 = inlined_call_operand.vmem [shape: f32[1,896], index: 2, kind: input, shape index: {}]
  %s3 = inlined_call_operand.vmem [shape: bf16[2240,320], index: 3, kind: input, shape index: {}]
  %s4 = inlined_call_operand.vmem [shape: f32[1,320], index: 4, kind: input, shape index: {}]
  %s5 = inlined_call_operand.vmem [shape: bf16[800,256], index: 5, kind: input, shape index: {}]
  %s6 = inlined_call_operand.vmem [shape: f32[1,256], index: 6, kind: input, shape index: {}]
  %s7 = inlined_call_operand.vmem [shape: bf16[256,128], index: 7, kind: input, shape index: {}]
  %s8 = inlined_call_operand.vmem [shape: f32[1,128], index: 8, kind: input, shape index: {}]
  %s9 = inlined_call_operand.hbm [shape: f32[2,1,128], index: 9, kind: output, shape index: {}]
  %s10 = sld [smem:[#allocation0]]
  $region69: #{cnn_forward.1} parent=0
    _
  %s12 = ssub.s32 1, %s10
  %s13 = scalar_select 0, %s12, %s10
  $region1: #{cnn_forward.1} parent=0
    #allocation8 [shape = 'u8[1024]{0}', space=vmem, size = 0x400, scoped, tag = 'output window, operand 0']
    #allocation9 [shape = 's32[2]{0}', space=sflag, size = 0x8, scoped, tag = 'scoped memory for cnn_forward.1']
    %14 = vsyncpa [#allocation9], 0
    %s15 = scalar_lea.sflag [#allocation9], 1
    %16 = vsyncpa %s15, 0
    loop: start=0, step=1, limit=4
    $region2: #{cnn_forward.1} parent=1 // loop_pre_header
      _
    $region3: #{cnn_forward.1} parent=1 // loop_header
      %s18 = sphi 0, %s22
      %p19 = scmp.ge.s32.totalorder %s18, 4
      %s28 = sphi 0, %s30
      %s31 = sphi 0, %s28
      %s32 = sphi 0, %s31
      %s48 = sphi 0, %s32
      %s52 = sphi 0, %s52
      %s54 = sphi 0, %s52
      %s55 = sphi 0, %s54
      %s69 = sphi 0, %s55
      %s73 = sphi 0, %s73
      %s75 = sphi 0, %s73
      %s76 = sphi 0, %s75
      %s90 = sphi 0, %s76
      %s94 = sphi 0, %s94
      %s96 = sphi 0, %s94
      %s97 = sphi 0, %s96
      %s111 = sphi 0, %s97
      %s115 = sphi 0, %s115
      %s117 = sphi 0, %s115
      %s118 = sphi 0, %s117
      %s132 = sphi 0, %s118
      %s136 = sphi 0, %s136
      %s138 = sphi 0, %s136
      %s139 = sphi 0, %s138
      %s153 = sphi 0, %s139
      %s157 = sphi 0, %s157
      %s159 = sphi 0, %s157
      %s160 = sphi 0, %s159
      %s174 = sphi 0, %s160
      %s178 = sphi 0, %s178
      %s180 = sphi 0, %s178
      %s181 = sphi 0, %s180
      %s195 = sphi 0, %s181
      %s199 = sphi 0, %s199
      %s201 = sphi 0, %s199
      %s202 = sphi 0, %s201
      %s216 = sphi 0, %s202
      %s222 = sphi 0, %s224
      %s225 = sphi 0, %s222
      %s226 = sphi 0, %s225
      %s242 = sphi 0, %s226
    $region4: #{cnn_forward.1} parent=1 // loop_header_branch
      %21 = sbr.rel (%p19) target = $region8
    $region5: #{cnn_forward.1} parent=1 // loop_body
      %s23 = ssub.s32 %s18, 1
      %s24 = ssub.s32 %s18, 2
      %s25 = sadd.s32 %s18, 1
      %s26 = ssub.s32 %s18, %s25
      %p27 = scmp.eq.s32.totalorder %s26, 0
      %s29 = sadd.s32 %s28, 1
      %s30 = scalar_select %p27, %s28, %s29
      %p33 = pneg %p27
      %p34 = scmp.eq.s32.totalorder %s18, 1
      %p35 = por %p33, %p34
      %p36 = scmp.ne.s32.totalorder %s28, %s31
      %p37 = scmp.eq.s32.totalorder %s18, 0
      %p38 = por %p36, %p37
      %p39 = scmp.ne.s32.totalorder %s28, %s31
      %p40 = scmp.eq.s32.totalorder %s23, 1
      %p41 = por %p39, %p40
      %p42 = scmp.ne.s32.totalorder %s31, %s32
      %p43 = scmp.eq.s32.totalorder %s23, 0
      %p44 = por %p42, %p43
      %p45 = scmp.ne.s32.totalorder %s31, %s32
      %p46 = scmp.eq.s32.totalorder %s24, 1
      %p47 = por %p45, %p46
      %p49 = scmp.ne.s32.totalorder %s32, %s48
      %p50 = scmp.eq.s32.totalorder %s24, 0
      %p51 = por %p49, %p50
      %s53 = sadd.s32 %s52, 1
      %p56 = scmp.eq.s32.totalorder %s18, 1
      %p57 = scmp.ne.s32.totalorder %s52, %s54
      %p58 = scmp.eq.s32.totalorder %s18, 0
      %p59 = por %p57, %p58
      %p60 = scmp.ne.s32.totalorder %s52, %s54
      %p61 = scmp.eq.s32.totalorder %s23, 1
      %p62 = por %p60, %p61
      %p63 = scmp.ne.s32.totalorder %s54, %s55
      %p64 = scmp.eq.s32.totalorder %s23, 0
      %p65 = por %p63, %p64
      %p66 = scmp.ne.s32.totalorder %s54, %s55
      %p67 = scmp.eq.s32.totalorder %s24, 1
      %p68 = por %p66, %p67
      %p70 = scmp.ne.s32.totalorder %s55, %s69
      %p71 = scmp.eq.s32.totalorder %s24, 0
      %p72 = por %p70, %p71
      %s74 = sadd.s32 %s73, 1
      %p77 = scmp.eq.s32.totalorder %s18, 1
      %p78 = scmp.ne.s32.totalorder %s73, %s75
      %p79 = scmp.eq.s32.totalorder %s18, 0
      %p80 = por %p78, %p79
      %p81 = scmp.ne.s32.totalorder %s73, %s75
      %p82 = scmp.eq.s32.totalorder %s23, 1
      %p83 = por %p81, %p82
      %p84 = scmp.ne.s32.totalorder %s75, %s76
      %p85 = scmp.eq.s32.totalorder %s23, 0
      %p86 = por %p84, %p85
      %p87 = scmp.ne.s32.totalorder %s75, %s76
      %p88 = scmp.eq.s32.totalorder %s24, 1
      %p89 = por %p87, %p88
      %p91 = scmp.ne.s32.totalorder %s76, %s90
      %p92 = scmp.eq.s32.totalorder %s24, 0
      %p93 = por %p91, %p92
      %s95 = sadd.s32 %s94, 1
      %p98 = scmp.eq.s32.totalorder %s18, 1
      %p99 = scmp.ne.s32.totalorder %s94, %s96
      %p100 = scmp.eq.s32.totalorder %s18, 0
      %p101 = por %p99, %p100
      %p102 = scmp.ne.s32.totalorder %s94, %s96
      %p103 = scmp.eq.s32.totalorder %s23, 1
      %p104 = por %p102, %p103
      %p105 = scmp.ne.s32.totalorder %s96, %s97
      %p106 = scmp.eq.s32.totalorder %s23, 0
      %p107 = por %p105, %p106
      %p108 = scmp.ne.s32.totalorder %s96, %s97
      %p109 = scmp.eq.s32.totalorder %s24, 1
      %p110 = por %p108, %p109
      %p112 = scmp.ne.s32.totalorder %s97, %s111
      %p113 = scmp.eq.s32.totalorder %s24, 0
      %p114 = por %p112, %p113
      %s116 = sadd.s32 %s115, 1
      %p119 = scmp.eq.s32.totalorder %s18, 1
      %p120 = scmp.ne.s32.totalorder %s115, %s117
      %p121 = scmp.eq.s32.totalorder %s18, 0
      %p122 = por %p120, %p121
      %p123 = scmp.ne.s32.totalorder %s115, %s117
      %p124 = scmp.eq.s32.totalorder %s23, 1
      %p125 = por %p123, %p124
      %p126 = scmp.ne.s32.totalorder %s117, %s118
      %p127 = scmp.eq.s32.totalorder %s23, 0
      %p128 = por %p126, %p127
      %p129 = scmp.ne.s32.totalorder %s117, %s118
      %p130 = scmp.eq.s32.totalorder %s24, 1
      %p131 = por %p129, %p130
      %p133 = scmp.ne.s32.totalorder %s118, %s132
      %p134 = scmp.eq.s32.totalorder %s24, 0
      %p135 = por %p133, %p134
      %s137 = sadd.s32 %s136, 1
      %p140 = scmp.eq.s32.totalorder %s18, 1
      %p141 = scmp.ne.s32.totalorder %s136, %s138
      %p142 = scmp.eq.s32.totalorder %s18, 0
      %p143 = por %p141, %p142
      %p144 = scmp.ne.s32.totalorder %s136, %s138
      %p145 = scmp.eq.s32.totalorder %s23, 1
      %p146 = por %p144, %p145
      %p147 = scmp.ne.s32.totalorder %s138, %s139
      %p148 = scmp.eq.s32.totalorder %s23, 0
      %p149 = por %p147, %p148
      %p150 = scmp.ne.s32.totalorder %s138, %s139
      %p151 = scmp.eq.s32.totalorder %s24, 1
      %p152 = por %p150, %p151
      %p154 = scmp.ne.s32.totalorder %s139, %s153
      %p155 = scmp.eq.s32.totalorder %s24, 0
      %p156 = por %p154, %p155
      %s158 = sadd.s32 %s157, 1
      %p161 = scmp.eq.s32.totalorder %s18, 1
      %p162 = scmp.ne.s32.totalorder %s157, %s159
      %p163 = scmp.eq.s32.totalorder %s18, 0
      %p164 = por %p162, %p163
      %p165 = scmp.ne.s32.totalorder %s157, %s159
      %p166 = scmp.eq.s32.totalorder %s23, 1
      %p167 = por %p165, %p166
      %p168 = scmp.ne.s32.totalorder %s159, %s160
      %p169 = scmp.eq.s32.totalorder %s23, 0
      %p170 = por %p168, %p169
      %p171 = scmp.ne.s32.totalorder %s159, %s160
      %p172 = scmp.eq.s32.totalorder %s24, 1
      %p173 = por %p171, %p172
      %p175 = scmp.ne.s32.totalorder %s160, %s174
      %p176 = scmp.eq.s32.totalorder %s24, 0
      %p177 = por %p175, %p176
      %s179 = sadd.s32 %s178, 1
      %p182 = scmp.eq.s32.totalorder %s18, 1
      %p183 = scmp.ne.s32.totalorder %s178, %s180
      %p184 = scmp.eq.s32.totalorder %s18, 0
      %p185 = por %p183, %p184
      %p186 = scmp.ne.s32.totalorder %s178, %s180
      %p187 = scmp.eq.s32.totalorder %s23, 1
      %p188 = por %p186, %p187
      %p189 = scmp.ne.s32.totalorder %s180, %s181
      %p190 = scmp.eq.s32.totalorder %s23, 0
      %p191 = por %p189, %p190
      %p192 = scmp.ne.s32.totalorder %s180, %s181
      %p193 = scmp.eq.s32.totalorder %s24, 1
      %p194 = por %p192, %p193
      %p196 = scmp.ne.s32.totalorder %s181, %s195
      %p197 = scmp.eq.s32.totalorder %s24, 0
      %p198 = por %p196, %p197
      %s200 = sadd.s32 %s199, 1
      %p203 = scmp.eq.s32.totalorder %s18, 1
      %p204 = scmp.ne.s32.totalorder %s199, %s201
      %p205 = scmp.eq.s32.totalorder %s18, 0
      %p206 = por %p204, %p205
      %p207 = scmp.ne.s32.totalorder %s199, %s201
      %p208 = scmp.eq.s32.totalorder %s23, 1
      %p209 = por %p207, %p208
      %p210 = scmp.ne.s32.totalorder %s201, %s202
      %p211 = scmp.eq.s32.totalorder %s23, 0
      %p212 = por %p210, %p211
      %p213 = scmp.ne.s32.totalorder %s201, %s202
      %p214 = scmp.eq.s32.totalorder %s24, 1
      %p215 = por %p213, %p214
      %p217 = scmp.ne.s32.totalorder %s202, %s216
      %p218 = scmp.eq.s32.totalorder %s24, 0
      %p219 = por %p217, %p218
      %s220 = ssub.s32 %s18, %s25
      %p221 = scmp.eq.s32.totalorder %s220, 0
      %s223 = sadd.s32 %s222, 1
      %s224 = scalar_select %p221, %s222, %s223
      %p227 = pneg %p221
      %p228 = scmp.eq.s32.totalorder %s18, 1
      %p229 = por %p227, %p228
      %p230 = scmp.ne.s32.totalorder %s222, %s225
      %p231 = scmp.eq.s32.totalorder %s18, 0
      %p232 = por %p230, %p231
      %p233 = scmp.ne.s32.totalorder %s222, %s225
      %p234 = scmp.eq.s32.totalorder %s23, 1
      %p235 = por %p233, %p234
      %p236 = scmp.ne.s32.totalorder %s225, %s226
      %p237 = scmp.eq.s32.totalorder %s23, 0
      %p238 = por %p236, %p237
      %p239 = scmp.ne.s32.totalorder %s225, %s226
      %p240 = scmp.eq.s32.totalorder %s24, 1
      %p241 = por %p239, %p240
      %p243 = scmp.ne.s32.totalorder %s226, %s242
      %p244 = scmp.eq.s32.totalorder %s24, 0
      %p245 = por %p243, %p244
      %p246 = scmp.le.s32.totalorder 1, %s18
      %p247 = scmp.lt.s32.totalorder %s18, 3
      %p248 = pnand %p246, %p247
      %p249 = pneg %p248
      // Predicated region
      $region9: #{cnn_forward.1} parent=5 // pred_check
        _
      $region10: #{cnn_forward.1} parent=5 // pred_check_branch
        %251 = sbr.rel (%p248) target = $region12
      $region11: #{cnn_forward.1} parent=5 // pred_region
        %s252 = ssub.s32 %s18, 1
        // Predicated region
        $region13: #{cnn_forward.1} parent=11 // pred_check
          %p253 = pneg %p65
        $region14: #{cnn_forward.1} parent=11 // pred_check_branch
          %255 = sbr.rel (%p253) target = $region16
        $region15: #{cnn_forward.1} parent=11 // pred_region
          _
        $region16: #{cnn_forward.1} parent=11 // pred_fallthru
          _
        // Predicated region
        $region17: #{cnn_forward.1} parent=11 // pred_check
          %p256 = pneg %p86
        $region18: #{cnn_forward.1} parent=11 // pred_check_branch
          %258 = sbr.rel (%p256) target = $region20
        $region19: #{cnn_forward.1} parent=11 // pred_region
          _
        $region20: #{cnn_forward.1} parent=11 // pred_fallthru
          _
        // Predicated region
        $region21: #{cnn_forward.1} parent=11 // pred_check
          %p259 = pneg %p107
        $region22: #{cnn_forward.1} parent=11 // pred_check_branch
          %261 = sbr.rel (%p259) target = $region24
        $region23: #{cnn_forward.1} parent=11 // pred_region
          _
        $region24: #{cnn_forward.1} parent=11 // pred_fallthru
          _
        // Predicated region
        $region25: #{cnn_forward.1} parent=11 // pred_check
          %p262 = pneg %p128
        $region26: #{cnn_forward.1} parent=11 // pred_check_branch
          %264 = sbr.rel (%p262) target = $region28
        $region27: #{cnn_forward.1} parent=11 // pred_region
          _
        $region28: #{cnn_forward.1} parent=11 // pred_fallthru
          _
        // Predicated region
        $region29: #{cnn_forward.1} parent=11 // pred_check
          %p265 = pneg %p149
        $region30: #{cnn_forward.1} parent=11 // pred_check_branch
          %267 = sbr.rel (%p265) target = $region32
        $region31: #{cnn_forward.1} parent=11 // pred_region
          _
        $region32: #{cnn_forward.1} parent=11 // pred_fallthru
          _
        // Predicated region
        $region33: #{cnn_forward.1} parent=11 // pred_check
          %p268 = pneg %p170
        $region34: #{cnn_forward.1} parent=11 // pred_check_branch
          %270 = sbr.rel (%p268) target = $region36
        $region35: #{cnn_forward.1} parent=11 // pred_region
          _
        $region36: #{cnn_forward.1} parent=11 // pred_fallthru
          _
        // Predicated region
        $region37: #{cnn_forward.1} parent=11 // pred_check
          %p271 = pneg %p191
        $region38: #{cnn_forward.1} parent=11 // pred_check_branch
          %273 = sbr.rel (%p271) target = $region40
        $region39: #{cnn_forward.1} parent=11 // pred_region
          _
        $region40: #{cnn_forward.1} parent=11 // pred_fallthru
          _
        // Predicated region
        $region41: #{cnn_forward.1} parent=11 // pred_check
          %p274 = pneg %p212
        $region42: #{cnn_forward.1} parent=11 // pred_check_branch
          %276 = sbr.rel (%p274) target = $region44
        $region43: #{cnn_forward.1} parent=11 // pred_region
          _
        $region44: #{cnn_forward.1} parent=11 // pred_fallthru
          _
      $region12: #{cnn_forward.1} parent=5 // pred_fallthru
        _
      %p277 = scmp.lt.s32.totalorder %s18, 2
      // Predicated region
      $region45: #{cnn_forward.1} parent=5 // pred_check
        %p278 = pneg %p277
      $region46: #{cnn_forward.1} parent=5 // pred_check_branch
        %280 = sbr.rel (%p278) target = $region48
      $region47: #{cnn_forward.1} parent=5 // pred_region
        // Predicated region
        $region49: #{cnn_forward.1} parent=47 // pred_check
          %p281 = pneg %p38
        $region50: #{cnn_forward.1} parent=47 // pred_check_branch
          %283 = sbr.rel (%p281) target = $region52
        $region51: #{cnn_forward.1} parent=47 // pred_region
          %p284 = scmp.lt.s32.totalorder %s18, 1
          %s285 = scalar_select %p284, %s18, 1
          %s286 = smul.addr %s285, 4
          %s287 = smul.addr %s286, 8
          %s288 = scalar_lea.vmem %s0, %s287
        $region52: #{cnn_forward.1} parent=47 // pred_fallthru
          _
      $region48: #{cnn_forward.1} parent=5 // pred_fallthru
        _
      %p289 = scmp.le.s32.totalorder 1, %s18
      %p290 = scmp.lt.s32.totalorder %s18, 3
      %p291 = pnand %p289, %p290
      %p292 = pneg %p291
      // Predicated region
      $region53: #{cnn_forward.1} parent=5 // pred_check
        _
      $region54: #{cnn_forward.1} parent=5 // pred_check_branch
        %294 = sbr.rel (%p291) target = $region56
      $region55: #{cnn_forward.1} parent=5 // pred_region
        %s295 = ssub.s32 %s18, 1
        %p296 = scmp.lt.s32.totalorder %s23, 1
        %s297 = scalar_select %p296, %s23, 1
        %s298 = smul.addr %s297, 4
        %s299 = smul.addr %s298, 8
        %s300 = scalar_lea.vmem %s0, %s299
        %p301 = pneg %p44
        %p302 = pneg %p41
        %p303 = pneg %p65
        %p304 = pneg %p62
        %p305 = pneg %p86
        %p306 = pneg %p83
        %p307 = pneg %p107
        %p308 = pneg %p104
        %p309 = pneg %p128
        %p310 = pneg %p125
        %p311 = pneg %p149
        %p312 = pneg %p146
        %p313 = pneg %p170
        %p314 = pneg %p167
        %p315 = pneg %p191
        %p316 = pneg %p188
        %p317 = pneg %p212
        %p318 = pneg %p209
        %p319 = pneg %p238
        %p320 = pneg %p235
        %s321 = sand.u32 %s225, 1
        %s322 = scalar_lea.sflag [#allocation9], %s321
        %s323 = sand.u32 %s225, 1
        %s324 = scalar_lea.vmem [#allocation8], %s323
        %p325 = scmp.lt.s32.totalorder %s23, 1
        %s326 = scalar_select %p325, %s23, 1
        %s327 = smul.addr %s326, 4
        %s328 = smul.addr %s327, 8
        %s329 = scalar_lea.vmem %s0, %s328
        %v331 = vld [vmem:[%s329] sm:$0xff]
        %v332 = vld [vmem:[%s329 + $0x8] sm:$0xff]
        %v333 = vld [vmem:[%s329 + $0x10] sm:$0xff]
        %v334 = vld [vmem:[%s329 + $0x18] sm:$0xff]
        %v335 = vpack.c.bf16 %v331, %v331
        %v336 = vpack.c.bf16 %v332, %v332
        %v337 = vpack.c.bf16 %v333, %v333
        %v338 = vpack.c.bf16 %v334, %v334
        %vm339 = vcmask 257024
        %340 = vst.msk [vmem:[#allocation2] sm:$0xf] %vm339, %v335
        %341 = vst.msk [vmem:[#allocation2 + $0x8] sm:$0xf] %vm339, %v336
        %342 = vst.msk [vmem:[#allocation2 + $0x10] sm:$0xf] %vm339, %v337
        %vm343 = vcmask 254976
        %344 = vst.msk [vmem:[#allocation2 + $0x18] sm:$0x3] %vm343, %v338
        %vm345 = vsmask.f32 3328
        %vm346 = vsmask.f32 7440
        %vm347 = vmor %vm345, %vm346
        %v349 = vshrl.u32 %v335, 16
        %v351 = vrot.slane %v349, 4
        %v352 = vshll.u32 %v335, 16
        %v354 = vrot.slane %v352, 5
        %v355 = vor.u32 %v351, %v354
        %v356 = vrot.slane %v355, 4
        %v358 = vshll.u32 %v336, 16
        %v360 = vrot.slane %v358, 5
        %v361 = vsel %vm347, %v356, %v360
        %v362 = vshrl.u32 %v336, 16
        %v364 = vrot.slane %v362, 4
        %v365 = vor.u32 %v364, %v360
        %v366 = vrot.slane %v365, 4
        %v368 = vshll.u32 %v337, 16
        %v370 = vrot.slane %v368, 5
        %v371 = vsel %vm347, %v366, %v370
        %v372 = vshrl.u32 %v337, 16
        %v374 = vrot.slane %v372, 4
        %v375 = vor.u32 %v374, %v370
        %v376 = vrot.slane %v375, 4
        %v378 = vshll.u32 %v338, 16
        %v380 = vrot.slane %v378, 5
        %v381 = vsel %vm347, %v376, %v380
        %v382 = vshrl.u32 %v338, 16
        %v384 = vrot.slane %v382, 4
        %v385 = vor.u32 %v384, %v380
        %v386 = vrot.slane %v385, 4
        %387 = vrot.lane.b32.xlu0 %v361, 32
        %v388 = vpop.permute.xlu0 %387
        %389 = vrot.lane.b32.xlu0 %v371, 32
        %v390 = vpop.permute.xlu0 %389
        %391 = vrot.lane.b32.xlu0 %v381, 32
        %v392 = vpop.permute.xlu0 %391
        %393 = vrot.lane.b32.xlu0 %v386, 32
        %v394 = vpop.permute.xlu0 %393
        %vm399 = vcmask 519424
        %400 = vst.msk [vmem:[#allocation2] sm:$0xf] %vm399, %v388
        %401 = vst.msk [vmem:[#allocation2 + $0x8] sm:$0xf] %vm399, %v390
        %402 = vst.msk [vmem:[#allocation2 + $0x10] sm:$0xf] %vm399, %v392
        %vm403 = vcmask 517376
        %404 = vst.msk [vmem:[#allocation2 + $0x18] sm:$0x3] %vm403, %v394
        %vm409 = vcmask 1042432
        %vm410 = vcmask 1046532
        %vm411 = vmor %vm409, %vm410
        %v412 = vrot.slane %v335, 5
        %v413 = vrot.slane %v412, 4
        %v414 = vrot.slane %v336, 5
        %v415 = vsel %vm411, %v413, %v414
        %v416 = vrot.slane %v414, 4
        %v417 = vrot.slane %v337, 5
        %v418 = vsel %vm411, %v416, %v417
        %v419 = vrot.slane %v417, 4
        %v420 = vrot.slane %v338, 5
        %v421 = vsel %vm411, %v419, %v420
        %v422 = vrot.slane %v420, 4
        %423 = vrot.lane.b32.xlu0 %v415, 64
        %v424 = vpop.permute.xlu0 %423
        %425 = vrot.lane.b32.xlu0 %v418, 64
        %v426 = vpop.permute.xlu0 %425
        %427 = vrot.lane.b32.xlu0 %v421, 64
        %v428 = vpop.permute.xlu0 %427
        %429 = vrot.lane.b32.xlu0 %v422, 64
        %v430 = vpop.permute.xlu0 %429
        %vm435 = vcmask 781824
        %436 = vst.msk [vmem:[#allocation2] sm:$0xf] %vm435, %v424
        %437 = vst.msk [vmem:[#allocation2 + $0x8] sm:$0xf] %vm435, %v426
        %438 = vst.msk [vmem:[#allocation2 + $0x10] sm:$0xf] %vm435, %v428
        %vm439 = vcmask 779776
        %440 = vst.msk [vmem:[#allocation2 + $0x18] sm:$0x3] %vm439, %v430
        %vm441 = vsmask.f32 2304
        %vm442 = vsmask.f32 6416
        %vm443 = vmor %vm441, %vm442
        %v444 = vrot.slane %v349, 5
        %v445 = vrot.slane %v352, 6
        %v446 = vor.u32 %v444, %v445
        %v447 = vrot.slane %v446, 4
        %v448 = vrot.slane %v362, 5
        %v449 = vrot.slane %v358, 6
        %v450 = vor.u32 %v448, %v449
        %v451 = vsel %vm443, %v447, %v450
        %v452 = vrot.slane %v450, 4
        %v453 = vrot.slane %v372, 5
        %v454 = vrot.slane %v368, 6
        %v455 = vor.u32 %v453, %v454
        %v456 = vsel %vm443, %v452, %v455
        %v457 = vrot.slane %v455, 4
        %v458 = vrot.slane %v382, 5
        %v459 = vrot.slane %v378, 6
        %v460 = vor.u32 %v458, %v459
        %v461 = vsel %vm443, %v457, %v460
        %v462 = vrot.slane %v460, 4
        %463 = vrot.lane.b32.xlu0 %v451, 96
        %v464 = vpop.permute.xlu0 %463
        %465 = vrot.lane.b32.xlu0 %v456, 96
        %v466 = vpop.permute.xlu0 %465
        %467 = vrot.lane.b32.xlu0 %v461, 96
        %v468 = vpop.permute.xlu0 %467
        %469 = vrot.lane.b32.xlu0 %v462, 96
        %v470 = vpop.permute.xlu0 %469
        %vm475 = vcmask 1044224
        %476 = vst.msk [vmem:[#allocation2] sm:$0xf] %vm475, %v464
        %477 = vst.msk [vmem:[#allocation2 + $0x8] sm:$0xf] %vm475, %v466
        %478 = vst.msk [vmem:[#allocation2 + $0x10] sm:$0xf] %vm475, %v468
        %vm479 = vcmask 1042176
        %480 = vst.msk [vmem:[#allocation2 + $0x18] sm:$0x3] %vm479, %v470
        %vm481 = vcmask 1041408
        %vm482 = vcmask 1045508
        %vm483 = vmor %vm481, %vm482
        %v484 = vrot.slane %v335, 6
        %v485 = vrot.slane %v484, 4
        %v486 = vrot.slane %v336, 6
        %v487 = vsel %vm483, %v485, %v486
        %v488 = vrot.slane %v486, 4
        %v489 = vrot.slane %v337, 6
        %v490 = vsel %vm483, %v488, %v489
        %v491 = vrot.slane %v489, 4
        %v492 = vrot.slane %v338, 6
        %v493 = vsel %vm483, %v491, %v492
        %v494 = vrot.slane %v492, 4
        %499 = vst.msk [vmem:[#allocation2 + $0x4] sm:$0xf] %vm339, %v487
        %500 = vst.msk [vmem:[#allocation2 + $0xc] sm:$0xf] %vm339, %v490
        %501 = vst.msk [vmem:[#allocation2 + $0x14] sm:$0xf] %vm339, %v493
        %502 = vst.msk [vmem:[#allocation2 + $0x1c] sm:$0x3] %vm343, %v494
        %v503 = vld [vmem:[#allocation2] sm:$0xff]
        %v504 = vld [vmem:[#allocation2 + $0x8] sm:$0xff]
        %v505 = vld [vmem:[#allocation2 + $0x10] sm:$0xff]
        %v506 = vld [vmem:[#allocation2 + $0x18] sm:$0x33]
        %v507 = vld [vmem:[%s1] sm:$0xff]
        %v508 = vld [vmem:[%s1 + $0x8] sm:$0xff]
        %v509 = vld [vmem:[%s1 + $0x10] sm:$0xff]
        %v510 = vld [vmem:[%s1 + $0x18] sm:$0xf]
        %v511 = vld [vmem:[%s1 + $0x1c] sm:$0xff]
        %v512 = vld [vmem:[%s1 + $0x24] sm:$0xff]
        %v513 = vld [vmem:[%s1 + $0x2c] sm:$0xff]
        %v514 = vld [vmem:[%s1 + $0x34] sm:$0xf]
        %v515 = vld [vmem:[%s1 + $0x38] sm:$0xff]
        %v516 = vld [vmem:[%s1 + $0x40] sm:$0xff]
        %v517 = vld [vmem:[%s1 + $0x48] sm:$0xff]
        %v518 = vld [vmem:[%s1 + $0x50] sm:$0xf]
        %v519 = vld [vmem:[%s1 + $0x54] sm:$0xff]
        %v520 = vld [vmem:[%s1 + $0x5c] sm:$0xff]
        %v521 = vld [vmem:[%s1 + $0x64] sm:$0xff]
        %v522 = vld [vmem:[%s1 + $0x6c] sm:$0xf]
        %v523 = vld [vmem:[%s1 + $0x70] sm:$0xff]
        %v524 = vld [vmem:[%s1 + $0x78] sm:$0xff]
        %v525 = vld [vmem:[%s1 + $0x80] sm:$0xff]
        %v526 = vld [vmem:[%s1 + $0x88] sm:$0xf]
        %v527 = vld [vmem:[%s1 + $0x8c] sm:$0xff]
        %v528 = vld [vmem:[%s1 + $0x94] sm:$0xff]
        %v529 = vld [vmem:[%s1 + $0x9c] sm:$0xff]
        %v530 = vld [vmem:[%s1 + $0xa4] sm:$0xf]
        %v531 = vld [vmem:[%s1 + $0xa8] sm:$0xff]
        %v532 = vld [vmem:[%s1 + $0xb0] sm:$0xff]
        %v533 = vld [vmem:[%s1 + $0xb8] sm:$0xff]
        %v534 = vld [vmem:[%s1 + $0xc0] sm:$0xf]
        %v535 = vld [vmem:[%s1 + $0xc4] sm:$0xff]
        %v536 = vld [vmem:[%s1 + $0xcc] sm:$0xff]
        %v537 = vld [vmem:[%s1 + $0xd4] sm:$0xff]
        %v538 = vld [vmem:[%s1 + $0xdc] sm:$0xf]
        %v539 = vld [vmem:[%s1 + $0xe0] sm:$0xff]
        %v540 = vld [vmem:[%s1 + $0xe8] sm:$0xff]
        %v541 = vld [vmem:[%s1 + $0xf0] sm:$0xff]
        %v542 = vld [vmem:[%s1 + $0xf8] sm:$0xf]
        %v543 = vld [vmem:[%s1 + $0xfc] sm:$0xff]
        %v544 = vld [vmem:[%s1 + $0x104] sm:$0xff]
        %v545 = vld [vmem:[%s1 + $0x10c] sm:$0xff]
        %v546 = vld [vmem:[%s1 + $0x114] sm:$0xf]
        %v547 = vld [vmem:[%s1 + $0x118] sm:$0xff]
        %v548 = vld [vmem:[%s1 + $0x120] sm:$0xff]
        %v549 = vld [vmem:[%s1 + $0x128] sm:$0xff]
        %v550 = vld [vmem:[%s1 + $0x130] sm:$0xf]
        %v551 = vld [vmem:[%s1 + $0x134] sm:$0xff]
        %v552 = vld [vmem:[%s1 + $0x13c] sm:$0xff]
        %v553 = vld [vmem:[%s1 + $0x144] sm:$0xff]
        %v554 = vld [vmem:[%s1 + $0x14c] sm:$0xf]
        %v555 = vld [vmem:[%s1 + $0x150] sm:$0xff]
        %v556 = vld [vmem:[%s1 + $0x158] sm:$0xff]
        %v557 = vld [vmem:[%s1 + $0x160] sm:$0xff]
        %v558 = vld [vmem:[%s1 + $0x168] sm:$0xf]
        %v559 = vld [vmem:[%s1 + $0x16c] sm:$0xff]
        %v560 = vld [vmem:[%s1 + $0x174] sm:$0xff]
        %v561 = vld [vmem:[%s1 + $0x17c] sm:$0xff]
        %v562 = vld [vmem:[%s1 + $0x184] sm:$0xf]
        %v563 = vld [vmem:[%s1 + $0x188] sm:$0xff]
        %v564 = vld [vmem:[%s1 + $0x190] sm:$0xff]
        %v565 = vld [vmem:[%s1 + $0x198] sm:$0xff]
        %v566 = vld [vmem:[%s1 + $0x1a0] sm:$0xf]
        %v567 = vld [vmem:[%s1 + $0x1a4] sm:$0xff]
        %v568 = vld [vmem:[%s1 + $0x1ac] sm:$0xff]
        %v569 = vld [vmem:[%s1 + $0x1b4] sm:$0xff]
        %v570 = vld [vmem:[%s1 + $0x1bc] sm:$0xf]
        %v571 = vld [vmem:[%s1 + $0x1c0] sm:$0xff]
        %v572 = vld [vmem:[%s1 + $0x1c8] sm:$0xff]
        %v573 = vld [vmem:[%s1 + $0x1d0] sm:$0xff]
        %v574 = vld [vmem:[%s1 + $0x1d8] sm:$0xf]
        %v575 = vld [vmem:[%s1 + $0x1dc] sm:$0xff]
        %v576 = vld [vmem:[%s1 + $0x1e4] sm:$0xff]
        %v577 = vld [vmem:[%s1 + $0x1ec] sm:$0xff]
        %v578 = vld [vmem:[%s1 + $0x1f4] sm:$0xf]
        %v579 = vld [vmem:[%s1 + $0x1f8] sm:$0xff]
        %v580 = vld [vmem:[%s1 + $0x200] sm:$0xff]
        %v581 = vld [vmem:[%s1 + $0x208] sm:$0xff]
        %v582 = vld [vmem:[%s1 + $0x210] sm:$0xf]
        %v583 = vld [vmem:[%s1 + $0x214] sm:$0xff]
        %v584 = vld [vmem:[%s1 + $0x21c] sm:$0xff]
        %v585 = vld [vmem:[%s1 + $0x224] sm:$0xff]
        %v586 = vld [vmem:[%s1 + $0x22c] sm:$0xf]
        %v587 = vld [vmem:[%s2] sm:$0xff]
        %v589 = vperm.slane %v587, 0
        %v590 = vperm.slane %v587, 1
        %v591 = vperm.slane %v587, 2
        %v592 = vperm.slane %v587, 3
        %v593 = vperm.slane %v587, 4
        %v594 = vperm.slane %v587, 5
        %v595 = vperm.slane %v587, 6
        %v607 = vunpack.c.l.b16 %v503
        %v608 = vunpack.c.h.b16 %v503
        %v609 = vunpack.c.l.b16 %v504
        %v610 = vunpack.c.h.b16 %v504
        %v611 = vunpack.c.l.b16 %v505
        %v612 = vunpack.c.h.b16 %v505
        %v613 = vunpack.c.l.b16 %v506
        %v614 = vunpack.c.h.b16 %v506
        %v615 = vpack.c.b16 %v609, %v607
        %v616 = vpack.c.b16 %v610, %v608
        %v617 = vpack.c.b16 %v613, %v611
        %v618 = vpack.c.b16 %v614, %v612
        %v701 = vunpack.c.l.b16 %v507
        %v702 = vunpack.c.h.b16 %v507
        %v703 = vunpack.c.l.b16 %v508
        %v704 = vunpack.c.h.b16 %v508
        %v705 = vunpack.c.l.b16 %v509
        %v706 = vunpack.c.h.b16 %v509
        %v707 = vunpack.c.l.b16 %v510
        %v708 = vunpack.c.l.b16 %v511
        %v709 = vunpack.c.h.b16 %v511
        %v710 = vunpack.c.l.b16 %v512
        %v711 = vunpack.c.h.b16 %v512
        %v712 = vunpack.c.l.b16 %v513
        %v713 = vunpack.c.h.b16 %v513
        %v714 = vunpack.c.l.b16 %v514
        %v715 = vunpack.c.l.b16 %v515
        %v716 = vunpack.c.h.b16 %v515
        %v717 = vunpack.c.l.b16 %v516
        %v718 = vunpack.c.h.b16 %v516
        %v719 = vunpack.c.l.b16 %v517
        %v720 = vunpack.c.h.b16 %v517
        %v721 = vunpack.c.l.b16 %v518
        %v722 = vunpack.c.l.b16 %v519
        %v723 = vunpack.c.h.b16 %v519
        %v724 = vunpack.c.l.b16 %v520
        %v725 = vunpack.c.h.b16 %v520
        %v726 = vunpack.c.l.b16 %v521
        %v727 = vunpack.c.h.b16 %v521
        %v728 = vunpack.c.l.b16 %v522
        %v729 = vunpack.c.l.b16 %v523
        %v730 = vunpack.c.h.b16 %v523
        %v731 = vunpack.c.l.b16 %v524
        %v732 = vunpack.c.h.b16 %v524
        %v733 = vunpack.c.l.b16 %v525
        %v734 = vunpack.c.h.b16 %v525
        %v735 = vunpack.c.l.b16 %v526
        %v736 = vunpack.c.l.b16 %v527
        %v737 = vunpack.c.h.b16 %v527
        %v738 = vunpack.c.l.b16 %v528
        %v739 = vunpack.c.h.b16 %v528
        %v740 = vunpack.c.l.b16 %v529
        %v741 = vunpack.c.h.b16 %v529
        %v742 = vunpack.c.l.b16 %v530
        %v743 = vunpack.c.l.b16 %v531
        %v744 = vunpack.c.h.b16 %v531
        %v745 = vunpack.c.l.b16 %v532
        %v746 = vunpack.c.h.b16 %v532
        %v747 = vunpack.c.l.b16 %v533
        %v748 = vunpack.c.h.b16 %v533
        %v749 = vunpack.c.l.b16 %v534
        %v750 = vunpack.c.l.b16 %v535
        %v751 = vunpack.c.h.b16 %v535
        %v752 = vunpack.c.l.b16 %v536
        %v753 = vunpack.c.h.b16 %v536
        %v754 = vunpack.c.l.b16 %v537
        %v755 = vunpack.c.h.b16 %v537
        %v756 = vunpack.c.l.b16 %v538
        %v757 = vunpack.c.l.b16 %v539
        %v758 = vunpack.c.h.b16 %v539
        %v759 = vunpack.c.l.b16 %v540
        %v760 = vunpack.c.h.b16 %v540
        %v761 = vunpack.c.l.b16 %v541
        %v762 = vunpack.c.h.b16 %v541
        %v763 = vunpack.c.l.b16 %v542
        %v764 = vunpack.c.l.b16 %v543
        %v765 = vunpack.c.h.b16 %v543
        %v766 = vunpack.c.l.b16 %v544
        %v767 = vunpack.c.h.b16 %v544
        %v768 = vunpack.c.l.b16 %v545
        %v769 = vunpack.c.h.b16 %v545
        %v770 = vunpack.c.l.b16 %v546
        %v771 = vunpack.c.l.b16 %v547
        %v772 = vunpack.c.h.b16 %v547
        %v773 = vunpack.c.l.b16 %v548
        %v774 = vunpack.c.h.b16 %v548
        %v775 = vunpack.c.l.b16 %v549
        %v776 = vunpack.c.h.b16 %v549
        %v777 = vunpack.c.l.b16 %v550
        %v778 = vunpack.c.l.b16 %v551
        %v779 = vunpack.c.h.b16 %v551
        %v780 = vunpack.c.l.b16 %v552
        %v781 = vunpack.c.h.b16 %v552
        %v782 = vunpack.c.l.b16 %v553
        %v783 = vunpack.c.h.b16 %v553
        %v784 = vunpack.c.l.b16 %v554
        %v785 = vunpack.c.l.b16 %v555
        %v786 = vunpack.c.h.b16 %v555
        %v787 = vunpack.c.l.b16 %v556
        %v788 = vunpack.c.h.b16 %v556
        %v789 = vunpack.c.l.b16 %v557
        %v790 = vunpack.c.h.b16 %v557
        %v791 = vunpack.c.l.b16 %v558
        %v792 = vunpack.c.l.b16 %v559
        %v793 = vunpack.c.h.b16 %v559
        %v794 = vunpack.c.l.b16 %v560
        %v795 = vunpack.c.h.b16 %v560
        %v796 = vunpack.c.l.b16 %v561
        %v797 = vunpack.c.h.b16 %v561
        %v798 = vunpack.c.l.b16 %v562
        %v799 = vunpack.c.l.b16 %v563
        %v800 = vunpack.c.h.b16 %v563
        %v801 = vunpack.c.l.b16 %v564
        %v802 = vunpack.c.h.b16 %v564
        %v803 = vunpack.c.l.b16 %v565
        %v804 = vunpack.c.h.b16 %v565
        %v805 = vunpack.c.l.b16 %v566
        %v806 = vunpack.c.l.b16 %v567
        %v807 = vunpack.c.h.b16 %v567
        %v808 = vunpack.c.l.b16 %v568
        %v809 = vunpack.c.h.b16 %v568
        %v810 = vunpack.c.l.b16 %v569
        %v811 = vunpack.c.h.b16 %v569
        %v812 = vunpack.c.l.b16 %v570
        %v813 = vunpack.c.l.b16 %v571
        %v814 = vunpack.c.h.b16 %v571
        %v815 = vunpack.c.l.b16 %v572
        %v816 = vunpack.c.h.b16 %v572
        %v817 = vunpack.c.l.b16 %v573
        %v818 = vunpack.c.h.b16 %v573
        %v819 = vunpack.c.l.b16 %v574
        %v820 = vunpack.c.l.b16 %v575
        %v821 = vunpack.c.h.b16 %v575
        %v822 = vunpack.c.l.b16 %v576
        %v823 = vunpack.c.h.b16 %v576
        %v824 = vunpack.c.l.b16 %v577
        %v825 = vunpack.c.h.b16 %v577
        %v826 = vunpack.c.l.b16 %v578
        %v827 = vunpack.c.l.b16 %v579
        %v828 = vunpack.c.h.b16 %v579
        %v829 = vunpack.c.l.b16 %v580
        %v830 = vunpack.c.h.b16 %v580
        %v831 = vunpack.c.l.b16 %v581
        %v832 = vunpack.c.h.b16 %v581
        %v833 = vunpack.c.l.b16 %v582
        %v834 = vunpack.c.l.b16 %v583
        %v835 = vunpack.c.h.b16 %v583
        %v836 = vunpack.c.l.b16 %v584
        %v837 = vunpack.c.h.b16 %v584
        %v838 = vunpack.c.l.b16 %v585
        %v839 = vunpack.c.h.b16 %v585
        %v840 = vunpack.c.l.b16 %v586
        %v841 = vpack.c.b16 %v708, %v701
        %v842 = vpack.c.b16 %v709, %v702
        %v843 = vpack.c.b16 %v710, %v703
        %v844 = vpack.c.b16 %v711, %v704
        %v845 = vpack.c.b16 %v712, %v705
        %v846 = vpack.c.b16 %v713, %v706
        %v847 = vpack.c.b16 %v714, %v707
        %v848 = vpack.c.b16 %v722, %v715
        %v849 = vpack.c.b16 %v723, %v716
        %v850 = vpack.c.b16 %v724, %v717
        %v851 = vpack.c.b16 %v725, %v718
        %v852 = vpack.c.b16 %v726, %v719
        %v853 = vpack.c.b16 %v727, %v720
        %v854 = vpack.c.b16 %v728, %v721
        %v855 = vpack.c.b16 %v736, %v729
        %v856 = vpack.c.b16 %v737, %v730
        %v857 = vpack.c.b16 %v738, %v731
        %v858 = vpack.c.b16 %v739, %v732
        %v859 = vpack.c.b16 %v740, %v733
        %v860 = vpack.c.b16 %v741, %v734
        %v861 = vpack.c.b16 %v742, %v735
        %v862 = vpack.c.b16 %v750, %v743
        %v863 = vpack.c.b16 %v751, %v744
        %v864 = vpack.c.b16 %v752, %v745
        %v865 = vpack.c.b16 %v753, %v746
        %v866 = vpack.c.b16 %v754, %v747
        %v867 = vpack.c.b16 %v755, %v748
        %v868 = vpack.c.b16 %v756, %v749
        %v869 = vpack.c.b16 %v764, %v757
        %v870 = vpack.c.b16 %v765, %v758
        %v871 = vpack.c.b16 %v766, %v759
        %v872 = vpack.c.b16 %v767, %v760
        %v873 = vpack.c.b16 %v768, %v761
        %v874 = vpack.c.b16 %v769, %v762
        %v875 = vpack.c.b16 %v770, %v763
        %v876 = vpack.c.b16 %v778, %v771
        %v877 = vpack.c.b16 %v779, %v772
        %v878 = vpack.c.b16 %v780, %v773
        %v879 = vpack.c.b16 %v781, %v774
        %v880 = vpack.c.b16 %v782, %v775
        %v881 = vpack.c.b16 %v783, %v776
        %v882 = vpack.c.b16 %v784, %v777
        %v883 = vpack.c.b16 %v792, %v785
        %v884 = vpack.c.b16 %v793, %v786
        %v885 = vpack.c.b16 %v794, %v787
        %v886 = vpack.c.b16 %v795, %v788
        %v887 = vpack.c.b16 %v796, %v789
        %v888 = vpack.c.b16 %v797, %v790
        %v889 = vpack.c.b16 %v798, %v791
        %v890 = vpack.c.b16 %v806, %v799
        %v891 = vpack.c.b16 %v807, %v800
        %v892 = vpack.c.b16 %v808, %v801
        %v893 = vpack.c.b16 %v809, %v802
        %v894 = vpack.c.b16 %v810, %v803
        %v895 = vpack.c.b16 %v811, %v804
        %v896 = vpack.c.b16 %v812, %v805
        %v897 = vpack.c.b16 %v820, %v813
        %v898 = vpack.c.b16 %v821, %v814
        %v899 = vpack.c.b16 %v822, %v815
        %v900 = vpack.c.b16 %v823, %v816
        %v901 = vpack.c.b16 %v824, %v817
        %v902 = vpack.c.b16 %v825, %v818
        %v903 = vpack.c.b16 %v826, %v819
        %v904 = vpack.c.b16 %v834, %v827
        %v905 = vpack.c.b16 %v835, %v828
        %v906 = vpack.c.b16 %v836, %v829
        %v907 = vpack.c.b16 %v837, %v830
        %v908 = vpack.c.b16 %v838, %v831
        %v909 = vpack.c.b16 %v839, %v832
        %v910 = vpack.c.b16 %v840, %v833
        %vm981 = vcmask 261120
        %v983 = vsel %vm981, %v616, 0
        %v986 = vsel %vm981, %v618, 0
        %988 = vmatpush.bf16.msra.mxu0 %v890
        %989 = vmatpush.bf16.msra.mxu0 %v883
        %990 = vmatpush.bf16.msra.mxu0 %v876
        %991 = vmatpush.bf16.msra.mxu0 %v869
        %992 = vmatpush.bf16.msra.mxu0 %v862
        %993 = vmatpush.bf16.msra.mxu0 %v855
        %994 = vmatpush.bf16.msra.mxu0 %v848
        %995 = vmatpush.bf16.msra.mxu0 %v841
        %996 = vmatmul.bf16.gmra.mxu0 %v615
        %v997 = vpop.f32.mrf.mxu0
        %v998 = vadd.f32 %v589, %v997
        %v999 = vpop.f32.mrf.mxu0
        %v1000 = vadd.f32 %v589, %v999
        %1001 = vmatmul.bf16.gmra.mxu0 %v617
        %v1002 = vpop.f32.mrf.mxu0
        %v1003 = vadd.f32 %v589, %v1002
        %v1004 = vpop.f32.mrf.mxu0
        %v1005 = vadd.f32 %v589, %v1004
        %1006 = vdwg.mxu0
        %1007 = vmatpush.bf16.msra.mxu0 0
        %1008 = vmatpush.bf16.msra.mxu0 0
        %1009 = vmatpush.bf16.msra.mxu0 0
        %1010 = vmatpush.bf16.msra.mxu0 0
        %1011 = vmatpush.bf16.msra.mxu0 0
        %1012 = vmatpush.bf16.msra.mxu0 0
        %1013 = vmatpush.bf16.msra.mxu0 %v904
        %1014 = vmatpush.bf16.msra.mxu0 %v897
        %1015 = vmatmul.bf16.gmra.mxu0 %v983
        %v1016 = vpop.f32.mrf.mxu0
        %v1017 = vadd.f32 %v998, %v1016
        %v1018 = vpop.f32.mrf.mxu0
        %v1019 = vadd.f32 %v1000, %v1018
        %1020 = vmatmul.bf16.gmra.mxu0 %v986
        %v1021 = vpop.f32.mrf.mxu0
        %v1022 = vadd.f32 %v1003, %v1021
        %v1023 = vpop.f32.mrf.mxu0
        %v1024 = vadd.f32 %v1005, %v1023
        %1025 = vdwg.mxu0
        %1026 = vmatpush.bf16.msra.mxu0 %v891
        %1027 = vmatpush.bf16.msra.mxu0 %v884
        %1028 = vmatpush.bf16.msra.mxu0 %v877
        %1029 = vmatpush.bf16.msra.mxu0 %v870
        %1030 = vmatpush.bf16.msra.mxu0 %v863
        %1031 = vmatpush.bf16.msra.mxu0 %v856
        %1032 = vmatpush.bf16.msra.mxu0 %v849
        %1033 = vmatpush.bf16.msra.mxu0 %v842
        %1034 = vmatmul.bf16.gmra.mxu0 %v615
        %v1035 = vpop.f32.mrf.mxu0
        %v1036 = vadd.f32 %v590, %v1035
        %v1037 = vpop.f32.mrf.mxu0
        %v1038 = vadd.f32 %v590, %v1037
        %1039 = vmatmul.bf16.gmra.mxu0 %v617
        %v1040 = vpop.f32.mrf.mxu0
        %v1041 = vadd.f32 %v590, %v1040
        %v1042 = vpop.f32.mrf.mxu0
        %v1043 = vadd.f32 %v590, %v1042
        %1044 = vdwg.mxu0
        %1045 = vmatpush.bf16.msra.mxu0 0
        %1046 = vmatpush.bf16.msra.mxu0 0
        %1047 = vmatpush.bf16.msra.mxu0 0
        %1048 = vmatpush.bf16.msra.mxu0 0
        %1049 = vmatpush.bf16.msra.mxu0 0
        %1050 = vmatpush.bf16.msra.mxu0 0
        %1051 = vmatpush.bf16.msra.mxu0 %v905
        %1052 = vmatpush.bf16.msra.mxu0 %v898
        %1053 = vmatmul.bf16.gmra.mxu0 %v983
        %v1054 = vpop.f32.mrf.mxu0
        %v1055 = vadd.f32 %v1036, %v1054
        %v1056 = vpop.f32.mrf.mxu0
        %v1057 = vadd.f32 %v1038, %v1056
        %1058 = vmatmul.bf16.gmra.mxu0 %v986
        %v1059 = vpop.f32.mrf.mxu0
        %v1060 = vadd.f32 %v1041, %v1059
        %v1061 = vpop.f32.mrf.mxu0
        %v1062 = vadd.f32 %v1043, %v1061
        %1063 = vdwg.mxu0
        %1064 = vmatpush.bf16.msra.mxu0 %v892
        %1065 = vmatpush.bf16.msra.mxu0 %v885
        %1066 = vmatpush.bf16.msra.mxu0 %v878
        %1067 = vmatpush.bf16.msra.mxu0 %v871
        %1068 = vmatpush.bf16.msra.mxu0 %v864
        %1069 = vmatpush.bf16.msra.mxu0 %v857
        %1070 = vmatpush.bf16.msra.mxu0 %v850
        %1071 = vmatpush.bf16.msra.mxu0 %v843
        %1072 = vmatmul.bf16.gmra.mxu0 %v615
        %v1073 = vpop.f32.mrf.mxu0
        %v1074 = vadd.f32 %v591, %v1073
        %v1075 = vpop.f32.mrf.mxu0
        %v1076 = vadd.f32 %v591, %v1075
        %1077 = vmatmul.bf16.gmra.mxu0 %v617
        %v1078 = vpop.f32.mrf.mxu0
        %v1079 = vadd.f32 %v591, %v1078
        %v1080 = vpop.f32.mrf.mxu0
        %v1081 = vadd.f32 %v591, %v1080
        %1082 = vdwg.mxu0
        %1083 = vmatpush.bf16.msra.mxu0 0
        %1084 = vmatpush.bf16.msra.mxu0 0
        %1085 = vmatpush.bf16.msra.mxu0 0
        %1086 = vmatpush.bf16.msra.mxu0 0
        %1087 = vmatpush.bf16.msra.mxu0 0
        %1088 = vmatpush.bf16.msra.mxu0 0
        %1089 = vmatpush.bf16.msra.mxu0 %v906
        %1090 = vmatpush.bf16.msra.mxu0 %v899
        %1091 = vmatmul.bf16.gmra.mxu0 %v983
        %v1092 = vpop.f32.mrf.mxu0
        %v1093 = vadd.f32 %v1074, %v1092
        %v1094 = vpop.f32.mrf.mxu0
        %v1095 = vadd.f32 %v1076, %v1094
        %1096 = vmatmul.bf16.gmra.mxu0 %v986
        %v1097 = vpop.f32.mrf.mxu0
        %v1098 = vadd.f32 %v1079, %v1097
        %v1099 = vpop.f32.mrf.mxu0
        %v1100 = vadd.f32 %v1081, %v1099
        %1101 = vdwg.mxu0
        %1102 = vmatpush.bf16.msra.mxu0 %v893
        %1103 = vmatpush.bf16.msra.mxu0 %v886
        %1104 = vmatpush.bf16.msra.mxu0 %v879
        %1105 = vmatpush.bf16.msra.mxu0 %v872
        %1106 = vmatpush.bf16.msra.mxu0 %v865
        %1107 = vmatpush.bf16.msra.mxu0 %v858
        %1108 = vmatpush.bf16.msra.mxu0 %v851
        %1109 = vmatpush.bf16.msra.mxu0 %v844
        %1110 = vmatmul.bf16.gmra.mxu0 %v615
        %v1111 = vpop.f32.mrf.mxu0
        %v1112 = vadd.f32 %v592, %v1111
        %v1113 = vpop.f32.mrf.mxu0
        %v1114 = vadd.f32 %v592, %v1113
        %1115 = vmatmul.bf16.gmra.mxu0 %v617
        %v1116 = vpop.f32.mrf.mxu0
        %v1117 = vadd.f32 %v592, %v1116
        %v1118 = vpop.f32.mrf.mxu0
        %v1119 = vadd.f32 %v592, %v1118
        %1120 = vdwg.mxu0
        %1121 = vmatpush.bf16.msra.mxu0 0
        %1122 = vmatpush.bf16.msra.mxu0 0
        %1123 = vmatpush.bf16.msra.mxu0 0
        %1124 = vmatpush.bf16.msra.mxu0 0
        %1125 = vmatpush.bf16.msra.mxu0 0
        %1126 = vmatpush.bf16.msra.mxu0 0
        %1127 = vmatpush.bf16.msra.mxu0 %v907
        %1128 = vmatpush.bf16.msra.mxu0 %v900
        %1129 = vmatmul.bf16.gmra.mxu0 %v983
        %v1130 = vpop.f32.mrf.mxu0
        %v1131 = vadd.f32 %v1112, %v1130
        %v1132 = vpop.f32.mrf.mxu0
        %v1133 = vadd.f32 %v1114, %v1132
        %1134 = vmatmul.bf16.gmra.mxu0 %v986
        %v1135 = vpop.f32.mrf.mxu0
        %v1136 = vadd.f32 %v1117, %v1135
        %v1137 = vpop.f32.mrf.mxu0
        %v1138 = vadd.f32 %v1119, %v1137
        %1139 = vdwg.mxu0
        %1140 = vmatpush.bf16.msra.mxu0 %v894
        %1141 = vmatpush.bf16.msra.mxu0 %v887
        %1142 = vmatpush.bf16.msra.mxu0 %v880
        %1143 = vmatpush.bf16.msra.mxu0 %v873
        %1144 = vmatpush.bf16.msra.mxu0 %v866
        %1145 = vmatpush.bf16.msra.mxu0 %v859
        %1146 = vmatpush.bf16.msra.mxu0 %v852
        %1147 = vmatpush.bf16.msra.mxu0 %v845
        %1148 = vmatmul.bf16.gmra.mxu0 %v615
        %v1149 = vpop.f32.mrf.mxu0
        %v1150 = vadd.f32 %v593, %v1149
        %v1151 = vpop.f32.mrf.mxu0
        %v1152 = vadd.f32 %v593, %v1151
        %1153 = vmatmul.bf16.gmra.mxu0 %v617
        %v1154 = vpop.f32.mrf.mxu0
        %v1155 = vadd.f32 %v593, %v1154
        %v1156 = vpop.f32.mrf.mxu0
        %v1157 = vadd.f32 %v593, %v1156
        %1158 = vdwg.mxu0
        %1159 = vmatpush.bf16.msra.mxu0 0
        %1160 = vmatpush.bf16.msra.mxu0 0
        %1161 = vmatpush.bf16.msra.mxu0 0
        %1162 = vmatpush.bf16.msra.mxu0 0
        %1163 = vmatpush.bf16.msra.mxu0 0
        %1164 = vmatpush.bf16.msra.mxu0 0
        %1165 = vmatpush.bf16.msra.mxu0 %v908
        %1166 = vmatpush.bf16.msra.mxu0 %v901
        %1167 = vmatmul.bf16.gmra.mxu0 %v983
        %v1168 = vpop.f32.mrf.mxu0
        %v1169 = vadd.f32 %v1150, %v1168
        %v1170 = vpop.f32.mrf.mxu0
        %v1171 = vadd.f32 %v1152, %v1170
        %1172 = vmatmul.bf16.gmra.mxu0 %v986
        %v1173 = vpop.f32.mrf.mxu0
        %v1174 = vadd.f32 %v1155, %v1173
        %v1175 = vpop.f32.mrf.mxu0
        %v1176 = vadd.f32 %v1157, %v1175
        %1177 = vdwg.mxu0
        %1178 = vmatpush.bf16.msra.mxu0 %v895
        %1179 = vmatpush.bf16.msra.mxu0 %v888
        %1180 = vmatpush.bf16.msra.mxu0 %v881
        %1181 = vmatpush.bf16.msra.mxu0 %v874
        %1182 = vmatpush.bf16.msra.mxu0 %v867
        %1183 = vmatpush.bf16.msra.mxu0 %v860
        %1184 = vmatpush.bf16.msra.mxu0 %v853
        %1185 = vmatpush.bf16.msra.mxu0 %v846
        %1186 = vmatmul.bf16.gmra.mxu0 %v615
        %v1187 = vpop.f32.mrf.mxu0
        %v1188 = vadd.f32 %v594, %v1187
        %v1189 = vpop.f32.mrf.mxu0
        %v1190 = vadd.f32 %v594, %v1189
        %1191 = vmatmul.bf16.gmra.mxu0 %v617
        %v1192 = vpop.f32.mrf.mxu0
        %v1193 = vadd.f32 %v594, %v1192
        %v1194 = vpop.f32.mrf.mxu0
        %v1195 = vadd.f32 %v594, %v1194
        %1196 = vdwg.mxu0
        %1197 = vmatpush.bf16.msra.mxu0 0
        %1198 = vmatpush.bf16.msra.mxu0 0
        %1199 = vmatpush.bf16.msra.mxu0 0
        %1200 = vmatpush.bf16.msra.mxu0 0
        %1201 = vmatpush.bf16.msra.mxu0 0
        %1202 = vmatpush.bf16.msra.mxu0 0
        %1203 = vmatpush.bf16.msra.mxu0 %v909
        %1204 = vmatpush.bf16.msra.mxu0 %v902
        %1205 = vmatmul.bf16.gmra.mxu0 %v983
        %v1206 = vpop.f32.mrf.mxu0
        %v1207 = vadd.f32 %v1188, %v1206
        %v1208 = vpop.f32.mrf.mxu0
        %v1209 = vadd.f32 %v1190, %v1208
        %1210 = vmatmul.bf16.gmra.mxu0 %v986
        %v1211 = vpop.f32.mrf.mxu0
        %v1212 = vadd.f32 %v1193, %v1211
        %v1213 = vpop.f32.mrf.mxu0
        %v1214 = vadd.f32 %v1195, %v1213
        %1215 = vdwg.mxu0
        %1216 = vmatpush.bf16.msra.mxu0 %v896
        %1217 = vmatpush.bf16.msra.mxu0 %v889
        %1218 = vmatpush.bf16.msra.mxu0 %v882
        %1219 = vmatpush.bf16.msra.mxu0 %v875
        %1220 = vmatpush.bf16.msra.mxu0 %v868
        %1221 = vmatpush.bf16.msra.mxu0 %v861
        %1222 = vmatpush.bf16.msra.mxu0 %v854
        %1223 = vmatpush.bf16.msra.mxu0 %v847
        %1224 = vmatmul.bf16.gmra.mxu0 %v615
        %v1225 = vpop.f32.mrf.mxu0
        %v1226 = vadd.f32 %v595, %v1225
        %v1227 = vpop.f32.mrf.mxu0
        %v1228 = vadd.f32 %v595, %v1227
        %1229 = vmatmul.bf16.gmra.mxu0 %v617
        %v1230 = vpop.f32.mrf.mxu0
        %v1231 = vadd.f32 %v595, %v1230
        %v1232 = vpop.f32.mrf.mxu0
        %v1233 = vadd.f32 %v595, %v1232
        %1234 = vdwg.mxu0
        %1235 = vmatpush.bf16.msra.mxu0 0
        %1236 = vmatpush.bf16.msra.mxu0 0
        %1237 = vmatpush.bf16.msra.mxu0 0
        %1238 = vmatpush.bf16.msra.mxu0 0
        %1239 = vmatpush.bf16.msra.mxu0 0
        %1240 = vmatpush.bf16.msra.mxu0 0
        %1241 = vmatpush.bf16.msra.mxu0 %v910
        %1242 = vmatpush.bf16.msra.mxu0 %v903
        %1243 = vmatmul.bf16.gmra.mxu0 %v983
        %v1244 = vpop.f32.mrf.mxu0
        %v1245 = vadd.f32 %v1226, %v1244
        %v1246 = vpop.f32.mrf.mxu0
        %v1247 = vadd.f32 %v1228, %v1246
        %1248 = vmatmul.bf16.gmra.mxu0 %v986
        %v1249 = vpop.f32.mrf.mxu0
        %v1250 = vadd.f32 %v1231, %v1249
        %v1251 = vpop.f32.mrf.mxu0
        %v1252 = vadd.f32 %v1233, %v1251
        %1253 = vdwg.mxu0
        %v1254 = vmax.f32 %v1017, 0.0
        %v1255 = vmax.f32 %v1055, 0.0
        %v1256 = vmax.f32 %v1093, 0.0
        %v1257 = vmax.f32 %v1131, 0.0
        %v1258 = vmax.f32 %v1169, 0.0
        %v1259 = vmax.f32 %v1207, 0.0
        %v1260 = vmax.f32 %v1245, 0.0
        %v1261 = vmax.f32 %v1019, 0.0
        %v1262 = vmax.f32 %v1057, 0.0
        %v1263 = vmax.f32 %v1095, 0.0
        %v1264 = vmax.f32 %v1133, 0.0
        %v1265 = vmax.f32 %v1171, 0.0
        %v1266 = vmax.f32 %v1209, 0.0
        %v1267 = vmax.f32 %v1247, 0.0
        %v1268 = vmax.f32 %v1022, 0.0
        %v1269 = vmax.f32 %v1060, 0.0
        %v1270 = vmax.f32 %v1098, 0.0
        %v1271 = vmax.f32 %v1136, 0.0
        %v1272 = vmax.f32 %v1174, 0.0
        %v1273 = vmax.f32 %v1212, 0.0
        %v1274 = vmax.f32 %v1250, 0.0
        %v1275 = vmax.f32 %v1024, 0.0
        %v1276 = vmax.f32 %v1062, 0.0
        %v1277 = vmax.f32 %v1100, 0.0
        %v1278 = vmax.f32 %v1138, 0.0
        %v1279 = vmax.f32 %v1176, 0.0
        %v1280 = vmax.f32 %v1214, 0.0
        %v1281 = vmax.f32 %v1252, 0.0
        %1310 = vrot.lane.b32.xlu0 %v1254, 96
        %v1311 = vpop.permute.xlu0 %1310
        %1312 = vrot.lane.b32.xlu0 %v1255, 96
        %v1313 = vpop.permute.xlu0 %1312
        %1314 = vrot.lane.b32.xlu0 %v1256, 96
        %v1315 = vpop.permute.xlu0 %1314
        %1316 = vrot.lane.b32.xlu0 %v1257, 96
        %v1317 = vpop.permute.xlu0 %1316
        %1318 = vrot.lane.b32.xlu0 %v1258, 96
        %v1319 = vpop.permute.xlu0 %1318
        %1320 = vrot.lane.b32.xlu0 %v1259, 96
        %v1321 = vpop.permute.xlu0 %1320
        %1322 = vrot.lane.b32.xlu0 %v1260, 96
        %v1323 = vpop.permute.xlu0 %1322
        %1324 = vrot.lane.b32.xlu0 %v1261, 96
        %v1325 = vpop.permute.xlu0 %1324
        %1326 = vrot.lane.b32.xlu0 %v1262, 96
        %v1327 = vpop.permute.xlu0 %1326
        %1328 = vrot.lane.b32.xlu0 %v1263, 96
        %v1329 = vpop.permute.xlu0 %1328
        %1330 = vrot.lane.b32.xlu0 %v1264, 96
        %v1331 = vpop.permute.xlu0 %1330
        %1332 = vrot.lane.b32.xlu0 %v1265, 96
        %v1333 = vpop.permute.xlu0 %1332
        %1334 = vrot.lane.b32.xlu0 %v1266, 96
        %v1335 = vpop.permute.xlu0 %1334
        %1336 = vrot.lane.b32.xlu0 %v1267, 96
        %v1337 = vpop.permute.xlu0 %1336
        %1338 = vrot.lane.b32.xlu0 %v1268, 96
        %v1339 = vpop.permute.xlu0 %1338
        %1340 = vrot.lane.b32.xlu0 %v1269, 96
        %v1341 = vpop.permute.xlu0 %1340
        %1342 = vrot.lane.b32.xlu0 %v1270, 96
        %v1343 = vpop.permute.xlu0 %1342
        %1344 = vrot.lane.b32.xlu0 %v1271, 96
        %v1345 = vpop.permute.xlu0 %1344
        %1346 = vrot.lane.b32.xlu0 %v1272, 96
        %v1347 = vpop.permute.xlu0 %1346
        %1348 = vrot.lane.b32.xlu0 %v1273, 96
        %v1349 = vpop.permute.xlu0 %1348
        %1350 = vrot.lane.b32.xlu0 %v1274, 96
        %v1351 = vpop.permute.xlu0 %1350
        %1352 = vrot.lane.b32.xlu0 %v1275, 96
        %v1353 = vpop.permute.xlu0 %1352
        %1354 = vrot.lane.b32.xlu0 %v1276, 96
        %v1355 = vpop.permute.xlu0 %1354
        %1356 = vrot.lane.b32.xlu0 %v1277, 96
        %v1357 = vpop.permute.xlu0 %1356
        %1358 = vrot.lane.b32.xlu0 %v1278, 96
        %v1359 = vpop.permute.xlu0 %1358
        %1360 = vrot.lane.b32.xlu0 %v1279, 96
        %v1361 = vpop.permute.xlu0 %1360
        %1362 = vrot.lane.b32.xlu0 %v1280, 96
        %v1363 = vpop.permute.xlu0 %1362
        %1364 = vrot.lane.b32.xlu0 %v1281, 96
        %v1365 = vpop.permute.xlu0 %1364
        %vm1366 = vcmask 785408
        %v1367 = vsel %vm1366, %v1311, %v1313
        %v1368 = vsel %vm1366, %v1313, %v1315
        %v1369 = vsel %vm1366, %v1315, %v1317
        %v1370 = vsel %vm1366, %v1317, %v1319
        %v1371 = vsel %vm1366, %v1319, %v1321
        %v1372 = vsel %vm1366, %v1321, %v1323
        %v1373 = vsel %vm1366, %v1325, %v1327
        %v1374 = vsel %vm1366, %v1327, %v1329
        %v1375 = vsel %vm1366, %v1329, %v1331
        %v1376 = vsel %vm1366, %v1331, %v1333
        %v1377 = vsel %vm1366, %v1333, %v1335
        %v1378 = vsel %vm1366, %v1335, %v1337
        %v1379 = vsel %vm1366, %v1339, %v1341
        %v1380 = vsel %vm1366, %v1341, %v1343
        %v1381 = vsel %vm1366, %v1343, %v1345
        %v1382 = vsel %vm1366, %v1345, %v1347
        %v1383 = vsel %vm1366, %v1347, %v1349
        %v1384 = vsel %vm1366, %v1349, %v1351
        %v1385 = vsel %vm1366, %v1353, %v1355
        %v1386 = vsel %vm1366, %v1355, %v1357
        %v1387 = vsel %vm1366, %v1357, %v1359
        %v1388 = vsel %vm1366, %v1359, %v1361
        %v1389 = vsel %vm1366, %v1361, %v1363
        %v1390 = vsel %vm1366, %v1363, %v1365
        %v1419 = vmax.f32 %v1254, %v1367
        %v1420 = vmax.f32 %v1255, %v1368
        %v1421 = vmax.f32 %v1256, %v1369
        %v1422 = vmax.f32 %v1257, %v1370
        %v1423 = vmax.f32 %v1258, %v1371
        %v1424 = vmax.f32 %v1259, %v1372
        %v1425 = vmax.f32 %v1260, %v1323
        %v1426 = vmax.f32 %v1261, %v1373
        %v1427 = vmax.f32 %v1262, %v1374
        %v1428 = vmax.f32 %v1263, %v1375
        %v1429 = vmax.f32 %v1264, %v1376
        %v1430 = vmax.f32 %v1265, %v1377
        %v1431 = vmax.f32 %v1266, %v1378
        %v1432 = vmax.f32 %v1267, %v1337
        %v1433 = vmax.f32 %v1268, %v1379
        %v1434 = vmax.f32 %v1269, %v1380
        %v1435 = vmax.f32 %v1270, %v1381
        %v1436 = vmax.f32 %v1271, %v1382
        %v1437 = vmax.f32 %v1272, %v1383
        %v1438 = vmax.f32 %v1273, %v1384
        %v1439 = vmax.f32 %v1274, %v1351
        %v1440 = vmax.f32 %v1275, %v1385
        %v1441 = vmax.f32 %v1276, %v1386
        %v1442 = vmax.f32 %v1277, %v1387
        %v1443 = vmax.f32 %v1278, %v1388
        %v1444 = vmax.f32 %v1279, %v1389
        %v1445 = vmax.f32 %v1280, %v1390
        %v1446 = vmax.f32 %v1281, %v1365
        %1447 = vst.msk [vmem:[#allocation3] sm:$0xff] %vm981, %v1419
        %1448 = vst.msk [vmem:[#allocation3 + $0x20] sm:$0xff] %vm981, %v1426
        %1449 = vst.msk [vmem:[#allocation3 + $0x40] sm:$0xff] %vm981, %v1433
        %1450 = vst.msk [vmem:[#allocation3 + $0x60] sm:$0xf] %vm339, %v1440
        %1455 = vrot.lane.b32.xlu0 %v1419, 96
        %v1456 = vpop.permute.xlu0 %1455
        %1457 = vrot.lane.b32.xlu0 %v1426, 96
        %v1458 = vpop.permute.xlu0 %1457
        %1459 = vrot.lane.b32.xlu0 %v1433, 96
        %v1460 = vpop.permute.xlu0 %1459
        %1461 = vrot.lane.b32.xlu0 %v1440, 96
        %v1462 = vpop.permute.xlu0 %1461
        %vm1467 = vcmask 523520
        %1468 = vst.msk [vmem:[#allocation3] sm:$0xff] %vm1467, %v1456
        %1469 = vst.msk [vmem:[#allocation3 + $0x20] sm:$0xff] %vm1467, %v1458
        %1470 = vst.msk [vmem:[#allocation3 + $0x40] sm:$0xff] %vm1467, %v1460
        %1471 = vst.msk [vmem:[#allocation3 + $0x60] sm:$0xf] %vm399, %v1462
        %1476 = vrot.lane.b32.xlu0 %v1420, 64
        %v1477 = vpop.permute.xlu0 %1476
        %1478 = vrot.lane.b32.xlu0 %v1427, 64
        %v1479 = vpop.permute.xlu0 %1478
        %1480 = vrot.lane.b32.xlu0 %v1434, 64
        %v1481 = vpop.permute.xlu0 %1480
        %1482 = vrot.lane.b32.xlu0 %v1441, 64
        %v1483 = vpop.permute.xlu0 %1482
        %vm1488 = vcmask 785920
        %1489 = vst.msk [vmem:[#allocation3] sm:$0xff] %vm1488, %v1477
        %1490 = vst.msk [vmem:[#allocation3 + $0x20] sm:$0xff] %vm1488, %v1479
        %1491 = vst.msk [vmem:[#allocation3 + $0x40] sm:$0xff] %vm1488, %v1481
        %1492 = vst.msk [vmem:[#allocation3 + $0x60] sm:$0xf] %vm435, %v1483
        %1493 = vrot.lane.b32.xlu0 %v1420, 32
        %v1494 = vpop.permute.xlu0 %1493
        %1495 = vrot.lane.b32.xlu0 %v1427, 32
        %v1496 = vpop.permute.xlu0 %1495
        %1497 = vrot.lane.b32.xlu0 %v1434, 32
        %v1498 = vpop.permute.xlu0 %1497
        %1499 = vrot.lane.b32.xlu0 %v1441, 32
        %v1500 = vpop.permute.xlu0 %1499
        %vm1505 = vcmask 1048320
        %1506 = vst.msk [vmem:[#allocation3] sm:$0xff] %vm1505, %v1494
        %1507 = vst.msk [vmem:[#allocation3 + $0x20] sm:$0xff] %vm1505, %v1496
        %1508 = vst.msk [vmem:[#allocation3 + $0x40] sm:$0xff] %vm1505, %v1498
        %1509 = vst.msk [vmem:[#allocation3 + $0x60] sm:$0xf] %vm475, %v1500
        %1510 = vst.msk [vmem:[#allocation3 + $0x8] sm:$0xff] %vm981, %v1421
        %1511 = vst.msk [vmem:[#allocation3 + $0x28] sm:$0xff] %vm981, %v1428
        %1512 = vst.msk [vmem:[#allocation3 + $0x48] sm:$0xff] %vm981, %v1435
        %1513 = vst.msk [vmem:[#allocation3 + $0x68] sm:$0xf] %vm339, %v1442
        %1518 = vrot.lane.b32.xlu0 %v1421, 96
        %v1519 = vpop.permute.xlu0 %1518
        %1520 = vrot.lane.b32.xlu0 %v1428, 96
        %v1521 = vpop.permute.xlu0 %1520
        %1522 = vrot.lane.b32.xlu0 %v1435, 96
        %v1523 = vpop.permute.xlu0 %1522
        %1524 = vrot.lane.b32.xlu0 %v1442, 96
        %v1525 = vpop.permute.xlu0 %1524
        %1530 = vst.msk [vmem:[#allocation3 + $0x8] sm:$0xff] %vm1467, %v1519
        %1531 = vst.msk [vmem:[#allocation3 + $0x28] sm:$0xff] %vm1467, %v1521
        %1532 = vst.msk [vmem:[#allocation3 + $0x48] sm:$0xff] %vm1467, %v1523
        %1533 = vst.msk [vmem:[#allocation3 + $0x68] sm:$0xf] %vm399, %v1525
        %1538 = vrot.lane.b32.xlu0 %v1422, 64
        %v1539 = vpop.permute.xlu0 %1538
        %1540 = vrot.lane.b32.xlu0 %v1429, 64
        %v1541 = vpop.permute.xlu0 %1540
        %1542 = vrot.lane.b32.xlu0 %v1436, 64
        %v1543 = vpop.permute.xlu0 %1542
        %1544 = vrot.lane.b32.xlu0 %v1443, 64
        %v1545 = vpop.permute.xlu0 %1544
        %1550 = vst.msk [vmem:[#allocation3 + $0x8] sm:$0xff] %vm1488, %v1539
        %1551 = vst.msk [vmem:[#allocation3 + $0x28] sm:$0xff] %vm1488, %v1541
        %1552 = vst.msk [vmem:[#allocation3 + $0x48] sm:$0xff] %vm1488, %v1543
        %1553 = vst.msk [vmem:[#allocation3 + $0x68] sm:$0xf] %vm435, %v1545
        %1554 = vrot.lane.b32.xlu0 %v1422, 32
        %v1555 = vpop.permute.xlu0 %1554
        %1556 = vrot.lane.b32.xlu0 %v1429, 32
        %v1557 = vpop.permute.xlu0 %1556
        %1558 = vrot.lane.b32.xlu0 %v1436, 32
        %v1559 = vpop.permute.xlu0 %1558
        %1560 = vrot.lane.b32.xlu0 %v1443, 32
        %v1561 = vpop.permute.xlu0 %1560
        %1566 = vst.msk [vmem:[#allocation3 + $0x8] sm:$0xff] %vm1505, %v1555
        %1567 = vst.msk [vmem:[#allocation3 + $0x28] sm:$0xff] %vm1505, %v1557
        %1568 = vst.msk [vmem:[#allocation3 + $0x48] sm:$0xff] %vm1505, %v1559
        %1569 = vst.msk [vmem:[#allocation3 + $0x68] sm:$0xf] %vm475, %v1561
        %1570 = vst.msk [vmem:[#allocation3 + $0x10] sm:$0xff] %vm981, %v1423
        %1571 = vst.msk [vmem:[#allocation3 + $0x30] sm:$0xff] %vm981, %v1430
        %1572 = vst.msk [vmem:[#allocation3 + $0x50] sm:$0xff] %vm981, %v1437
        %1573 = vst.msk [vmem:[#allocation3 + $0x70] sm:$0xf] %vm339, %v1444
        %1578 = vrot.lane.b32.xlu0 %v1423, 96
        %v1579 = vpop.permute.xlu0 %1578
        %1580 = vrot.lane.b32.xlu0 %v1430, 96
        %v1581 = vpop.permute.xlu0 %1580
        %1582 = vrot.lane.b32.xlu0 %v1437, 96
        %v1583 = vpop.permute.xlu0 %1582
        %1584 = vrot.lane.b32.xlu0 %v1444, 96
        %v1585 = vpop.permute.xlu0 %1584
        %1590 = vst.msk [vmem:[#allocation3 + $0x10] sm:$0xff] %vm1467, %v1579
        %1591 = vst.msk [vmem:[#allocation3 + $0x30] sm:$0xff] %vm1467, %v1581
        %1592 = vst.msk [vmem:[#allocation3 + $0x50] sm:$0xff] %vm1467, %v1583
        %1593 = vst.msk [vmem:[#allocation3 + $0x70] sm:$0xf] %vm399, %v1585
        %1598 = vrot.lane.b32.xlu0 %v1424, 64
        %v1599 = vpop.permute.xlu0 %1598
        %1600 = vrot.lane.b32.xlu0 %v1431, 64
        %v1601 = vpop.permute.xlu0 %1600
        %1602 = vrot.lane.b32.xlu0 %v1438, 64
        %v1603 = vpop.permute.xlu0 %1602
        %1604 = vrot.lane.b32.xlu0 %v1445, 64
        %v1605 = vpop.permute.xlu0 %1604
        %1610 = vst.msk [vmem:[#allocation3 + $0x10] sm:$0xff] %vm1488, %v1599
        %1611 = vst.msk [vmem:[#allocation3 + $0x30] sm:$0xff] %vm1488, %v1601
        %1612 = vst.msk [vmem:[#allocation3 + $0x50] sm:$0xff] %vm1488, %v1603
        %1613 = vst.msk [vmem:[#allocation3 + $0x70] sm:$0xf] %vm435, %v1605
        %1614 = vrot.lane.b32.xlu0 %v1424, 32
        %v1615 = vpop.permute.xlu0 %1614
        %1616 = vrot.lane.b32.xlu0 %v1431, 32
        %v1617 = vpop.permute.xlu0 %1616
        %1618 = vrot.lane.b32.xlu0 %v1438, 32
        %v1619 = vpop.permute.xlu0 %1618
        %1620 = vrot.lane.b32.xlu0 %v1445, 32
        %v1621 = vpop.permute.xlu0 %1620
        %1626 = vst.msk [vmem:[#allocation3 + $0x10] sm:$0xff] %vm1505, %v1615
        %1627 = vst.msk [vmem:[#allocation3 + $0x30] sm:$0xff] %vm1505, %v1617
        %1628 = vst.msk [vmem:[#allocation3 + $0x50] sm:$0xff] %vm1505, %v1619
        %1629 = vst.msk [vmem:[#allocation3 + $0x70] sm:$0xf] %vm475, %v1621
        %1630 = vst.msk [vmem:[#allocation3 + $0x18] sm:$0xff] %vm981, %v1425
        %1631 = vst.msk [vmem:[#allocation3 + $0x38] sm:$0xff] %vm981, %v1432
        %1632 = vst.msk [vmem:[#allocation3 + $0x58] sm:$0xff] %vm981, %v1439
        %1633 = vst.msk [vmem:[#allocation3 + $0x78] sm:$0xf] %vm339, %v1446
        %1638 = vrot.lane.b32.xlu0 %v1425, 96
        %v1639 = vpop.permute.xlu0 %1638
        %1640 = vrot.lane.b32.xlu0 %v1432, 96
        %v1641 = vpop.permute.xlu0 %1640
        %1642 = vrot.lane.b32.xlu0 %v1439, 96
        %v1643 = vpop.permute.xlu0 %1642
        %1644 = vrot.lane.b32.xlu0 %v1446, 96
        %v1645 = vpop.permute.xlu0 %1644
        %1650 = vst.msk [vmem:[#allocation3 + $0x18] sm:$0xff] %vm1467, %v1639
        %1651 = vst.msk [vmem:[#allocation3 + $0x38] sm:$0xff] %vm1467, %v1641
        %1652 = vst.msk [vmem:[#allocation3 + $0x58] sm:$0xff] %vm1467, %v1643
        %1653 = vst.msk [vmem:[#allocation3 + $0x78] sm:$0xf] %vm399, %v1645
        %v1654 = vld [vmem:[#allocation3] sm:$0xff]
        %v1655 = vld [vmem:[#allocation3 + $0x8] sm:$0xff]
        %v1656 = vld [vmem:[#allocation3 + $0x10] sm:$0xff]
        %v1657 = vld [vmem:[#allocation3 + $0x18] sm:$0xff]
        %v1658 = vld [vmem:[#allocation3 + $0x20] sm:$0xff]
        %v1659 = vld [vmem:[#allocation3 + $0x28] sm:$0xff]
        %v1660 = vld [vmem:[#allocation3 + $0x30] sm:$0xff]
        %v1661 = vld [vmem:[#allocation3 + $0x38] sm:$0xff]
        %v1662 = vld [vmem:[#allocation3 + $0x40] sm:$0xff]
        %v1663 = vld [vmem:[#allocation3 + $0x48] sm:$0xff]
        %v1664 = vld [vmem:[#allocation3 + $0x50] sm:$0xff]
        %v1665 = vld [vmem:[#allocation3 + $0x58] sm:$0xff]
        %v1666 = vld [vmem:[#allocation3 + $0x60] sm:$0xf]
        %v1667 = vld [vmem:[#allocation3 + $0x68] sm:$0xf]
        %v1668 = vld [vmem:[#allocation3 + $0x70] sm:$0xf]
        %v1669 = vld [vmem:[#allocation3 + $0x78] sm:$0xf]
        %vm1686 = vcmask 1046528
        %v1687 = vrot.slane %v1654, 1
        %v1688 = vrot.slane %v1658, 1
        %v1689 = vsel %vm1686, %v1687, %v1688
        %v1690 = vrot.slane %v1655, 1
        %v1691 = vrot.slane %v1659, 1
        %v1692 = vsel %vm1686, %v1690, %v1691
        %v1693 = vrot.slane %v1656, 1
        %v1694 = vrot.slane %v1660, 1
        %v1695 = vsel %vm1686, %v1693, %v1694
        %v1696 = vrot.slane %v1657, 1
        %v1697 = vrot.slane %v1661, 1
        %v1698 = vsel %vm1686, %v1696, %v1697
        %v1699 = vrot.slane %v1662, 1
        %v1700 = vsel %vm1686, %v1688, %v1699
        %v1701 = vrot.slane %v1663, 1
        %v1702 = vsel %vm1686, %v1691, %v1701
        %v1703 = vrot.slane %v1664, 1
        %v1704 = vsel %vm1686, %v1694, %v1703
        %v1705 = vrot.slane %v1665, 1
        %v1706 = vsel %vm1686, %v1697, %v1705
        %v1707 = vrot.slane %v1666, 1
        %v1708 = vsel %vm1686, %v1699, %v1707
        %v1709 = vrot.slane %v1667, 1
        %v1710 = vsel %vm1686, %v1701, %v1709
        %v1711 = vrot.slane %v1668, 1
        %v1712 = vsel %vm1686, %v1703, %v1711
        %v1713 = vrot.slane %v1669, 1
        %v1714 = vsel %vm1686, %v1705, %v1713
        %v1731 = vmax.f32 %v1654, %v1689
        %v1732 = vmax.f32 %v1655, %v1692
        %v1733 = vmax.f32 %v1656, %v1695
        %v1734 = vmax.f32 %v1657, %v1698
        %v1735 = vmax.f32 %v1658, %v1700
        %v1736 = vmax.f32 %v1659, %v1702
        %v1737 = vmax.f32 %v1660, %v1704
        %v1738 = vmax.f32 %v1661, %v1706
        %v1739 = vmax.f32 %v1662, %v1708
        %v1740 = vmax.f32 %v1663, %v1710
        %v1741 = vmax.f32 %v1664, %v1712
        %v1742 = vmax.f32 %v1665, %v1714
        %v1743 = vmax.f32 %v1666, %v1707
        %v1744 = vmax.f32 %v1667, %v1709
        %v1745 = vmax.f32 %v1668, %v1711
        %v1746 = vmax.f32 %v1669, %v1713
        %v1751 = vrot.slane %v1732, 7
        %v1752 = vrot.slane %v1733, 6
        %v1753 = vrot.slane %v1734, 5
        %vm1754 = vcmask 1040384
        %v1755 = vsel %vm1754, %v1731, %v1751
        %vm1756 = vcmask 1042434
        %v1757 = vsel %vm1756, %v1752, %v1753
        %vm1758 = vcmask 1041408
        %v1759 = vsel %vm1758, %v1755, %v1757
        %v1761 = vlaneseq
        %vm1762 = vcmp.ge.s32.totalorder %v1761, 0
        %vm1763 = vcmp.lt.s32.totalorder %v1761, 448
        %vm1764 = vmand %vm1762, %vm1763
        %1765 = vst.msk [vmem:[#allocation4] ss:$8 sm:$0xf] %vm1764, %v1759
        %1766 = vst.msk [vmem:[#allocation4] ss:$8 sm:$0x0] %vm1764, %v1759
        %1767 = vst [vmem:[#allocation1] sm:$0xff] %v1731
        %1768 = vst [vmem:[#allocation1 + $0x9] sm:$0xff] %v1732
        %1769 = vst [vmem:[#allocation1 + $0x12] sm:$0xff] %v1733
        %1770 = vst [vmem:[#allocation1 + $0x1b] sm:$0xff] %v1734
        %s1771 = scalar_lea.vmem [#allocation1], 2
        %v1772 = vld [vmem:[%s1771] ss:$9 sm:$0xff]
        %s1774 = scalar_lea.vmem [#allocation4], 1
        %1775 = vst.msk [vmem:[%s1774] ss:$8 sm:$0xf] %vm1764, %v1772
        %1776 = vst.msk [vmem:[%s1774] ss:$8 sm:$0x0] %vm1764, %v1772
        %1777 = vst [vmem:[#allocation1] sm:$0xff] %v1731
        %1778 = vst [vmem:[#allocation1 + $0x9] sm:$0xff] %v1732
        %1779 = vst [vmem:[#allocation1 + $0x12] sm:$0xff] %v1733
        %1780 = vst [vmem:[#allocation1 + $0x1b] sm:$0xff] %v1734
        %s1781 = scalar_lea.vmem [#allocation1], 4
        %v1782 = vld [vmem:[%s1781] ss:$9 sm:$0xff]
        %s1784 = scalar_lea.vmem [#allocation4], 2
        %1785 = vst.msk [vmem:[%s1784] ss:$8 sm:$0xf] %vm1764, %v1782
        %1786 = vst.msk [vmem:[%s1784] ss:$8 sm:$0x0] %vm1764, %v1782
        %1787 = vst [vmem:[#allocation1] sm:$0xff] %v1731
        %1788 = vst [vmem:[#allocation1 + $0x9] sm:$0xff] %v1732
        %1789 = vst [vmem:[#allocation1 + $0x12] sm:$0xff] %v1733
        %1790 = vst [vmem:[#allocation1 + $0x1b] sm:$0xff] %v1734
        %s1791 = scalar_lea.vmem [#allocation1], 6
        %v1792 = vld [vmem:[%s1791] ss:$9 sm:$0xff]
        %s1794 = scalar_lea.vmem [#allocation4], 3
        %1795 = vst.msk [vmem:[%s1794] ss:$8 sm:$0xf] %vm1764, %v1792
        %1796 = vst.msk [vmem:[%s1794] ss:$8 sm:$0x0] %vm1764, %v1792
        %v1801 = vrot.slane %v1736, 7
        %v1802 = vrot.slane %v1737, 6
        %v1803 = vrot.slane %v1738, 5
        %v1804 = vsel %vm1754, %v1735, %v1801
        %v1805 = vsel %vm1756, %v1802, %v1803
        %v1806 = vsel %vm1758, %v1804, %v1805
        %s1808 = scalar_lea.vmem [#allocation4], 4
        %1809 = vst.msk [vmem:[%s1808] ss:$8 sm:$0xf] %vm1764, %v1806
        %1810 = vst.msk [vmem:[%s1808] ss:$8 sm:$0x0] %vm1764, %v1806
        %1811 = vst [vmem:[#allocation1] sm:$0xff] %v1735
        %1812 = vst [vmem:[#allocation1 + $0x9] sm:$0xff] %v1736
        %1813 = vst [vmem:[#allocation1 + $0x12] sm:$0xff] %v1737
        %1814 = vst [vmem:[#allocation1 + $0x1b] sm:$0xff] %v1738
        %s1815 = scalar_lea.vmem [#allocation1], 2
        %v1816 = vld [vmem:[%s1815] ss:$9 sm:$0xff]
        %s1818 = scalar_lea.vmem [#allocation4], 5
        %1819 = vst.msk [vmem:[%s1818] ss:$8 sm:$0xf] %vm1764, %v1816
        %1820 = vst.msk [vmem:[%s1818] ss:$8 sm:$0x0] %vm1764, %v1816
        %1821 = vst [vmem:[#allocation1] sm:$0xff] %v1735
        %1822 = vst [vmem:[#allocation1 + $0x9] sm:$0xff] %v1736
        %1823 = vst [vmem:[#allocation1 + $0x12] sm:$0xff] %v1737
        %1824 = vst [vmem:[#allocation1 + $0x1b] sm:$0xff] %v1738
        %s1825 = scalar_lea.vmem [#allocation1], 4
        %v1826 = vld [vmem:[%s1825] ss:$9 sm:$0xff]
        %s1828 = scalar_lea.vmem [#allocation4], 6
        %1829 = vst.msk [vmem:[%s1828] ss:$8 sm:$0xf] %vm1764, %v1826
        %1830 = vst.msk [vmem:[%s1828] ss:$8 sm:$0x0] %vm1764, %v1826
        %1831 = vst [vmem:[#allocation1] sm:$0xff] %v1735
        %1832 = vst [vmem:[#allocation1 + $0x9] sm:$0xff] %v1736
        %1833 = vst [vmem:[#allocation1 + $0x12] sm:$0xff] %v1737
        %1834 = vst [vmem:[#allocation1 + $0x1b] sm:$0xff] %v1738
        %s1835 = scalar_lea.vmem [#allocation1], 6
        %v1836 = vld [vmem:[%s1835] ss:$9 sm:$0xff]
        %s1838 = scalar_lea.vmem [#allocation4], 7
        %1839 = vst.msk [vmem:[%s1838] ss:$8 sm:$0xf] %vm1764, %v1836
        %1840 = vst.msk [vmem:[%s1838] ss:$8 sm:$0x0] %vm1764, %v1836
        %v1845 = vrot.slane %v1740, 7
        %v1846 = vrot.slane %v1741, 6
        %v1847 = vrot.slane %v1742, 5
        %v1848 = vsel %vm1754, %v1739, %v1845
        %v1849 = vsel %vm1756, %v1846, %v1847
        %v1850 = vsel %vm1758, %v1848, %v1849
        %s1852 = scalar_lea.vmem [#allocation4], 32
        %1853 = vst.msk [vmem:[%s1852] ss:$8 sm:$0xf] %vm1764, %v1850
        %1854 = vst.msk [vmem:[%s1852] ss:$8 sm:$0x0] %vm1764, %v1850
        %1855 = vst [vmem:[#allocation1] sm:$0xff] %v1739
        %1856 = vst [vmem:[#allocation1 + $0x9] sm:$0xff] %v1740
        %1857 = vst [vmem:[#allocation1 + $0x12] sm:$0xff] %v1741
        %1858 = vst [vmem:[#allocation1 + $0x1b] sm:$0xff] %v1742
        %s1859 = scalar_lea.vmem [#allocation1], 2
        %v1860 = vld [vmem:[%s1859] ss:$9 sm:$0xff]
        %s1862 = scalar_lea.vmem [#allocation4], 33
        %1863 = vst.msk [vmem:[%s1862] ss:$8 sm:$0xf] %vm1764, %v1860
        %1864 = vst.msk [vmem:[%s1862] ss:$8 sm:$0x0] %vm1764, %v1860
        %1865 = vst [vmem:[#allocation1] sm:$0xff] %v1739
        %1866 = vst [vmem:[#allocation1 + $0x9] sm:$0xff] %v1740
        %1867 = vst [vmem:[#allocation1 + $0x12] sm:$0xff] %v1741
        %1868 = vst [vmem:[#allocation1 + $0x1b] sm:$0xff] %v1742
        %s1869 = scalar_lea.vmem [#allocation1], 4
        %v1870 = vld [vmem:[%s1869] ss:$9 sm:$0xff]
        %s1872 = scalar_lea.vmem [#allocation4], 34
        %1873 = vst.msk [vmem:[%s1872] ss:$8 sm:$0xf] %vm1764, %v1870
        %1874 = vst.msk [vmem:[%s1872] ss:$8 sm:$0x0] %vm1764, %v1870
        %1875 = vst [vmem:[#allocation1] sm:$0xff] %v1739
        %1876 = vst [vmem:[#allocation1 + $0x9] sm:$0xff] %v1740
        %1877 = vst [vmem:[#allocation1 + $0x12] sm:$0xff] %v1741
        %1878 = vst [vmem:[#allocation1 + $0x1b] sm:$0xff] %v1742
        %s1879 = scalar_lea.vmem [#allocation1], 6
        %v1880 = vld [vmem:[%s1879] ss:$9 sm:$0xff]
        %s1882 = scalar_lea.vmem [#allocation4], 35
        %1883 = vst.msk [vmem:[%s1882] ss:$8 sm:$0xf] %vm1764, %v1880
        %1884 = vst.msk [vmem:[%s1882] ss:$8 sm:$0x0] %vm1764, %v1880
        %v1889 = vrot.slane %v1744, 7
        %v1890 = vrot.slane %v1745, 6
        %v1891 = vrot.slane %v1746, 5
        %v1892 = vsel %vm1754, %v1743, %v1889
        %v1893 = vsel %vm1756, %v1890, %v1891
        %v1894 = vsel %vm1758, %v1892, %v1893
        %s1896 = scalar_lea.vmem [#allocation4], 36
        %1897 = vst.msk [vmem:[%s1896] ss:$8 sm:$0xf] %vm1764, %v1894
        %1898 = vst.msk [vmem:[%s1896] ss:$8 sm:$0x0] %vm1764, %v1894
        %1899 = vst [vmem:[#allocation1] sm:$0xff] %v1743
        %1900 = vst [vmem:[#allocation1 + $0x9] sm:$0xff] %v1744
        %1901 = vst [vmem:[#allocation1 + $0x12] sm:$0xff] %v1745
        %1902 = vst [vmem:[#allocation1 + $0x1b] sm:$0xff] %v1746
        %s1903 = scalar_lea.vmem [#allocation1], 2
        %v1904 = vld [vmem:[%s1903] ss:$9 sm:$0xff]
        %s1906 = scalar_lea.vmem [#allocation4], 37
        %1907 = vst.msk [vmem:[%s1906] ss:$8 sm:$0xf] %vm1764, %v1904
        %1908 = vst.msk [vmem:[%s1906] ss:$8 sm:$0x0] %vm1764, %v1904
        %v1909 = vld [vmem:[#allocation4] sm:$0xff]
        %v1910 = vld [vmem:[#allocation4 + $0x8] sm:$0xff]
        %v1911 = vld [vmem:[#allocation4 + $0x10] sm:$0xff]
        %v1912 = vld [vmem:[#allocation4 + $0x18] sm:$0xff]
        %v1913 = vld [vmem:[#allocation4 + $0x20] sm:$0x3f]
        %v1914 = vld [vmem:[#allocation4 + $0x28] sm:$0x3f]
        %v1915 = vld [vmem:[#allocation4 + $0x30] sm:$0x3f]
        %v1916 = vld [vmem:[#allocation4 + $0x38] sm:$0x3f]
        %v1917 = vpack.c.bf16 %v1910, %v1909
        %v1918 = vpack.c.bf16 %v1912, %v1911
        %v1919 = vpack.c.bf16 %v1914, %v1913
        %v1920 = vpack.c.bf16 %v1916, %v1915
        %1921 = vst [vmem:[#allocation5] sm:$0xff] %v1917
        %vm1922 = vcmask 1043456
        %vm1923 = vcmask 523268
        %vm1924 = vmor %vm1923, %vm1922
        %1925 = vst.msk [vmem:[#allocation5 + $0x8] sm:$0xff] %vm1924, %v1918
        %1926 = vst [vmem:[#allocation5 + $0x48] sm:$0x11] %v1919
        %vm1927 = vcmask 520196
        %vm1928 = vmor %vm1927, %vm1754
        %1929 = vst.msk [vmem:[#allocation5 + $0x50] sm:$0x11] %vm1928, %v1920
        %v1931 = vshrl.u32 %v1917, 16
        %v1933 = vrot.slane %v1931, 4
        %v1934 = vshll.u32 %v1917, 16
        %v1936 = vrot.slane %v1934, 5
        %v1937 = vor.u32 %v1933, %v1936
        %v1938 = vrot.slane %v1937, 4
        %v1940 = vshll.u32 %v1919, 16
        %v1942 = vrot.slane %v1940, 5
        %v1943 = vsel %vm347, %v1938, %v1942
        %v1945 = vshrl.u32 %v1918, 16
        %v1947 = vrot.slane %v1945, 4
        %v1948 = vshll.u32 %v1918, 16
        %v1950 = vrot.slane %v1948, 5
        %v1951 = vor.u32 %v1947, %v1950
        %v1952 = vrot.slane %v1951, 4
        %v1954 = vshll.u32 %v1920, 16
        %v1956 = vrot.slane %v1954, 5
        %v1957 = vsel %vm347, %v1952, %v1956
        %v1958 = vshrl.u32 %v1919, 16
        %v1960 = vrot.slane %v1958, 4
        %v1961 = vor.u32 %v1960, %v1942
        %v1962 = vrot.slane %v1961, 4
        %v1963 = vshrl.u32 %v1920, 16
        %v1965 = vrot.slane %v1963, 4
        %v1966 = vor.u32 %v1965, %v1956
        %v1967 = vrot.slane %v1966, 4
        %1968 = vrot.lane.b32.xlu0 %v1943, 64
        %v1969 = vpop.permute.xlu0 %1968
        %1970 = vrot.lane.b32.xlu0 %v1957, 64
        %v1971 = vpop.permute.xlu0 %1970
        %1972 = vrot.lane.b32.xlu0 %v1962, 64
        %v1973 = vpop.permute.xlu0 %1972
        %1974 = vrot.lane.b32.xlu0 %v1967, 64
        %v1975 = vpop.permute.xlu0 %1974
        %v1976 = vrot.slane %v1969, 4
        %v1977 = vrot.slane %v1971, 4
        %v1978 = vrot.slane %v1973, 4
        %v1979 = vrot.slane %v1975, 4
        %vm1980 = vcmask 523264
        %v1981 = vsel %vm1980, %v1976, %v1969
        %vm1982 = vcmask 1043456
        %v1983 = vsel %vm1982, %v1976, %v1977
        %v1984 = vsel %vm1980, %v1983, %v1971
        %v1985 = vsel %vm1980, %v1978, %v1973
        %v1986 = vsel %vm1982, %v1978, %v1979
        %v1987 = vsel %vm1980, %v1986, %v1975
        %vm1992 = vcmask 1043968
        %vm1993 = vcmask 1047556
        %vm1994 = vmor %vm1993, %vm1992
        %1995 = vst.msk [vmem:[#allocation5 + $0xc] sm:$0xff] %vm1994, %v1981
        %1996 = vst [vmem:[#allocation5 + $0x14] sm:$0xff] %v1984
        %vm1997 = vcmask 1040896
        %vm1998 = vcmask 1044484
        %vm1999 = vmor %vm1998, %vm1997
        %2000 = vst.msk [vmem:[#allocation5 + $0x54] sm:$0x11] %vm1999, %v1985
        %2001 = vst [vmem:[#allocation5 + $0x5c] sm:$0x11] %v1987
        %v2006 = vrot.slane %v1917, 5
        %v2007 = vrot.slane %v2006, 4
        %v2008 = vrot.slane %v1919, 5
        %v2009 = vsel %vm411, %v2007, %v2008
        %v2010 = vrot.slane %v1918, 5
        %v2011 = vrot.slane %v2010, 4
        %v2012 = vrot.slane %v1920, 5
        %v2013 = vsel %vm411, %v2011, %v2012
        %v2014 = vrot.slane %v2008, 4
        %v2015 = vrot.slane %v2012, 4
        %2020 = vst [vmem:[#allocation5 + $0x1c] sm:$0xff] %v2009
        %2021 = vst.msk [vmem:[#allocation5 + $0x24] sm:$0xff] %vm1924, %v2013
        %2022 = vst [vmem:[#allocation5 + $0x64] sm:$0x11] %v2014
        %2023 = vst.msk [vmem:[#allocation5 + $0x6c] sm:$0x11] %vm1928, %v2015
        %v2024 = vrot.slane %v1931, 5
        %v2025 = vrot.slane %v1934, 6
        %v2026 = vor.u32 %v2024, %v2025
        %v2027 = vrot.slane %v2026, 4
        %v2028 = vrot.slane %v1958, 5
        %v2029 = vrot.slane %v1940, 6
        %v2030 = vor.u32 %v2028, %v2029
        %v2031 = vsel %vm443, %v2027, %v2030
        %v2032 = vrot.slane %v1945, 5
        %v2033 = vrot.slane %v1948, 6
        %v2034 = vor.u32 %v2032, %v2033
        %v2035 = vrot.slane %v2034, 4
        %v2036 = vrot.slane %v1963, 5
        %v2037 = vrot.slane %v1954, 6
        %v2038 = vor.u32 %v2036, %v2037
        %v2039 = vsel %vm443, %v2035, %v2038
        %v2040 = vrot.slane %v2030, 4
        %v2041 = vrot.slane %v2038, 4
        %2042 = vrot.lane.b32.xlu0 %v2031, 64
        %v2043 = vpop.permute.xlu0 %2042
        %2044 = vrot.lane.b32.xlu0 %v2039, 64
        %v2045 = vpop.permute.xlu0 %2044
        %2046 = vrot.lane.b32.xlu0 %v2040, 64
        %v2047 = vpop.permute.xlu0 %2046
        %2048 = vrot.lane.b32.xlu0 %v2041, 64
        %v2049 = vpop.permute.xlu0 %2048
        %v2050 = vrot.slane %v2043, 4
        %v2051 = vrot.slane %v2045, 4
        %v2052 = vrot.slane %v2047, 4
        %v2053 = vrot.slane %v2049, 4
        %v2054 = vsel %vm1980, %v2050, %v2043
        %v2055 = vsel %vm1982, %v2050, %v2051
        %v2056 = vsel %vm1980, %v2055, %v2045
        %v2057 = vsel %vm1980, %v2052, %v2047
        %v2058 = vsel %vm1982, %v2052, %v2053
        %v2059 = vsel %vm1980, %v2058, %v2049
        %2064 = vst.msk [vmem:[#allocation5 + $0x28] sm:$0xff] %vm1994, %v2054
        %2065 = vst [vmem:[#allocation5 + $0x30] sm:$0xff] %v2056
        %2066 = vst.msk [vmem:[#allocation5 + $0x70] sm:$0x11] %vm1999, %v2057
        %2067 = vst [vmem:[#allocation5 + $0x78] sm:$0x11] %v2059
        %v2068 = vrot.slane %v1917, 6
        %v2069 = vrot.slane %v2068, 4
        %v2070 = vrot.slane %v1919, 6
        %v2071 = vsel %vm483, %v2069, %v2070
        %v2072 = vrot.slane %v1918, 6
        %v2073 = vrot.slane %v2072, 4
        %v2074 = vrot.slane %v1920, 6
        %v2075 = vsel %vm483, %v2073, %v2074
        %v2076 = vrot.slane %v2070, 4
        %v2077 = vrot.slane %v2074, 4
        %2082 = vst [vmem:[#allocation5 + $0x38] sm:$0xff] %v2071
        %2083 = vst.msk [vmem:[#allocation5 + $0x40] sm:$0xff] %vm1924, %v2075
        %2084 = vst [vmem:[#allocation5 + $0x80] sm:$0x11] %v2076
        %2085 = vst.msk [vmem:[#allocation5 + $0x88] sm:$0x11] %vm1928, %v2077
        %v2086 = vld [vmem:[#allocation5] sm:$0xff]
        %v2087 = vld [vmem:[#allocation5 + $0x8] sm:$0xff]
        %v2088 = vld [vmem:[#allocation5 + $0x10] sm:$0xff]
        %v2089 = vld [vmem:[#allocation5 + $0x18] sm:$0xff]
        %v2090 = vld [vmem:[#allocation5 + $0x20] sm:$0xff]
        %v2091 = vld [vmem:[#allocation5 + $0x28] sm:$0xff]
        %v2092 = vld [vmem:[#allocation5 + $0x30] sm:$0xff]
        %v2093 = vld [vmem:[#allocation5 + $0x38] sm:$0xff]
        %v2094 = vld [vmem:[#allocation5 + $0x40] sm:$0xff]
        %v2095 = vld [vmem:[#allocation5 + $0x48] sm:$0x11]
        %v2096 = vld [vmem:[#allocation5 + $0x50] sm:$0x11]
        %v2097 = vld [vmem:[#allocation5 + $0x58] sm:$0x11]
        %v2098 = vld [vmem:[#allocation5 + $0x60] sm:$0x11]
        %v2099 = vld [vmem:[#allocation5 + $0x68] sm:$0x11]
        %v2100 = vld [vmem:[#allocation5 + $0x70] sm:$0x11]
        %v2101 = vld [vmem:[#allocation5 + $0x78] sm:$0x11]
        %v2102 = vld [vmem:[#allocation5 + $0x80] sm:$0x11]
        %v2103 = vld [vmem:[#allocation5 + $0x88] sm:$0x11]
        %v2104 = vld [vmem:[%s3] sm:$0xff]
        %v2105 = vld [vmem:[%s3 + $0x8] sm:$0xf]
        %v2106 = vld [vmem:[%s3 + $0xc] sm:$0xff]
        %v2107 = vld [vmem:[%s3 + $0x14] sm:$0xf]
        %v2108 = vld [vmem:[%s3 + $0x18] sm:$0xff]
        %v2109 = vld [vmem:[%s3 + $0x20] sm:$0xf]
        %v2110 = vld [vmem:[%s3 + $0x24] sm:$0xff]
        %v2111 = vld [vmem:[%s3 + $0x2c] sm:$0xf]
        %v2112 = vld [vmem:[%s3 + $0x30] sm:$0xff]
        %v2113 = vld [vmem:[%s3 + $0x38] sm:$0xf]
        %v2114 = vld [vmem:[%s3 + $0x3c] sm:$0xff]
        %v2115 = vld [vmem:[%s3 + $0x44] sm:$0xf]
        %v2116 = vld [vmem:[%s3 + $0x48] sm:$0xff]
        %v2117 = vld [vmem:[%s3 + $0x50] sm:$0xf]
        %v2118 = vld [vmem:[%s3 + $0x54] sm:$0xff]
        %v2119 = vld [vmem:[%s3 + $0x5c] sm:$0xf]
        %v2120 = vld [vmem:[%s3 + $0x60] sm:$0xff]
        %v2121 = vld [vmem:[%s3 + $0x68] sm:$0xf]
        %v2122 = vld [vmem:[%s3 + $0x6c] sm:$0xff]
        %v2123 = vld [vmem:[%s3 + $0x74] sm:$0xf]
        %v2124 = vld [vmem:[%s3 + $0x78] sm:$0xff]
        %v2125 = vld [vmem:[%s3 + $0x80] sm:$0xf]
        %v2126 = vld [vmem:[%s3 + $0x84] sm:$0xff]
        %v2127 = vld [vmem:[%s3 + $0x8c] sm:$0xf]
        %v2128 = vld [vmem:[%s3 + $0x90] sm:$0xff]
        %v2129 = vld [vmem:[%s3 + $0x98] sm:$0xf]
        %v2130 = vld [vmem:[%s3 + $0x9c] sm:$0xff]
        %v2131 = vld [vmem:[%s3 + $0xa4] sm:$0xf]
        %v2132 = vld [vmem:[%s3 + $0xa8] sm:$0xff]
        %v2133 = vld [vmem:[%s3 + $0xb0] sm:$0xf]
        %v2134 = vld [vmem:[%s3 + $0xb4] sm:$0xff]
        %v2135 = vld [vmem:[%s3 + $0xbc] sm:$0xf]
        %v2136 = vld [vmem:[%s3 + $0xc0] sm:$0xff]
        %v2137 = vld [vmem:[%s3 + $0xc8] sm:$0xf]
        %v2138 = vld [vmem:[%s3 + $0xcc] sm:$0xff]
        %v2139 = vld [vmem:[%s3 + $0xd4] sm:$0xf]
        %v2140 = vld [vmem:[%s3 + $0xd8] sm:$0xff]
        %v2141 = vld [vmem:[%s3 + $0xe0] sm:$0xf]
        %v2142 = vld [vmem:[%s3 + $0xe4] sm:$0xff]
        %v2143 = vld [vmem:[%s3 + $0xec] sm:$0xf]
        %v2144 = vld [vmem:[%s3 + $0xf0] sm:$0xff]
        %v2145 = vld [vmem:[%s3 + $0xf8] sm:$0xf]
        %v2146 = vld [vmem:[%s3 + $0xfc] sm:$0xff]
        %v2147 = vld [vmem:[%s3 + $0x104] sm:$0xf]
        %v2148 = vld [vmem:[%s3 + $0x108] sm:$0xff]
        %v2149 = vld [vmem:[%s3 + $0x110] sm:$0xf]
        %v2150 = vld [vmem:[%s3 + $0x114] sm:$0xff]
        %v2151 = vld [vmem:[%s3 + $0x11c] sm:$0xf]
        %v2152 = vld [vmem:[%s3 + $0x120] sm:$0xff]
        %v2153 = vld [vmem:[%s3 + $0x128] sm:$0xf]
        %v2154 = vld [vmem:[%s3 + $0x12c] sm:$0xff]
        %v2155 = vld [vmem:[%s3 + $0x134] sm:$0xf]
        %v2156 = vld [vmem:[%s3 + $0x138] sm:$0xff]
        %v2157 = vld [vmem:[%s3 + $0x140] sm:$0xf]
        %v2158 = vld [vmem:[%s3 + $0x144] sm:$0xff]
        %v2159 = vld [vmem:[%s3 + $0x14c] sm:$0xf]
        %v2160 = vld [vmem:[%s3 + $0x150] sm:$0xff]
        %v2161 = vld [vmem:[%s3 + $0x158] sm:$0xf]
        %v2162 = vld [vmem:[%s3 + $0x15c] sm:$0xff]
        %v2163 = vld [vmem:[%s3 + $0x164] sm:$0xf]
        %v2164 = vld [vmem:[%s3 + $0x168] sm:$0xff]
        %v2165 = vld [vmem:[%s3 + $0x170] sm:$0xf]
        %v2166 = vld [vmem:[%s3 + $0x174] sm:$0xff]
        %v2167 = vld [vmem:[%s3 + $0x17c] sm:$0xf]
        %v2168 = vld [vmem:[%s3 + $0x180] sm:$0xff]
        %v2169 = vld [vmem:[%s3 + $0x188] sm:$0xf]
        %v2170 = vld [vmem:[%s3 + $0x18c] sm:$0xff]
        %v2171 = vld [vmem:[%s3 + $0x194] sm:$0xf]
        %v2172 = vld [vmem:[%s3 + $0x198] sm:$0xff]
        %v2173 = vld [vmem:[%s3 + $0x1a0] sm:$0xf]
        %v2174 = vld [vmem:[%s3 + $0x1a4] sm:$0xff]
        %v2175 = vld [vmem:[%s3 + $0x1ac] sm:$0xf]
        %v2176 = vld [vmem:[%s3 + $0x1b0] sm:$0xff]
        %v2177 = vld [vmem:[%s3 + $0x1b8] sm:$0xf]
        %v2178 = vld [vmem:[%s3 + $0x1bc] sm:$0xff]
        %v2179 = vld [vmem:[%s3 + $0x1c4] sm:$0xf]
        %v2180 = vld [vmem:[%s3 + $0x1c8] sm:$0xff]
        %v2181 = vld [vmem:[%s3 + $0x1d0] sm:$0xf]
        %v2182 = vld [vmem:[%s3 + $0x1d4] sm:$0xff]
        %v2183 = vld [vmem:[%s3 + $0x1dc] sm:$0xf]
        %v2184 = vld [vmem:[%s3 + $0x1e0] sm:$0xff]
        %v2185 = vld [vmem:[%s3 + $0x1e8] sm:$0xf]
        %v2186 = vld [vmem:[%s3 + $0x1ec] sm:$0xff]
        %v2187 = vld [vmem:[%s3 + $0x1f4] sm:$0xf]
        %v2188 = vld [vmem:[%s3 + $0x1f8] sm:$0xff]
        %v2189 = vld [vmem:[%s3 + $0x200] sm:$0xf]
        %v2190 = vld [vmem:[%s3 + $0x204] sm:$0xff]
        %v2191 = vld [vmem:[%s3 + $0x20c] sm:$0xf]
        %v2192 = vld [vmem:[%s3 + $0x210] sm:$0xff]
        %v2193 = vld [vmem:[%s3 + $0x218] sm:$0xf]
        %v2194 = vld [vmem:[%s3 + $0x21c] sm:$0xff]
        %v2195 = vld [vmem:[%s3 + $0x224] sm:$0xf]
        %v2196 = vld [vmem:[%s3 + $0x228] sm:$0xff]
        %v2197 = vld [vmem:[%s3 + $0x230] sm:$0xf]
        %v2198 = vld [vmem:[%s3 + $0x234] sm:$0xff]
        %v2199 = vld [vmem:[%s3 + $0x23c] sm:$0xf]
        %v2200 = vld [vmem:[%s3 + $0x240] sm:$0xff]
        %v2201 = vld [vmem:[%s3 + $0x248] sm:$0xf]
        %v2202 = vld [vmem:[%s3 + $0x24c] sm:$0xff]
        %v2203 = vld [vmem:[%s3 + $0x254] sm:$0xf]
        %v2204 = vld [vmem:[%s3 + $0x258] sm:$0xff]
        %v2205 = vld [vmem:[%s3 + $0x260] sm:$0xf]
        %v2206 = vld [vmem:[%s3 + $0x264] sm:$0xff]
        %v2207 = vld [vmem:[%s3 + $0x26c] sm:$0xf]
        %v2208 = vld [vmem:[%s3 + $0x270] sm:$0xff]
        %v2209 = vld [vmem:[%s3 + $0x278] sm:$0xf]
        %v2210 = vld [vmem:[%s3 + $0x27c] sm:$0xff]
        %v2211 = vld [vmem:[%s3 + $0x284] sm:$0xf]
        %v2212 = vld [vmem:[%s3 + $0x288] sm:$0xff]
        %v2213 = vld [vmem:[%s3 + $0x290] sm:$0xf]
        %v2214 = vld [vmem:[%s3 + $0x294] sm:$0xff]
        %v2215 = vld [vmem:[%s3 + $0x29c] sm:$0xf]
        %v2216 = vld [vmem:[%s3 + $0x2a0] sm:$0xff]
        %v2217 = vld [vmem:[%s3 + $0x2a8] sm:$0xf]
        %v2218 = vld [vmem:[%s3 + $0x2ac] sm:$0xff]
        %v2219 = vld [vmem:[%s3 + $0x2b4] sm:$0xf]
        %v2220 = vld [vmem:[%s3 + $0x2b8] sm:$0xff]
        %v2221 = vld [vmem:[%s3 + $0x2c0] sm:$0xf]
        %v2222 = vld [vmem:[%s3 + $0x2c4] sm:$0xff]
        %v2223 = vld [vmem:[%s3 + $0x2cc] sm:$0xf]
        %v2224 = vld [vmem:[%s3 + $0x2d0] sm:$0xff]
        %v2225 = vld [vmem:[%s3 + $0x2d8] sm:$0xf]
        %v2226 = vld [vmem:[%s3 + $0x2dc] sm:$0xff]
        %v2227 = vld [vmem:[%s3 + $0x2e4] sm:$0xf]
        %v2228 = vld [vmem:[%s3 + $0x2e8] sm:$0xff]
        %v2229 = vld [vmem:[%s3 + $0x2f0] sm:$0xf]
        %v2230 = vld [vmem:[%s3 + $0x2f4] sm:$0xff]
        %v2231 = vld [vmem:[%s3 + $0x2fc] sm:$0xf]
        %v2232 = vld [vmem:[%s3 + $0x300] sm:$0xff]
        %v2233 = vld [vmem:[%s3 + $0x308] sm:$0xf]
        %v2234 = vld [vmem:[%s3 + $0x30c] sm:$0xff]
        %v2235 = vld [vmem:[%s3 + $0x314] sm:$0xf]
        %v2236 = vld [vmem:[%s3 + $0x318] sm:$0xff]
        %v2237 = vld [vmem:[%s3 + $0x320] sm:$0xf]
        %v2238 = vld [vmem:[%s3 + $0x324] sm:$0xff]
        %v2239 = vld [vmem:[%s3 + $0x32c] sm:$0xf]
        %v2240 = vld [vmem:[%s3 + $0x330] sm:$0xff]
        %v2241 = vld [vmem:[%s3 + $0x338] sm:$0xf]
        %v2242 = vld [vmem:[%s3 + $0x33c] sm:$0xff]
        %v2243 = vld [vmem:[%s3 + $0x344] sm:$0xf]
        %v2244 = vld [vmem:[%s3 + $0x348] sm:$0xff]
        %v2245 = vld [vmem:[%s3 + $0x350] sm:$0xf]
        %v2246 = vld [vmem:[%s3 + $0x354] sm:$0xff]
        %v2247 = vld [vmem:[%s3 + $0x35c] sm:$0xf]
        %v2248 = vld [vmem:[%s3 + $0x360] sm:$0xff]
        %v2249 = vld [vmem:[%s3 + $0x368] sm:$0xf]
        %v2250 = vld [vmem:[%s3 + $0x36c] sm:$0xff]
        %v2251 = vld [vmem:[%s3 + $0x374] sm:$0xf]
        %v2252 = vld [vmem:[%s3 + $0x378] sm:$0xff]
        %v2253 = vld [vmem:[%s3 + $0x380] sm:$0xf]
        %v2254 = vld [vmem:[%s3 + $0x384] sm:$0xff]
        %v2255 = vld [vmem:[%s3 + $0x38c] sm:$0xf]
        %v2256 = vld [vmem:[%s3 + $0x390] sm:$0xff]
        %v2257 = vld [vmem:[%s3 + $0x398] sm:$0xf]
        %v2258 = vld [vmem:[%s3 + $0x39c] sm:$0xff]
        %v2259 = vld [vmem:[%s3 + $0x3a4] sm:$0xf]
        %v2260 = vld [vmem:[%s3 + $0x3a8] sm:$0xff]
        %v2261 = vld [vmem:[%s3 + $0x3b0] sm:$0xf]
        %v2262 = vld [vmem:[%s3 + $0x3b4] sm:$0xff]
        %v2263 = vld [vmem:[%s3 + $0x3bc] sm:$0xf]
        %v2264 = vld [vmem:[%s3 + $0x3c0] sm:$0xff]
        %v2265 = vld [vmem:[%s3 + $0x3c8] sm:$0xf]
        %v2266 = vld [vmem:[%s3 + $0x3cc] sm:$0xff]
        %v2267 = vld [vmem:[%s3 + $0x3d4] sm:$0xf]
        %v2268 = vld [vmem:[%s3 + $0x3d8] sm:$0xff]
        %v2269 = vld [vmem:[%s3 + $0x3e0] sm:$0xf]
        %v2270 = vld [vmem:[%s3 + $0x3e4] sm:$0xff]
        %v2271 = vld [vmem:[%s3 + $0x3ec] sm:$0xf]
        %v2272 = vld [vmem:[%s3 + $0x3f0] sm:$0xff]
        %v2273 = vld [vmem:[%s3 + $0x3f8] sm:$0xf]
        %v2274 = vld [vmem:[%s3 + $0x3fc] sm:$0xff]
        %v2275 = vld [vmem:[%s3 + $0x404] sm:$0xf]
        %v2276 = vld [vmem:[%s3 + $0x408] sm:$0xff]
        %v2277 = vld [vmem:[%s3 + $0x410] sm:$0xf]
        %v2278 = vld [vmem:[%s3 + $0x414] sm:$0xff]
        %v2279 = vld [vmem:[%s3 + $0x41c] sm:$0xf]
        %v2280 = vld [vmem:[%s3 + $0x420] sm:$0xff]
        %v2281 = vld [vmem:[%s3 + $0x428] sm:$0xf]
        %v2282 = vld [vmem:[%s3 + $0x42c] sm:$0xff]
        %v2283 = vld [vmem:[%s3 + $0x434] sm:$0xf]
        %v2284 = vld [vmem:[%s3 + $0x438] sm:$0xff]
        %v2285 = vld [vmem:[%s3 + $0x440] sm:$0xf]
        %v2286 = vld [vmem:[%s3 + $0x444] sm:$0xff]
        %v2287 = vld [vmem:[%s3 + $0x44c] sm:$0xf]
        %v2288 = vld [vmem:[%s3 + $0x450] sm:$0xff]
        %v2289 = vld [vmem:[%s3 + $0x458] sm:$0xf]
        %v2290 = vld [vmem:[%s3 + $0x45c] sm:$0xff]
        %v2291 = vld [vmem:[%s3 + $0x464] sm:$0xf]
        %v2292 = vld [vmem:[%s3 + $0x468] sm:$0xff]
        %v2293 = vld [vmem:[%s3 + $0x470] sm:$0xf]
        %v2294 = vld [vmem:[%s3 + $0x474] sm:$0xff]
        %v2295 = vld [vmem:[%s3 + $0x47c] sm:$0xf]
        %v2296 = vld [vmem:[%s3 + $0x480] sm:$0xff]
        %v2297 = vld [vmem:[%s3 + $0x488] sm:$0xf]
        %v2298 = vld [vmem:[%s3 + $0x48c] sm:$0xff]
        %v2299 = vld [vmem:[%s3 + $0x494] sm:$0xf]
        %v2300 = vld [vmem:[%s3 + $0x498] sm:$0xff]
        %v2301 = vld [vmem:[%s3 + $0x4a0] sm:$0xf]
        %v2302 = vld [vmem:[%s3 + $0x4a4] sm:$0xff]
        %v2303 = vld [vmem:[%s3 + $0x4ac] sm:$0xf]
        %v2304 = vld [vmem:[%s3 + $0x4b0] sm:$0xff]
        %v2305 = vld [vmem:[%s3 + $0x4b8] sm:$0xf]
        %v2306 = vld [vmem:[%s3 + $0x4bc] sm:$0xff]
        %v2307 = vld [vmem:[%s3 + $0x4c4] sm:$0xf]
        %v2308 = vld [vmem:[%s3 + $0x4c8] sm:$0xff]
        %v2309 = vld [vmem:[%s3 + $0x4d0] sm:$0xf]
        %v2310 = vld [vmem:[%s3 + $0x4d4] sm:$0xff]
        %v2311 = vld [vmem:[%s3 + $0x4dc] sm:$0xf]
        %v2312 = vld [vmem:[%s3 + $0x4e0] sm:$0xff]
        %v2313 = vld [vmem:[%s3 + $0x4e8] sm:$0xf]
        %v2314 = vld [vmem:[%s3 + $0x4ec] sm:$0xff]
        %v2315 = vld [vmem:[%s3 + $0x4f4] sm:$0xf]
        %v2316 = vld [vmem:[%s3 + $0x4f8] sm:$0xff]
        %v2317 = vld [vmem:[%s3 + $0x500] sm:$0xf]
        %v2318 = vld [vmem:[%s3 + $0x504] sm:$0xff]
        %v2319 = vld [vmem:[%s3 + $0x50c] sm:$0xf]
        %v2320 = vld [vmem:[%s3 + $0x510] sm:$0xff]
        %v2321 = vld [vmem:[%s3 + $0x518] sm:$0xf]
        %v2322 = vld [vmem:[%s3 + $0x51c] sm:$0xff]
        %v2323 = vld [vmem:[%s3 + $0x524] sm:$0xf]
        %v2324 = vld [vmem:[%s3 + $0x528] sm:$0xff]
        %v2325 = vld [vmem:[%s3 + $0x530] sm:$0xf]
        %v2326 = vld [vmem:[%s3 + $0x534] sm:$0xff]
        %v2327 = vld [vmem:[%s3 + $0x53c] sm:$0xf]
        %v2328 = vld [vmem:[%s3 + $0x540] sm:$0xff]
        %v2329 = vld [vmem:[%s3 + $0x548] sm:$0xf]
        %v2330 = vld [vmem:[%s3 + $0x54c] sm:$0xff]
        %v2331 = vld [vmem:[%s3 + $0x554] sm:$0xf]
        %v2332 = vld [vmem:[%s3 + $0x558] sm:$0xff]
        %v2333 = vld [vmem:[%s3 + $0x560] sm:$0xf]
        %v2334 = vld [vmem:[%s3 + $0x564] sm:$0xff]
        %v2335 = vld [vmem:[%s3 + $0x56c] sm:$0xf]
        %v2336 = vld [vmem:[%s3 + $0x570] sm:$0xff]
        %v2337 = vld [vmem:[%s3 + $0x578] sm:$0xf]
        %v2338 = vld [vmem:[%s3 + $0x57c] sm:$0xff]
        %v2339 = vld [vmem:[%s3 + $0x584] sm:$0xf]
        %v2340 = vld [vmem:[%s3 + $0x588] sm:$0xff]
        %v2341 = vld [vmem:[%s3 + $0x590] sm:$0xf]
        %v2342 = vld [vmem:[%s3 + $0x594] sm:$0xff]
        %v2343 = vld [vmem:[%s3 + $0x59c] sm:$0xf]
        %v2344 = vld [vmem:[%s3 + $0x5a0] sm:$0xff]
        %v2345 = vld [vmem:[%s3 + $0x5a8] sm:$0xf]
        %v2346 = vld [vmem:[%s3 + $0x5ac] sm:$0xff]
        %v2347 = vld [vmem:[%s3 + $0x5b4] sm:$0xf]
        %v2348 = vld [vmem:[%s3 + $0x5b8] sm:$0xff]
        %v2349 = vld [vmem:[%s3 + $0x5c0] sm:$0xf]
        %v2350 = vld [vmem:[%s3 + $0x5c4] sm:$0xff]
        %v2351 = vld [vmem:[%s3 + $0x5cc] sm:$0xf]
        %v2352 = vld [vmem:[%s3 + $0x5d0] sm:$0xff]
        %v2353 = vld [vmem:[%s3 + $0x5d8] sm:$0xf]
        %v2354 = vld [vmem:[%s3 + $0x5dc] sm:$0xff]
        %v2355 = vld [vmem:[%s3 + $0x5e4] sm:$0xf]
        %v2356 = vld [vmem:[%s3 + $0x5e8] sm:$0xff]
        %v2357 = vld [vmem:[%s3 + $0x5f0] sm:$0xf]
        %v2358 = vld [vmem:[%s3 + $0x5f4] sm:$0xff]
        %v2359 = vld [vmem:[%s3 + $0x5fc] sm:$0xf]
        %v2360 = vld [vmem:[%s3 + $0x600] sm:$0xff]
        %v2361 = vld [vmem:[%s3 + $0x608] sm:$0xf]
        %v2362 = vld [vmem:[%s3 + $0x60c] sm:$0xff]
        %v2363 = vld [vmem:[%s3 + $0x614] sm:$0xf]
        %v2364 = vld [vmem:[%s3 + $0x618] sm:$0xff]
        %v2365 = vld [vmem:[%s3 + $0x620] sm:$0xf]
        %v2366 = vld [vmem:[%s3 + $0x624] sm:$0xff]
        %v2367 = vld [vmem:[%s3 + $0x62c] sm:$0xf]
        %v2368 = vld [vmem:[%s3 + $0x630] sm:$0xff]
        %v2369 = vld [vmem:[%s3 + $0x638] sm:$0xf]
        %v2370 = vld [vmem:[%s3 + $0x63c] sm:$0xff]
        %v2371 = vld [vmem:[%s3 + $0x644] sm:$0xf]
        %v2372 = vld [vmem:[%s3 + $0x648] sm:$0xff]
        %v2373 = vld [vmem:[%s3 + $0x650] sm:$0xf]
        %v2374 = vld [vmem:[%s3 + $0x654] sm:$0xff]
        %v2375 = vld [vmem:[%s3 + $0x65c] sm:$0xf]
        %v2376 = vld [vmem:[%s3 + $0x660] sm:$0xff]
        %v2377 = vld [vmem:[%s3 + $0x668] sm:$0xf]
        %v2378 = vld [vmem:[%s3 + $0x66c] sm:$0xff]
        %v2379 = vld [vmem:[%s3 + $0x674] sm:$0xf]
        %v2380 = vld [vmem:[%s3 + $0x678] sm:$0xff]
        %v2381 = vld [vmem:[%s3 + $0x680] sm:$0xf]
        %v2382 = vld [vmem:[%s3 + $0x684] sm:$0xff]
        %v2383 = vld [vmem:[%s3 + $0x68c] sm:$0xf]
        %v2384 = vld [vmem:[%s3 + $0x690] sm:$0xff]
        %v2385 = vld [vmem:[%s3 + $0x698] sm:$0xf]
        %v2386 = vld [vmem:[%s3 + $0x69c] sm:$0xff]
        %v2387 = vld [vmem:[%s3 + $0x6a4] sm:$0xf]
        %v2388 = vld [vmem:[%s3 + $0x6a8] sm:$0xff]
        %v2389 = vld [vmem:[%s3 + $0x6b0] sm:$0xf]
        %v2390 = vld [vmem:[%s3 + $0x6b4] sm:$0xff]
        %v2391 = vld [vmem:[%s3 + $0x6bc] sm:$0xf]
        %v2392 = vld [vmem:[%s3 + $0x6c0] sm:$0xff]
        %v2393 = vld [vmem:[%s3 + $0x6c8] sm:$0xf]
        %v2394 = vld [vmem:[%s3 + $0x6cc] sm:$0xff]
        %v2395 = vld [vmem:[%s3 + $0x6d4] sm:$0xf]
        %v2396 = vld [vmem:[%s3 + $0x6d8] sm:$0xff]
        %v2397 = vld [vmem:[%s3 + $0x6e0] sm:$0xf]
        %v2398 = vld [vmem:[%s3 + $0x6e4] sm:$0xff]
        %v2399 = vld [vmem:[%s3 + $0x6ec] sm:$0xf]
        %v2400 = vld [vmem:[%s3 + $0x6f0] sm:$0xff]
        %v2401 = vld [vmem:[%s3 + $0x6f8] sm:$0xf]
        %v2402 = vld [vmem:[%s3 + $0x6fc] sm:$0xff]
        %v2403 = vld [vmem:[%s3 + $0x704] sm:$0xf]
        %v2404 = vld [vmem:[%s3 + $0x708] sm:$0xff]
        %v2405 = vld [vmem:[%s3 + $0x710] sm:$0xf]
        %v2406 = vld [vmem:[%s3 + $0x714] sm:$0xff]
        %v2407 = vld [vmem:[%s3 + $0x71c] sm:$0xf]
        %v2408 = vld [vmem:[%s3 + $0x720] sm:$0xff]
        %v2409 = vld [vmem:[%s3 + $0x728] sm:$0xf]
        %v2410 = vld [vmem:[%s3 + $0x72c] sm:$0xff]
        %v2411 = vld [vmem:[%s3 + $0x734] sm:$0xf]
        %v2412 = vld [vmem:[%s3 + $0x738] sm:$0xff]
        %v2413 = vld [vmem:[%s3 + $0x740] sm:$0xf]
        %v2414 = vld [vmem:[%s3 + $0x744] sm:$0xff]
        %v2415 = vld [vmem:[%s3 + $0x74c] sm:$0xf]
        %v2416 = vld [vmem:[%s3 + $0x750] sm:$0xff]
        %v2417 = vld [vmem:[%s3 + $0x758] sm:$0xf]
        %v2418 = vld [vmem:[%s3 + $0x75c] sm:$0xff]
        %v2419 = vld [vmem:[%s3 + $0x764] sm:$0xf]
        %v2420 = vld [vmem:[%s3 + $0x768] sm:$0xff]
        %v2421 = vld [vmem:[%s3 + $0x770] sm:$0xf]
        %v2422 = vld [vmem:[%s3 + $0x774] sm:$0xff]
        %v2423 = vld [vmem:[%s3 + $0x77c] sm:$0xf]
        %v2424 = vld [vmem:[%s3 + $0x780] sm:$0xff]
        %v2425 = vld [vmem:[%s3 + $0x788] sm:$0xf]
        %v2426 = vld [vmem:[%s3 + $0x78c] sm:$0xff]
        %v2427 = vld [vmem:[%s3 + $0x794] sm:$0xf]
        %v2428 = vld [vmem:[%s3 + $0x798] sm:$0xff]
        %v2429 = vld [vmem:[%s3 + $0x7a0] sm:$0xf]
        %v2430 = vld [vmem:[%s3 + $0x7a4] sm:$0xff]
        %v2431 = vld [vmem:[%s3 + $0x7ac] sm:$0xf]
        %v2432 = vld [vmem:[%s3 + $0x7b0] sm:$0xff]
        %v2433 = vld [vmem:[%s3 + $0x7b8] sm:$0xf]
        %v2434 = vld [vmem:[%s3 + $0x7bc] sm:$0xff]
        %v2435 = vld [vmem:[%s3 + $0x7c4] sm:$0xf]
        %v2436 = vld [vmem:[%s3 + $0x7c8] sm:$0xff]
        %v2437 = vld [vmem:[%s3 + $0x7d0] sm:$0xf]
        %v2438 = vld [vmem:[%s3 + $0x7d4] sm:$0xff]
        %v2439 = vld [vmem:[%s3 + $0x7dc] sm:$0xf]
        %v2440 = vld [vmem:[%s3 + $0x7e0] sm:$0xff]
        %v2441 = vld [vmem:[%s3 + $0x7e8] sm:$0xf]
        %v2442 = vld [vmem:[%s3 + $0x7ec] sm:$0xff]
        %v2443 = vld [vmem:[%s3 + $0x7f4] sm:$0xf]
        %v2444 = vld [vmem:[%s3 + $0x7f8] sm:$0xff]
        %v2445 = vld [vmem:[%s3 + $0x800] sm:$0xf]
        %v2446 = vld [vmem:[%s3 + $0x804] sm:$0xff]
        %v2447 = vld [vmem:[%s3 + $0x80c] sm:$0xf]
        %v2448 = vld [vmem:[%s3 + $0x810] sm:$0xff]
        %v2449 = vld [vmem:[%s3 + $0x818] sm:$0xf]
        %v2450 = vld [vmem:[%s3 + $0x81c] sm:$0xff]
        %v2451 = vld [vmem:[%s3 + $0x824] sm:$0xf]
        %v2452 = vld [vmem:[%s3 + $0x828] sm:$0xff]
        %v2453 = vld [vmem:[%s3 + $0x830] sm:$0xf]
        %v2454 = vld [vmem:[%s3 + $0x834] sm:$0xff]
        %v2455 = vld [vmem:[%s3 + $0x83c] sm:$0xf]
        %v2456 = vld [vmem:[%s3 + $0x840] sm:$0xff]
        %v2457 = vld [vmem:[%s3 + $0x848] sm:$0xf]
        %v2458 = vld [vmem:[%s3 + $0x84c] sm:$0xff]
        %v2459 = vld [vmem:[%s3 + $0x854] sm:$0xf]
        %v2460 = vld [vmem:[%s3 + $0x858] sm:$0xff]
        %v2461 = vld [vmem:[%s3 + $0x860] sm:$0xf]
        %v2462 = vld [vmem:[%s3 + $0x864] sm:$0xff]
        %v2463 = vld [vmem:[%s3 + $0x86c] sm:$0xf]
        %v2464 = vld [vmem:[%s3 + $0x870] sm:$0xff]
        %v2465 = vld [vmem:[%s3 + $0x878] sm:$0xf]
        %v2466 = vld [vmem:[%s3 + $0x87c] sm:$0xff]
        %v2467 = vld [vmem:[%s3 + $0x884] sm:$0xf]
        %v2468 = vld [vmem:[%s3 + $0x888] sm:$0xff]
        %v2469 = vld [vmem:[%s3 + $0x890] sm:$0xf]
        %v2470 = vld [vmem:[%s3 + $0x894] sm:$0xff]
        %v2471 = vld [vmem:[%s3 + $0x89c] sm:$0xf]
        %v2472 = vld [vmem:[%s3 + $0x8a0] sm:$0xff]
        %v2473 = vld [vmem:[%s3 + $0x8a8] sm:$0xf]
        %v2474 = vld [vmem:[%s3 + $0x8ac] sm:$0xff]
        %v2475 = vld [vmem:[%s3 + $0x8b4] sm:$0xf]
        %v2476 = vld [vmem:[%s3 + $0x8b8] sm:$0xff]
        %v2477 = vld [vmem:[%s3 + $0x8c0] sm:$0xf]
        %v2478 = vld [vmem:[%s3 + $0x8c4] sm:$0xff]
        %v2479 = vld [vmem:[%s3 + $0x8cc] sm:$0xf]
        %v2480 = vld [vmem:[%s3 + $0x8d0] sm:$0xff]
        %v2481 = vld [vmem:[%s3 + $0x8d8] sm:$0xf]
        %v2482 = vld [vmem:[%s3 + $0x8dc] sm:$0xff]
        %v2483 = vld [vmem:[%s3 + $0x8e4] sm:$0xf]
        %v2484 = vld [vmem:[%s3 + $0x8e8] sm:$0xff]
        %v2485 = vld [vmem:[%s3 + $0x8f0] sm:$0xf]
        %v2486 = vld [vmem:[%s3 + $0x8f4] sm:$0xff]
        %v2487 = vld [vmem:[%s3 + $0x8fc] sm:$0xf]
        %v2488 = vld [vmem:[%s3 + $0x900] sm:$0xff]
        %v2489 = vld [vmem:[%s3 + $0x908] sm:$0xf]
        %v2490 = vld [vmem:[%s3 + $0x90c] sm:$0xff]
        %v2491 = vld [vmem:[%s3 + $0x914] sm:$0xf]
        %v2492 = vld [vmem:[%s3 + $0x918] sm:$0xff]
        %v2493 = vld [vmem:[%s3 + $0x920] sm:$0xf]
        %v2494 = vld [vmem:[%s3 + $0x924] sm:$0xff]
        %v2495 = vld [vmem:[%s3 + $0x92c] sm:$0xf]
        %v2496 = vld [vmem:[%s3 + $0x930] sm:$0xff]
        %v2497 = vld [vmem:[%s3 + $0x938] sm:$0xf]
        %v2498 = vld [vmem:[%s3 + $0x93c] sm:$0xff]
        %v2499 = vld [vmem:[%s3 + $0x944] sm:$0xf]
        %v2500 = vld [vmem:[%s3 + $0x948] sm:$0xff]
        %v2501 = vld [vmem:[%s3 + $0x950] sm:$0xf]
        %v2502 = vld [vmem:[%s3 + $0x954] sm:$0xff]
        %v2503 = vld [vmem:[%s3 + $0x95c] sm:$0xf]
        %v2504 = vld [vmem:[%s3 + $0x960] sm:$0xff]
        %v2505 = vld [vmem:[%s3 + $0x968] sm:$0xf]
        %v2506 = vld [vmem:[%s3 + $0x96c] sm:$0xff]
        %v2507 = vld [vmem:[%s3 + $0x974] sm:$0xf]
        %v2508 = vld [vmem:[%s3 + $0x978] sm:$0xff]
        %v2509 = vld [vmem:[%s3 + $0x980] sm:$0xf]
        %v2510 = vld [vmem:[%s3 + $0x984] sm:$0xff]
        %v2511 = vld [vmem:[%s3 + $0x98c] sm:$0xf]
        %v2512 = vld [vmem:[%s3 + $0x990] sm:$0xff]
        %v2513 = vld [vmem:[%s3 + $0x998] sm:$0xf]
        %v2514 = vld [vmem:[%s3 + $0x99c] sm:$0xff]
        %v2515 = vld [vmem:[%s3 + $0x9a4] sm:$0xf]
        %v2516 = vld [vmem:[%s3 + $0x9a8] sm:$0xff]
        %v2517 = vld [vmem:[%s3 + $0x9b0] sm:$0xf]
        %v2518 = vld [vmem:[%s3 + $0x9b4] sm:$0xff]
        %v2519 = vld [vmem:[%s3 + $0x9bc] sm:$0xf]
        %v2520 = vld [vmem:[%s3 + $0x9c0] sm:$0xff]
        %v2521 = vld [vmem:[%s3 + $0x9c8] sm:$0xf]
        %v2522 = vld [vmem:[%s3 + $0x9cc] sm:$0xff]
        %v2523 = vld [vmem:[%s3 + $0x9d4] sm:$0xf]
        %v2524 = vld [vmem:[%s3 + $0x9d8] sm:$0xff]
        %v2525 = vld [vmem:[%s3 + $0x9e0] sm:$0xf]
        %v2526 = vld [vmem:[%s3 + $0x9e4] sm:$0xff]
        %v2527 = vld [vmem:[%s3 + $0x9ec] sm:$0xf]
        %v2528 = vld [vmem:[%s3 + $0x9f0] sm:$0xff]
        %v2529 = vld [vmem:[%s3 + $0x9f8] sm:$0xf]
        %v2530 = vld [vmem:[%s3 + $0x9fc] sm:$0xff]
        %v2531 = vld [vmem:[%s3 + $0xa04] sm:$0xf]
        %v2532 = vld [vmem:[%s3 + $0xa08] sm:$0xff]
        %v2533 = vld [vmem:[%s3 + $0xa10] sm:$0xf]
        %v2534 = vld [vmem:[%s3 + $0xa14] sm:$0xff]
        %v2535 = vld [vmem:[%s3 + $0xa1c] sm:$0xf]
        %v2536 = vld [vmem:[%s3 + $0xa20] sm:$0xff]
        %v2537 = vld [vmem:[%s3 + $0xa28] sm:$0xf]
        %v2538 = vld [vmem:[%s3 + $0xa2c] sm:$0xff]
        %v2539 = vld [vmem:[%s3 + $0xa34] sm:$0xf]
        %v2540 = vld [vmem:[%s3 + $0xa38] sm:$0xff]
        %v2541 = vld [vmem:[%s3 + $0xa40] sm:$0xf]
        %v2542 = vld [vmem:[%s3 + $0xa44] sm:$0xff]
        %v2543 = vld [vmem:[%s3 + $0xa4c] sm:$0xf]
        %v2544 = vld [vmem:[%s3 + $0xa50] sm:$0xff]
        %v2545 = vld [vmem:[%s3 + $0xa58] sm:$0xf]
        %v2546 = vld [vmem:[%s3 + $0xa5c] sm:$0xff]
        %v2547 = vld [vmem:[%s3 + $0xa64] sm:$0xf]
        %v2548 = vld [vmem:[%s3 + $0xa68] sm:$0xff]
        %v2549 = vld [vmem:[%s3 + $0xa70] sm:$0xf]
        %v2550 = vld [vmem:[%s3 + $0xa74] sm:$0xff]
        %v2551 = vld [vmem:[%s3 + $0xa7c] sm:$0xf]
        %v2552 = vld [vmem:[%s3 + $0xa80] sm:$0xff]
        %v2553 = vld [vmem:[%s3 + $0xa88] sm:$0xf]
        %v2554 = vld [vmem:[%s3 + $0xa8c] sm:$0xff]
        %v2555 = vld [vmem:[%s3 + $0xa94] sm:$0xf]
        %v2556 = vld [vmem:[%s3 + $0xa98] sm:$0xff]
        %v2557 = vld [vmem:[%s3 + $0xaa0] sm:$0xf]
        %v2558 = vld [vmem:[%s3 + $0xaa4] sm:$0xff]
        %v2559 = vld [vmem:[%s3 + $0xaac] sm:$0xf]
        %v2560 = vld [vmem:[%s3 + $0xab0] sm:$0xff]
        %v2561 = vld [vmem:[%s3 + $0xab8] sm:$0xf]
        %v2562 = vld [vmem:[%s3 + $0xabc] sm:$0xff]
        %v2563 = vld [vmem:[%s3 + $0xac4] sm:$0xf]
        %v2564 = vld [vmem:[%s3 + $0xac8] sm:$0xff]
        %v2565 = vld [vmem:[%s3 + $0xad0] sm:$0xf]
        %v2566 = vld [vmem:[%s3 + $0xad4] sm:$0xff]
        %v2567 = vld [vmem:[%s3 + $0xadc] sm:$0xf]
        %v2568 = vld [vmem:[%s3 + $0xae0] sm:$0xff]
        %v2569 = vld [vmem:[%s3 + $0xae8] sm:$0xf]
        %v2570 = vld [vmem:[%s3 + $0xaec] sm:$0xff]
        %v2571 = vld [vmem:[%s3 + $0xaf4] sm:$0xf]
        %v2572 = vld [vmem:[%s3 + $0xaf8] sm:$0xff]
        %v2573 = vld [vmem:[%s3 + $0xb00] sm:$0xf]
        %v2574 = vld [vmem:[%s3 + $0xb04] sm:$0xff]
        %v2575 = vld [vmem:[%s3 + $0xb0c] sm:$0xf]
        %v2576 = vld [vmem:[%s3 + $0xb10] sm:$0xff]
        %v2577 = vld [vmem:[%s3 + $0xb18] sm:$0xf]
        %v2578 = vld [vmem:[%s3 + $0xb1c] sm:$0xff]
        %v2579 = vld [vmem:[%s3 + $0xb24] sm:$0xf]
        %v2580 = vld [vmem:[%s3 + $0xb28] sm:$0xff]
        %v2581 = vld [vmem:[%s3 + $0xb30] sm:$0xf]
        %v2582 = vld [vmem:[%s3 + $0xb34] sm:$0xff]
        %v2583 = vld [vmem:[%s3 + $0xb3c] sm:$0xf]
        %v2584 = vld [vmem:[%s3 + $0xb40] sm:$0xff]
        %v2585 = vld [vmem:[%s3 + $0xb48] sm:$0xf]
        %v2586 = vld [vmem:[%s3 + $0xb4c] sm:$0xff]
        %v2587 = vld [vmem:[%s3 + $0xb54] sm:$0xf]
        %v2588 = vld [vmem:[%s3 + $0xb58] sm:$0xff]
        %v2589 = vld [vmem:[%s3 + $0xb60] sm:$0xf]
        %v2590 = vld [vmem:[%s3 + $0xb64] sm:$0xff]
        %v2591 = vld [vmem:[%s3 + $0xb6c] sm:$0xf]
        %v2592 = vld [vmem:[%s3 + $0xb70] sm:$0xff]
        %v2593 = vld [vmem:[%s3 + $0xb78] sm:$0xf]
        %v2594 = vld [vmem:[%s3 + $0xb7c] sm:$0xff]
        %v2595 = vld [vmem:[%s3 + $0xb84] sm:$0xf]
        %v2596 = vld [vmem:[%s3 + $0xb88] sm:$0xff]
        %v2597 = vld [vmem:[%s3 + $0xb90] sm:$0xf]
        %v2598 = vld [vmem:[%s3 + $0xb94] sm:$0xff]
        %v2599 = vld [vmem:[%s3 + $0xb9c] sm:$0xf]
        %v2600 = vld [vmem:[%s3 + $0xba0] sm:$0xff]
        %v2601 = vld [vmem:[%s3 + $0xba8] sm:$0xf]
        %v2602 = vld [vmem:[%s3 + $0xbac] sm:$0xff]
        %v2603 = vld [vmem:[%s3 + $0xbb4] sm:$0xf]
        %v2604 = vld [vmem:[%s3 + $0xbb8] sm:$0xff]
        %v2605 = vld [vmem:[%s3 + $0xbc0] sm:$0xf]
        %v2606 = vld [vmem:[%s3 + $0xbc4] sm:$0xff]
        %v2607 = vld [vmem:[%s3 + $0xbcc] sm:$0xf]
        %v2608 = vld [vmem:[%s3 + $0xbd0] sm:$0xff]
        %v2609 = vld [vmem:[%s3 + $0xbd8] sm:$0xf]
        %v2610 = vld [vmem:[%s3 + $0xbdc] sm:$0xff]
        %v2611 = vld [vmem:[%s3 + $0xbe4] sm:$0xf]
        %v2612 = vld [vmem:[%s3 + $0xbe8] sm:$0xff]
        %v2613 = vld [vmem:[%s3 + $0xbf0] sm:$0xf]
        %v2614 = vld [vmem:[%s3 + $0xbf4] sm:$0xff]
        %v2615 = vld [vmem:[%s3 + $0xbfc] sm:$0xf]
        %v2616 = vld [vmem:[%s3 + $0xc00] sm:$0xff]
        %v2617 = vld [vmem:[%s3 + $0xc08] sm:$0xf]
        %v2618 = vld [vmem:[%s3 + $0xc0c] sm:$0xff]
        %v2619 = vld [vmem:[%s3 + $0xc14] sm:$0xf]
        %v2620 = vld [vmem:[%s3 + $0xc18] sm:$0xff]
        %v2621 = vld [vmem:[%s3 + $0xc20] sm:$0xf]
        %v2622 = vld [vmem:[%s3 + $0xc24] sm:$0xff]
        %v2623 = vld [vmem:[%s3 + $0xc2c] sm:$0xf]
        %v2624 = vld [vmem:[%s3 + $0xc30] sm:$0xff]
        %v2625 = vld [vmem:[%s3 + $0xc38] sm:$0xf]
        %v2626 = vld [vmem:[%s3 + $0xc3c] sm:$0xff]
        %v2627 = vld [vmem:[%s3 + $0xc44] sm:$0xf]
        %v2628 = vld [vmem:[%s3 + $0xc48] sm:$0xff]
        %v2629 = vld [vmem:[%s3 + $0xc50] sm:$0xf]
        %v2630 = vld [vmem:[%s3 + $0xc54] sm:$0xff]
        %v2631 = vld [vmem:[%s3 + $0xc5c] sm:$0xf]
        %v2632 = vld [vmem:[%s3 + $0xc60] sm:$0xff]
        %v2633 = vld [vmem:[%s3 + $0xc68] sm:$0xf]
        %v2634 = vld [vmem:[%s3 + $0xc6c] sm:$0xff]
        %v2635 = vld [vmem:[%s3 + $0xc74] sm:$0xf]
        %v2636 = vld [vmem:[%s3 + $0xc78] sm:$0xff]
        %v2637 = vld [vmem:[%s3 + $0xc80] sm:$0xf]
        %v2638 = vld [vmem:[%s3 + $0xc84] sm:$0xff]
        %v2639 = vld [vmem:[%s3 + $0xc8c] sm:$0xf]
        %v2640 = vld [vmem:[%s3 + $0xc90] sm:$0xff]
        %v2641 = vld [vmem:[%s3 + $0xc98] sm:$0xf]
        %v2642 = vld [vmem:[%s3 + $0xc9c] sm:$0xff]
        %v2643 = vld [vmem:[%s3 + $0xca4] sm:$0xf]
        %v2644 = vld [vmem:[%s3 + $0xca8] sm:$0xff]
        %v2645 = vld [vmem:[%s3 + $0xcb0] sm:$0xf]
        %v2646 = vld [vmem:[%s3 + $0xcb4] sm:$0xff]
        %v2647 = vld [vmem:[%s3 + $0xcbc] sm:$0xf]
        %v2648 = vld [vmem:[%s3 + $0xcc0] sm:$0xff]
        %v2649 = vld [vmem:[%s3 + $0xcc8] sm:$0xf]
        %v2650 = vld [vmem:[%s3 + $0xccc] sm:$0xff]
        %v2651 = vld [vmem:[%s3 + $0xcd4] sm:$0xf]
        %v2652 = vld [vmem:[%s3 + $0xcd8] sm:$0xff]
        %v2653 = vld [vmem:[%s3 + $0xce0] sm:$0xf]
        %v2654 = vld [vmem:[%s3 + $0xce4] sm:$0xff]
        %v2655 = vld [vmem:[%s3 + $0xcec] sm:$0xf]
        %v2656 = vld [vmem:[%s3 + $0xcf0] sm:$0xff]
        %v2657 = vld [vmem:[%s3 + $0xcf8] sm:$0xf]
        %v2658 = vld [vmem:[%s3 + $0xcfc] sm:$0xff]
        %v2659 = vld [vmem:[%s3 + $0xd04] sm:$0xf]
        %v2660 = vld [vmem:[%s3 + $0xd08] sm:$0xff]
        %v2661 = vld [vmem:[%s3 + $0xd10] sm:$0xf]
        %v2662 = vld [vmem:[%s3 + $0xd14] sm:$0xff]
        %v2663 = vld [vmem:[%s3 + $0xd1c] sm:$0xf]
        %v2664 = vld [vmem:[%s4] sm:$0x7]
        %v2666 = vperm.slane %v2664, 0
        %v2667 = vperm.slane %v2664, 1
        %v2668 = vperm.slane %v2664, 2
        %v2690 = vunpack.c.l.b16 %v2086
        %v2691 = vunpack.c.h.b16 %v2086
        %v2692 = vunpack.c.l.b16 %v2087
        %v2693 = vunpack.c.h.b16 %v2087
        %v2694 = vunpack.c.l.b16 %v2088
        %v2695 = vunpack.c.h.b16 %v2088
        %v2696 = vunpack.c.l.b16 %v2089
        %v2697 = vunpack.c.h.b16 %v2089
        %v2698 = vunpack.c.l.b16 %v2090
        %v2699 = vunpack.c.h.b16 %v2090
        %v2700 = vunpack.c.l.b16 %v2091
        %v2701 = vunpack.c.h.b16 %v2091
        %v2702 = vunpack.c.l.b16 %v2092
        %v2703 = vunpack.c.h.b16 %v2092
        %v2704 = vunpack.c.l.b16 %v2093
        %v2705 = vunpack.c.h.b16 %v2093
        %v2706 = vunpack.c.l.b16 %v2094
        %v2707 = vunpack.c.h.b16 %v2094
        %v2708 = vunpack.c.l.b16 %v2095
        %v2709 = vunpack.c.h.b16 %v2095
        %v2710 = vunpack.c.l.b16 %v2096
        %v2711 = vunpack.c.h.b16 %v2096
        %v2712 = vunpack.c.l.b16 %v2097
        %v2713 = vunpack.c.h.b16 %v2097
        %v2714 = vunpack.c.l.b16 %v2098
        %v2715 = vunpack.c.h.b16 %v2098
        %v2716 = vunpack.c.l.b16 %v2099
        %v2717 = vunpack.c.h.b16 %v2099
        %v2718 = vunpack.c.l.b16 %v2100
        %v2719 = vunpack.c.h.b16 %v2100
        %v2720 = vunpack.c.l.b16 %v2101
        %v2721 = vunpack.c.h.b16 %v2101
        %v2722 = vunpack.c.l.b16 %v2102
        %v2723 = vunpack.c.h.b16 %v2102
        %v2724 = vunpack.c.l.b16 %v2103
        %v2725 = vunpack.c.h.b16 %v2103
        %v2726 = vpack.c.b16 %v2708, %v2690
        %v2727 = vpack.c.b16 %v2709, %v2691
        %v2728 = vpack.c.b16 %v2710, %v2692
        %v2729 = vpack.c.b16 %v2711, %v2693
        %v2730 = vpack.c.b16 %v2712, %v2694
        %v2731 = vpack.c.b16 %v2713, %v2695
        %v2732 = vpack.c.b16 %v2714, %v2696
        %v2733 = vpack.c.b16 %v2715, %v2697
        %v2734 = vpack.c.b16 %v2716, %v2698
        %v2735 = vpack.c.b16 %v2717, %v2699
        %v2736 = vpack.c.b16 %v2718, %v2700
        %v2737 = vpack.c.b16 %v2719, %v2701
        %v2738 = vpack.c.b16 %v2720, %v2702
        %v2739 = vpack.c.b16 %v2721, %v2703
        %v2740 = vpack.c.b16 %v2722, %v2704
        %v2741 = vpack.c.b16 %v2723, %v2705
        %v2742 = vpack.c.b16 %v2724, %v2706
        %v2743 = vpack.c.b16 %v2725, %v2707
        %v3321 = vunpack.c.l.b16 %v2104
        %v3322 = vunpack.c.h.b16 %v2104
        %v3323 = vunpack.c.l.b16 %v2105
        %v3324 = vunpack.c.l.b16 %v2106
        %v3325 = vunpack.c.h.b16 %v2106
        %v3326 = vunpack.c.l.b16 %v2107
        %v3327 = vunpack.c.l.b16 %v2108
        %v3328 = vunpack.c.h.b16 %v2108
        %v3329 = vunpack.c.l.b16 %v2109
        %v3330 = vunpack.c.l.b16 %v2110
        %v3331 = vunpack.c.h.b16 %v2110
        %v3332 = vunpack.c.l.b16 %v2111
        %v3333 = vunpack.c.l.b16 %v2112
        %v3334 = vunpack.c.h.b16 %v2112
        %v3335 = vunpack.c.l.b16 %v2113
        %v3336 = vunpack.c.l.b16 %v2114
        %v3337 = vunpack.c.h.b16 %v2114
        %v3338 = vunpack.c.l.b16 %v2115
        %v3339 = vunpack.c.l.b16 %v2116
        %v3340 = vunpack.c.h.b16 %v2116
        %v3341 = vunpack.c.l.b16 %v2117
        %v3342 = vunpack.c.l.b16 %v2118
        %v3343 = vunpack.c.h.b16 %v2118
        %v3344 = vunpack.c.l.b16 %v2119
        %v3345 = vunpack.c.l.b16 %v2120
        %v3346 = vunpack.c.h.b16 %v2120
        %v3347 = vunpack.c.l.b16 %v2121
        %v3348 = vunpack.c.l.b16 %v2122
        %v3349 = vunpack.c.h.b16 %v2122
        %v3350 = vunpack.c.l.b16 %v2123
        %v3351 = vunpack.c.l.b16 %v2124
        %v3352 = vunpack.c.h.b16 %v2124
        %v3353 = vunpack.c.l.b16 %v2125
        %v3354 = vunpack.c.l.b16 %v2126
        %v3355 = vunpack.c.h.b16 %v2126
        %v3356 = vunpack.c.l.b16 %v2127
        %v3357 = vunpack.c.l.b16 %v2128
        %v3358 = vunpack.c.h.b16 %v2128
        %v3359 = vunpack.c.l.b16 %v2129
        %v3360 = vunpack.c.l.b16 %v2130
        %v3361 = vunpack.c.h.b16 %v2130
        %v3362 = vunpack.c.l.b16 %v2131
        %v3363 = vunpack.c.l.b16 %v2132
        %v3364 = vunpack.c.h.b16 %v2132
        %v3365 = vunpack.c.l.b16 %v2133
        %v3366 = vunpack.c.l.b16 %v2134
        %v3367 = vunpack.c.h.b16 %v2134
        %v3368 = vunpack.c.l.b16 %v2135
        %v3369 = vunpack.c.l.b16 %v2136
        %v3370 = vunpack.c.h.b16 %v2136
        %v3371 = vunpack.c.l.b16 %v2137
        %v3372 = vunpack.c.l.b16 %v2138
        %v3373 = vunpack.c.h.b16 %v2138
        %v3374 = vunpack.c.l.b16 %v2139
        %v3375 = vunpack.c.l.b16 %v2140
        %v3376 = vunpack.c.h.b16 %v2140
        %v3377 = vunpack.c.l.b16 %v2141
        %v3378 = vunpack.c.l.b16 %v2142
        %v3379 = vunpack.c.h.b16 %v2142
        %v3380 = vunpack.c.l.b16 %v2143
        %v3381 = vunpack.c.l.b16 %v2144
        %v3382 = vunpack.c.h.b16 %v2144
        %v3383 = vunpack.c.l.b16 %v2145
        %v3384 = vunpack.c.l.b16 %v2146
        %v3385 = vunpack.c.h.b16 %v2146
        %v3386 = vunpack.c.l.b16 %v2147
        %v3387 = vunpack.c.l.b16 %v2148
        %v3388 = vunpack.c.h.b16 %v2148
        %v3389 = vunpack.c.l.b16 %v2149
        %v3390 = vunpack.c.l.b16 %v2150
        %v3391 = vunpack.c.h.b16 %v2150
        %v3392 = vunpack.c.l.b16 %v2151
        %v3393 = vunpack.c.l.b16 %v2152
        %v3394 = vunpack.c.h.b16 %v2152
        %v3395 = vunpack.c.l.b16 %v2153
        %v3396 = vunpack.c.l.b16 %v2154
        %v3397 = vunpack.c.h.b16 %v2154
        %v3398 = vunpack.c.l.b16 %v2155
        %v3399 = vunpack.c.l.b16 %v2156
        %v3400 = vunpack.c.h.b16 %v2156
        %v3401 = vunpack.c.l.b16 %v2157
        %v3402 = vunpack.c.l.b16 %v2158
        %v3403 = vunpack.c.h.b16 %v2158
        %v3404 = vunpack.c.l.b16 %v2159
        %v3405 = vunpack.c.l.b16 %v2160
        %v3406 = vunpack.c.h.b16 %v2160
        %v3407 = vunpack.c.l.b16 %v2161
        %v3408 = vunpack.c.l.b16 %v2162
        %v3409 = vunpack.c.h.b16 %v2162
        %v3410 = vunpack.c.l.b16 %v2163
        %v3411 = vunpack.c.l.b16 %v2164
        %v3412 = vunpack.c.h.b16 %v2164
        %v3413 = vunpack.c.l.b16 %v2165
        %v3414 = vunpack.c.l.b16 %v2166
        %v3415 = vunpack.c.h.b16 %v2166
        %v3416 = vunpack.c.l.b16 %v2167
        %v3417 = vunpack.c.l.b16 %v2168
        %v3418 = vunpack.c.h.b16 %v2168
        %v3419 = vunpack.c.l.b16 %v2169
        %v3420 = vunpack.c.l.b16 %v2170
        %v3421 = vunpack.c.h.b16 %v2170
        %v3422 = vunpack.c.l.b16 %v2171
        %v3423 = vunpack.c.l.b16 %v2172
        %v3424 = vunpack.c.h.b16 %v2172
        %v3425 = vunpack.c.l.b16 %v2173
        %v3426 = vunpack.c.l.b16 %v2174
        %v3427 = vunpack.c.h.b16 %v2174
        %v3428 = vunpack.c.l.b16 %v2175
        %v3429 = vunpack.c.l.b16 %v2176
        %v3430 = vunpack.c.h.b16 %v2176
        %v3431 = vunpack.c.l.b16 %v2177
        %v3432 = vunpack.c.l.b16 %v2178
        %v3433 = vunpack.c.h.b16 %v2178
        %v3434 = vunpack.c.l.b16 %v2179
        %v3435 = vunpack.c.l.b16 %v2180
        %v3436 = vunpack.c.h.b16 %v2180
        %v3437 = vunpack.c.l.b16 %v2181
        %v3438 = vunpack.c.l.b16 %v2182
        %v3439 = vunpack.c.h.b16 %v2182
        %v3440 = vunpack.c.l.b16 %v2183
        %v3441 = vunpack.c.l.b16 %v2184
        %v3442 = vunpack.c.h.b16 %v2184
        %v3443 = vunpack.c.l.b16 %v2185
        %v3444 = vunpack.c.l.b16 %v2186
        %v3445 = vunpack.c.h.b16 %v2186
        %v3446 = vunpack.c.l.b16 %v2187
        %v3447 = vunpack.c.l.b16 %v2188
        %v3448 = vunpack.c.h.b16 %v2188
        %v3449 = vunpack.c.l.b16 %v2189
        %v3450 = vunpack.c.l.b16 %v2190
        %v3451 = vunpack.c.h.b16 %v2190
        %v3452 = vunpack.c.l.b16 %v2191
        %v3453 = vunpack.c.l.b16 %v2192
        %v3454 = vunpack.c.h.b16 %v2192
        %v3455 = vunpack.c.l.b16 %v2193
        %v3456 = vunpack.c.l.b16 %v2194
        %v3457 = vunpack.c.h.b16 %v2194
        %v3458 = vunpack.c.l.b16 %v2195
        %v3459 = vunpack.c.l.b16 %v2196
        %v3460 = vunpack.c.h.b16 %v2196
        %v3461 = vunpack.c.l.b16 %v2197
        %v3462 = vunpack.c.l.b16 %v2198
        %v3463 = vunpack.c.h.b16 %v2198
        %v3464 = vunpack.c.l.b16 %v2199
        %v3465 = vunpack.c.l.b16 %v2200
        %v3466 = vunpack.c.h.b16 %v2200
        %v3467 = vunpack.c.l.b16 %v2201
        %v3468 = vunpack.c.l.b16 %v2202
        %v3469 = vunpack.c.h.b16 %v2202
        %v3470 = vunpack.c.l.b16 %v2203
        %v3471 = vunpack.c.l.b16 %v2204
        %v3472 = vunpack.c.h.b16 %v2204
        %v3473 = vunpack.c.l.b16 %v2205
        %v3474 = vunpack.c.l.b16 %v2206
        %v3475 = vunpack.c.h.b16 %v2206
        %v3476 = vunpack.c.l.b16 %v2207
        %v3477 = vunpack.c.l.b16 %v2208
        %v3478 = vunpack.c.h.b16 %v2208
        %v3479 = vunpack.c.l.b16 %v2209
        %v3480 = vunpack.c.l.b16 %v2210
        %v3481 = vunpack.c.h.b16 %v2210
        %v3482 = vunpack.c.l.b16 %v2211
        %v3483 = vunpack.c.l.b16 %v2212
        %v3484 = vunpack.c.h.b16 %v2212
        %v3485 = vunpack.c.l.b16 %v2213
        %v3486 = vunpack.c.l.b16 %v2214
        %v3487 = vunpack.c.h.b16 %v2214
        %v3488 = vunpack.c.l.b16 %v2215
        %v3489 = vunpack.c.l.b16 %v2216
        %v3490 = vunpack.c.h.b16 %v2216
        %v3491 = vunpack.c.l.b16 %v2217
        %v3492 = vunpack.c.l.b16 %v2218
        %v3493 = vunpack.c.h.b16 %v2218
        %v3494 = vunpack.c.l.b16 %v2219
        %v3495 = vunpack.c.l.b16 %v2220
        %v3496 = vunpack.c.h.b16 %v2220
        %v3497 = vunpack.c.l.b16 %v2221
        %v3498 = vunpack.c.l.b16 %v2222
        %v3499 = vunpack.c.h.b16 %v2222
        %v3500 = vunpack.c.l.b16 %v2223
        %v3501 = vunpack.c.l.b16 %v2224
        %v3502 = vunpack.c.h.b16 %v2224
        %v3503 = vunpack.c.l.b16 %v2225
        %v3504 = vunpack.c.l.b16 %v2226
        %v3505 = vunpack.c.h.b16 %v2226
        %v3506 = vunpack.c.l.b16 %v2227
        %v3507 = vunpack.c.l.b16 %v2228
        %v3508 = vunpack.c.h.b16 %v2228
        %v3509 = vunpack.c.l.b16 %v2229
        %v3510 = vunpack.c.l.b16 %v2230
        %v3511 = vunpack.c.h.b16 %v2230
        %v3512 = vunpack.c.l.b16 %v2231
        %v3513 = vunpack.c.l.b16 %v2232
        %v3514 = vunpack.c.h.b16 %v2232
        %v3515 = vunpack.c.l.b16 %v2233
        %v3516 = vunpack.c.l.b16 %v2234
        %v3517 = vunpack.c.h.b16 %v2234
        %v3518 = vunpack.c.l.b16 %v2235
        %v3519 = vunpack.c.l.b16 %v2236
        %v3520 = vunpack.c.h.b16 %v2236
        %v3521 = vunpack.c.l.b16 %v2237
        %v3522 = vunpack.c.l.b16 %v2238
        %v3523 = vunpack.c.h.b16 %v2238
        %v3524 = vunpack.c.l.b16 %v2239
        %v3525 = vunpack.c.l.b16 %v2240
        %v3526 = vunpack.c.h.b16 %v2240
        %v3527 = vunpack.c.l.b16 %v2241
        %v3528 = vunpack.c.l.b16 %v2242
        %v3529 = vunpack.c.h.b16 %v2242
        %v3530 = vunpack.c.l.b16 %v2243
        %v3531 = vunpack.c.l.b16 %v2244
        %v3532 = vunpack.c.h.b16 %v2244
        %v3533 = vunpack.c.l.b16 %v2245
        %v3534 = vunpack.c.l.b16 %v2246
        %v3535 = vunpack.c.h.b16 %v2246
        %v3536 = vunpack.c.l.b16 %v2247
        %v3537 = vunpack.c.l.b16 %v2248
        %v3538 = vunpack.c.h.b16 %v2248
        %v3539 = vunpack.c.l.b16 %v2249
        %v3540 = vunpack.c.l.b16 %v2250
        %v3541 = vunpack.c.h.b16 %v2250
        %v3542 = vunpack.c.l.b16 %v2251
        %v3543 = vunpack.c.l.b16 %v2252
        %v3544 = vunpack.c.h.b16 %v2252
        %v3545 = vunpack.c.l.b16 %v2253
        %v3546 = vunpack.c.l.b16 %v2254
        %v3547 = vunpack.c.h.b16 %v2254
        %v3548 = vunpack.c.l.b16 %v2255
        %v3549 = vunpack.c.l.b16 %v2256
        %v3550 = vunpack.c.h.b16 %v2256
        %v3551 = vunpack.c.l.b16 %v2257
        %v3552 = vunpack.c.l.b16 %v2258
        %v3553 = vunpack.c.h.b16 %v2258
        %v3554 = vunpack.c.l.b16 %v2259
        %v3555 = vunpack.c.l.b16 %v2260
        %v3556 = vunpack.c.h.b16 %v2260
        %v3557 = vunpack.c.l.b16 %v2261
        %v3558 = vunpack.c.l.b16 %v2262
        %v3559 = vunpack.c.h.b16 %v2262
        %v3560 = vunpack.c.l.b16 %v2263
        %v3561 = vunpack.c.l.b16 %v2264
        %v3562 = vunpack.c.h.b16 %v2264
        %v3563 = vunpack.c.l.b16 %v2265
        %v3564 = vunpack.c.l.b16 %v2266
        %v3565 = vunpack.c.h.b16 %v2266
        %v3566 = vunpack.c.l.b16 %v2267
        %v3567 = vunpack.c.l.b16 %v2268
        %v3568 = vunpack.c.h.b16 %v2268
        %v3569 = vunpack.c.l.b16 %v2269
        %v3570 = vunpack.c.l.b16 %v2270
        %v3571 = vunpack.c.h.b16 %v2270
        %v3572 = vunpack.c.l.b16 %v2271
        %v3573 = vunpack.c.l.b16 %v2272
        %v3574 = vunpack.c.h.b16 %v2272
        %v3575 = vunpack.c.l.b16 %v2273
        %v3576 = vunpack.c.l.b16 %v2274
        %v3577 = vunpack.c.h.b16 %v2274
        %v3578 = vunpack.c.l.b16 %v2275
        %v3579 = vunpack.c.l.b16 %v2276
        %v3580 = vunpack.c.h.b16 %v2276
        %v3581 = vunpack.c.l.b16 %v2277
        %v3582 = vunpack.c.l.b16 %v2278
        %v3583 = vunpack.c.h.b16 %v2278
        %v3584 = vunpack.c.l.b16 %v2279
        %v3585 = vunpack.c.l.b16 %v2280
        %v3586 = vunpack.c.h.b16 %v2280
        %v3587 = vunpack.c.l.b16 %v2281
        %v3588 = vunpack.c.l.b16 %v2282
        %v3589 = vunpack.c.h.b16 %v2282
        %v3590 = vunpack.c.l.b16 %v2283
        %v3591 = vunpack.c.l.b16 %v2284
        %v3592 = vunpack.c.h.b16 %v2284
        %v3593 = vunpack.c.l.b16 %v2285
        %v3594 = vunpack.c.l.b16 %v2286
        %v3595 = vunpack.c.h.b16 %v2286
        %v3596 = vunpack.c.l.b16 %v2287
        %v3597 = vunpack.c.l.b16 %v2288
        %v3598 = vunpack.c.h.b16 %v2288
        %v3599 = vunpack.c.l.b16 %v2289
        %v3600 = vunpack.c.l.b16 %v2290
        %v3601 = vunpack.c.h.b16 %v2290
        %v3602 = vunpack.c.l.b16 %v2291
        %v3603 = vunpack.c.l.b16 %v2292
        %v3604 = vunpack.c.h.b16 %v2292
        %v3605 = vunpack.c.l.b16 %v2293
        %v3606 = vunpack.c.l.b16 %v2294
        %v3607 = vunpack.c.h.b16 %v2294
        %v3608 = vunpack.c.l.b16 %v2295
        %v3609 = vunpack.c.l.b16 %v2296
        %v3610 = vunpack.c.h.b16 %v2296
        %v3611 = vunpack.c.l.b16 %v2297
        %v3612 = vunpack.c.l.b16 %v2298
        %v3613 = vunpack.c.h.b16 %v2298
        %v3614 = vunpack.c.l.b16 %v2299
        %v3615 = vunpack.c.l.b16 %v2300
        %v3616 = vunpack.c.h.b16 %v2300
        %v3617 = vunpack.c.l.b16 %v2301
        %v3618 = vunpack.c.l.b16 %v2302
        %v3619 = vunpack.c.h.b16 %v2302
        %v3620 = vunpack.c.l.b16 %v2303
        %v3621 = vunpack.c.l.b16 %v2304
        %v3622 = vunpack.c.h.b16 %v2304
        %v3623 = vunpack.c.l.b16 %v2305
        %v3624 = vunpack.c.l.b16 %v2306
        %v3625 = vunpack.c.h.b16 %v2306
        %v3626 = vunpack.c.l.b16 %v2307
        %v3627 = vunpack.c.l.b16 %v2308
        %v3628 = vunpack.c.h.b16 %v2308
        %v3629 = vunpack.c.l.b16 %v2309
        %v3630 = vunpack.c.l.b16 %v2310
        %v3631 = vunpack.c.h.b16 %v2310
        %v3632 = vunpack.c.l.b16 %v2311
        %v3633 = vunpack.c.l.b16 %v2312
        %v3634 = vunpack.c.h.b16 %v2312
        %v3635 = vunpack.c.l.b16 %v2313
        %v3636 = vunpack.c.l.b16 %v2314
        %v3637 = vunpack.c.h.b16 %v2314
        %v3638 = vunpack.c.l.b16 %v2315
        %v3639 = vunpack.c.l.b16 %v2316
        %v3640 = vunpack.c.h.b16 %v2316
        %v3641 = vunpack.c.l.b16 %v2317
        %v3642 = vunpack.c.l.b16 %v2318
        %v3643 = vunpack.c.h.b16 %v2318
        %v3644 = vunpack.c.l.b16 %v2319
        %v3645 = vunpack.c.l.b16 %v2320
        %v3646 = vunpack.c.h.b16 %v2320
        %v3647 = vunpack.c.l.b16 %v2321
        %v3648 = vunpack.c.l.b16 %v2322
        %v3649 = vunpack.c.h.b16 %v2322
        %v3650 = vunpack.c.l.b16 %v2323
        %v3651 = vunpack.c.l.b16 %v2324
        %v3652 = vunpack.c.h.b16 %v2324
        %v3653 = vunpack.c.l.b16 %v2325
        %v3654 = vunpack.c.l.b16 %v2326
        %v3655 = vunpack.c.h.b16 %v2326
        %v3656 = vunpack.c.l.b16 %v2327
        %v3657 = vunpack.c.l.b16 %v2328
        %v3658 = vunpack.c.h.b16 %v2328
        %v3659 = vunpack.c.l.b16 %v2329
        %v3660 = vunpack.c.l.b16 %v2330
        %v3661 = vunpack.c.h.b16 %v2330
        %v3662 = vunpack.c.l.b16 %v2331
        %v3663 = vunpack.c.l.b16 %v2332
        %v3664 = vunpack.c.h.b16 %v2332
        %v3665 = vunpack.c.l.b16 %v2333
        %v3666 = vunpack.c.l.b16 %v2334
        %v3667 = vunpack.c.h.b16 %v2334
        %v3668 = vunpack.c.l.b16 %v2335
        %v3669 = vunpack.c.l.b16 %v2336
        %v3670 = vunpack.c.h.b16 %v2336
        %v3671 = vunpack.c.l.b16 %v2337
        %v3672 = vunpack.c.l.b16 %v2338
        %v3673 = vunpack.c.h.b16 %v2338
        %v3674 = vunpack.c.l.b16 %v2339
        %v3675 = vunpack.c.l.b16 %v2340
        %v3676 = vunpack.c.h.b16 %v2340
        %v3677 = vunpack.c.l.b16 %v2341
        %v3678 = vunpack.c.l.b16 %v2342
        %v3679 = vunpack.c.h.b16 %v2342
        %v3680 = vunpack.c.l.b16 %v2343
        %v3681 = vunpack.c.l.b16 %v2344
        %v3682 = vunpack.c.h.b16 %v2344
        %v3683 = vunpack.c.l.b16 %v2345
        %v3684 = vunpack.c.l.b16 %v2346
        %v3685 = vunpack.c.h.b16 %v2346
        %v3686 = vunpack.c.l.b16 %v2347
        %v3687 = vunpack.c.l.b16 %v2348
        %v3688 = vunpack.c.h.b16 %v2348
        %v3689 = vunpack.c.l.b16 %v2349
        %v3690 = vunpack.c.l.b16 %v2350
        %v3691 = vunpack.c.h.b16 %v2350
        %v3692 = vunpack.c.l.b16 %v2351
        %v3693 = vunpack.c.l.b16 %v2352
        %v3694 = vunpack.c.h.b16 %v2352
        %v3695 = vunpack.c.l.b16 %v2353
        %v3696 = vunpack.c.l.b16 %v2354
        %v3697 = vunpack.c.h.b16 %v2354
        %v3698 = vunpack.c.l.b16 %v2355
        %v3699 = vunpack.c.l.b16 %v2356
        %v3700 = vunpack.c.h.b16 %v2356
        %v3701 = vunpack.c.l.b16 %v2357
        %v3702 = vunpack.c.l.b16 %v2358
        %v3703 = vunpack.c.h.b16 %v2358
        %v3704 = vunpack.c.l.b16 %v2359
        %v3705 = vunpack.c.l.b16 %v2360
        %v3706 = vunpack.c.h.b16 %v2360
        %v3707 = vunpack.c.l.b16 %v2361
        %v3708 = vunpack.c.l.b16 %v2362
        %v3709 = vunpack.c.h.b16 %v2362
        %v3710 = vunpack.c.l.b16 %v2363
        %v3711 = vunpack.c.l.b16 %v2364
        %v3712 = vunpack.c.h.b16 %v2364
        %v3713 = vunpack.c.l.b16 %v2365
        %v3714 = vunpack.c.l.b16 %v2366
        %v3715 = vunpack.c.h.b16 %v2366
        %v3716 = vunpack.c.l.b16 %v2367
        %v3717 = vunpack.c.l.b16 %v2368
        %v3718 = vunpack.c.h.b16 %v2368
        %v3719 = vunpack.c.l.b16 %v2369
        %v3720 = vunpack.c.l.b16 %v2370
        %v3721 = vunpack.c.h.b16 %v2370
        %v3722 = vunpack.c.l.b16 %v2371
        %v3723 = vunpack.c.l.b16 %v2372
        %v3724 = vunpack.c.h.b16 %v2372
        %v3725 = vunpack.c.l.b16 %v2373
        %v3726 = vunpack.c.l.b16 %v2374
        %v3727 = vunpack.c.h.b16 %v2374
        %v3728 = vunpack.c.l.b16 %v2375
        %v3729 = vunpack.c.l.b16 %v2376
        %v3730 = vunpack.c.h.b16 %v2376
        %v3731 = vunpack.c.l.b16 %v2377
        %v3732 = vunpack.c.l.b16 %v2378
        %v3733 = vunpack.c.h.b16 %v2378
        %v3734 = vunpack.c.l.b16 %v2379
        %v3735 = vunpack.c.l.b16 %v2380
        %v3736 = vunpack.c.h.b16 %v2380
        %v3737 = vunpack.c.l.b16 %v2381
        %v3738 = vunpack.c.l.b16 %v2382
        %v3739 = vunpack.c.h.b16 %v2382
        %v3740 = vunpack.c.l.b16 %v2383
        %v3741 = vunpack.c.l.b16 %v2384
        %v3742 = vunpack.c.h.b16 %v2384
        %v3743 = vunpack.c.l.b16 %v2385
        %v3744 = vunpack.c.l.b16 %v2386
        %v3745 = vunpack.c.h.b16 %v2386
        %v3746 = vunpack.c.l.b16 %v2387
        %v3747 = vunpack.c.l.b16 %v2388
        %v3748 = vunpack.c.h.b16 %v2388
        %v3749 = vunpack.c.l.b16 %v2389
        %v3750 = vunpack.c.l.b16 %v2390
        %v3751 = vunpack.c.h.b16 %v2390
        %v3752 = vunpack.c.l.b16 %v2391
        %v3753 = vunpack.c.l.b16 %v2392
        %v3754 = vunpack.c.h.b16 %v2392
        %v3755 = vunpack.c.l.b16 %v2393
        %v3756 = vunpack.c.l.b16 %v2394
        %v3757 = vunpack.c.h.b16 %v2394
        %v3758 = vunpack.c.l.b16 %v2395
        %v3759 = vunpack.c.l.b16 %v2396
        %v3760 = vunpack.c.h.b16 %v2396
        %v3761 = vunpack.c.l.b16 %v2397
        %v3762 = vunpack.c.l.b16 %v2398
        %v3763 = vunpack.c.h.b16 %v2398
        %v3764 = vunpack.c.l.b16 %v2399
        %v3765 = vunpack.c.l.b16 %v2400
        %v3766 = vunpack.c.h.b16 %v2400
        %v3767 = vunpack.c.l.b16 %v2401
        %v3768 = vunpack.c.l.b16 %v2402
        %v3769 = vunpack.c.h.b16 %v2402
        %v3770 = vunpack.c.l.b16 %v2403
        %v3771 = vunpack.c.l.b16 %v2404
        %v3772 = vunpack.c.h.b16 %v2404
        %v3773 = vunpack.c.l.b16 %v2405
        %v3774 = vunpack.c.l.b16 %v2406
        %v3775 = vunpack.c.h.b16 %v2406
        %v3776 = vunpack.c.l.b16 %v2407
        %v3777 = vunpack.c.l.b16 %v2408
        %v3778 = vunpack.c.h.b16 %v2408
        %v3779 = vunpack.c.l.b16 %v2409
        %v3780 = vunpack.c.l.b16 %v2410
        %v3781 = vunpack.c.h.b16 %v2410
        %v3782 = vunpack.c.l.b16 %v2411
        %v3783 = vunpack.c.l.b16 %v2412
        %v3784 = vunpack.c.h.b16 %v2412
        %v3785 = vunpack.c.l.b16 %v2413
        %v3786 = vunpack.c.l.b16 %v2414
        %v3787 = vunpack.c.h.b16 %v2414
        %v3788 = vunpack.c.l.b16 %v2415
        %v3789 = vunpack.c.l.b16 %v2416
        %v3790 = vunpack.c.h.b16 %v2416
        %v3791 = vunpack.c.l.b16 %v2417
        %v3792 = vunpack.c.l.b16 %v2418
        %v3793 = vunpack.c.h.b16 %v2418
        %v3794 = vunpack.c.l.b16 %v2419
        %v3795 = vunpack.c.l.b16 %v2420
        %v3796 = vunpack.c.h.b16 %v2420
        %v3797 = vunpack.c.l.b16 %v2421
        %v3798 = vunpack.c.l.b16 %v2422
        %v3799 = vunpack.c.h.b16 %v2422
        %v3800 = vunpack.c.l.b16 %v2423
        %v3801 = vunpack.c.l.b16 %v2424
        %v3802 = vunpack.c.h.b16 %v2424
        %v3803 = vunpack.c.l.b16 %v2425
        %v3804 = vunpack.c.l.b16 %v2426
        %v3805 = vunpack.c.h.b16 %v2426
        %v3806 = vunpack.c.l.b16 %v2427
        %v3807 = vunpack.c.l.b16 %v2428
        %v3808 = vunpack.c.h.b16 %v2428
        %v3809 = vunpack.c.l.b16 %v2429
        %v3810 = vunpack.c.l.b16 %v2430
        %v3811 = vunpack.c.h.b16 %v2430
        %v3812 = vunpack.c.l.b16 %v2431
        %v3813 = vunpack.c.l.b16 %v2432
        %v3814 = vunpack.c.h.b16 %v2432
        %v3815 = vunpack.c.l.b16 %v2433
        %v3816 = vunpack.c.l.b16 %v2434
        %v3817 = vunpack.c.h.b16 %v2434
        %v3818 = vunpack.c.l.b16 %v2435
        %v3819 = vunpack.c.l.b16 %v2436
        %v3820 = vunpack.c.h.b16 %v2436
        %v3821 = vunpack.c.l.b16 %v2437
        %v3822 = vunpack.c.l.b16 %v2438
        %v3823 = vunpack.c.h.b16 %v2438
        %v3824 = vunpack.c.l.b16 %v2439
        %v3825 = vunpack.c.l.b16 %v2440
        %v3826 = vunpack.c.h.b16 %v2440
        %v3827 = vunpack.c.l.b16 %v2441
        %v3828 = vunpack.c.l.b16 %v2442
        %v3829 = vunpack.c.h.b16 %v2442
        %v3830 = vunpack.c.l.b16 %v2443
        %v3831 = vunpack.c.l.b16 %v2444
        %v3832 = vunpack.c.h.b16 %v2444
        %v3833 = vunpack.c.l.b16 %v2445
        %v3834 = vunpack.c.l.b16 %v2446
        %v3835 = vunpack.c.h.b16 %v2446
        %v3836 = vunpack.c.l.b16 %v2447
        %v3837 = vunpack.c.l.b16 %v2448
        %v3838 = vunpack.c.h.b16 %v2448
        %v3839 = vunpack.c.l.b16 %v2449
        %v3840 = vunpack.c.l.b16 %v2450
        %v3841 = vunpack.c.h.b16 %v2450
        %v3842 = vunpack.c.l.b16 %v2451
        %v3843 = vunpack.c.l.b16 %v2452
        %v3844 = vunpack.c.h.b16 %v2452
        %v3845 = vunpack.c.l.b16 %v2453
        %v3846 = vunpack.c.l.b16 %v2454
        %v3847 = vunpack.c.h.b16 %v2454
        %v3848 = vunpack.c.l.b16 %v2455
        %v3849 = vunpack.c.l.b16 %v2456
        %v3850 = vunpack.c.h.b16 %v2456
        %v3851 = vunpack.c.l.b16 %v2457
        %v3852 = vunpack.c.l.b16 %v2458
        %v3853 = vunpack.c.h.b16 %v2458
        %v3854 = vunpack.c.l.b16 %v2459
        %v3855 = vunpack.c.l.b16 %v2460
        %v3856 = vunpack.c.h.b16 %v2460
        %v3857 = vunpack.c.l.b16 %v2461
        %v3858 = vunpack.c.l.b16 %v2462
        %v3859 = vunpack.c.h.b16 %v2462
        %v3860 = vunpack.c.l.b16 %v2463
        %v3861 = vunpack.c.l.b16 %v2464
        %v3862 = vunpack.c.h.b16 %v2464
        %v3863 = vunpack.c.l.b16 %v2465
        %v3864 = vunpack.c.l.b16 %v2466
        %v3865 = vunpack.c.h.b16 %v2466
        %v3866 = vunpack.c.l.b16 %v2467
        %v3867 = vunpack.c.l.b16 %v2468
        %v3868 = vunpack.c.h.b16 %v2468
        %v3869 = vunpack.c.l.b16 %v2469
        %v3870 = vunpack.c.l.b16 %v2470
        %v3871 = vunpack.c.h.b16 %v2470
        %v3872 = vunpack.c.l.b16 %v2471
        %v3873 = vunpack.c.l.b16 %v2472
        %v3874 = vunpack.c.h.b16 %v2472
        %v3875 = vunpack.c.l.b16 %v2473
        %v3876 = vunpack.c.l.b16 %v2474
        %v3877 = vunpack.c.h.b16 %v2474
        %v3878 = vunpack.c.l.b16 %v2475
        %v3879 = vunpack.c.l.b16 %v2476
        %v3880 = vunpack.c.h.b16 %v2476
        %v3881 = vunpack.c.l.b16 %v2477
        %v3882 = vunpack.c.l.b16 %v2478
        %v3883 = vunpack.c.h.b16 %v2478
        %v3884 = vunpack.c.l.b16 %v2479
        %v3885 = vunpack.c.l.b16 %v2480
        %v3886 = vunpack.c.h.b16 %v2480
        %v3887 = vunpack.c.l.b16 %v2481
        %v3888 = vunpack.c.l.b16 %v2482
        %v3889 = vunpack.c.h.b16 %v2482
        %v3890 = vunpack.c.l.b16 %v2483
        %v3891 = vunpack.c.l.b16 %v2484
        %v3892 = vunpack.c.h.b16 %v2484
        %v3893 = vunpack.c.l.b16 %v2485
        %v3894 = vunpack.c.l.b16 %v2486
        %v3895 = vunpack.c.h.b16 %v2486
        %v3896 = vunpack.c.l.b16 %v2487
        %v3897 = vunpack.c.l.b16 %v2488
        %v3898 = vunpack.c.h.b16 %v2488
        %v3899 = vunpack.c.l.b16 %v2489
        %v3900 = vunpack.c.l.b16 %v2490
        %v3901 = vunpack.c.h.b16 %v2490
        %v3902 = vunpack.c.l.b16 %v2491
        %v3903 = vunpack.c.l.b16 %v2492
        %v3904 = vunpack.c.h.b16 %v2492
        %v3905 = vunpack.c.l.b16 %v2493
        %v3906 = vunpack.c.l.b16 %v2494
        %v3907 = vunpack.c.h.b16 %v2494
        %v3908 = vunpack.c.l.b16 %v2495
        %v3909 = vunpack.c.l.b16 %v2496
        %v3910 = vunpack.c.h.b16 %v2496
        %v3911 = vunpack.c.l.b16 %v2497
        %v3912 = vunpack.c.l.b16 %v2498
        %v3913 = vunpack.c.h.b16 %v2498
        %v3914 = vunpack.c.l.b16 %v2499
        %v3915 = vunpack.c.l.b16 %v2500
        %v3916 = vunpack.c.h.b16 %v2500
        %v3917 = vunpack.c.l.b16 %v2501
        %v3918 = vunpack.c.l.b16 %v2502
        %v3919 = vunpack.c.h.b16 %v2502
        %v3920 = vunpack.c.l.b16 %v2503
        %v3921 = vunpack.c.l.b16 %v2504
        %v3922 = vunpack.c.h.b16 %v2504
        %v3923 = vunpack.c.l.b16 %v2505
        %v3924 = vunpack.c.l.b16 %v2506
        %v3925 = vunpack.c.h.b16 %v2506
        %v3926 = vunpack.c.l.b16 %v2507
        %v3927 = vunpack.c.l.b16 %v2508
        %v3928 = vunpack.c.h.b16 %v2508
        %v3929 = vunpack.c.l.b16 %v2509
        %v3930 = vunpack.c.l.b16 %v2510
        %v3931 = vunpack.c.h.b16 %v2510
        %v3932 = vunpack.c.l.b16 %v2511
        %v3933 = vunpack.c.l.b16 %v2512
        %v3934 = vunpack.c.h.b16 %v2512
        %v3935 = vunpack.c.l.b16 %v2513
        %v3936 = vunpack.c.l.b16 %v2514
        %v3937 = vunpack.c.h.b16 %v2514
        %v3938 = vunpack.c.l.b16 %v2515
        %v3939 = vunpack.c.l.b16 %v2516
        %v3940 = vunpack.c.h.b16 %v2516
        %v3941 = vunpack.c.l.b16 %v2517
        %v3942 = vunpack.c.l.b16 %v2518
        %v3943 = vunpack.c.h.b16 %v2518
        %v3944 = vunpack.c.l.b16 %v2519
        %v3945 = vunpack.c.l.b16 %v2520
        %v3946 = vunpack.c.h.b16 %v2520
        %v3947 = vunpack.c.l.b16 %v2521
        %v3948 = vunpack.c.l.b16 %v2522
        %v3949 = vunpack.c.h.b16 %v2522
        %v3950 = vunpack.c.l.b16 %v2523
        %v3951 = vunpack.c.l.b16 %v2524
        %v3952 = vunpack.c.h.b16 %v2524
        %v3953 = vunpack.c.l.b16 %v2525
        %v3954 = vunpack.c.l.b16 %v2526
        %v3955 = vunpack.c.h.b16 %v2526
        %v3956 = vunpack.c.l.b16 %v2527
        %v3957 = vunpack.c.l.b16 %v2528
        %v3958 = vunpack.c.h.b16 %v2528
        %v3959 = vunpack.c.l.b16 %v2529
        %v3960 = vunpack.c.l.b16 %v2530
        %v3961 = vunpack.c.h.b16 %v2530
        %v3962 = vunpack.c.l.b16 %v2531
        %v3963 = vunpack.c.l.b16 %v2532
        %v3964 = vunpack.c.h.b16 %v2532
        %v3965 = vunpack.c.l.b16 %v2533
        %v3966 = vunpack.c.l.b16 %v2534
        %v3967 = vunpack.c.h.b16 %v2534
        %v3968 = vunpack.c.l.b16 %v2535
        %v3969 = vunpack.c.l.b16 %v2536
        %v3970 = vunpack.c.h.b16 %v2536
        %v3971 = vunpack.c.l.b16 %v2537
        %v3972 = vunpack.c.l.b16 %v2538
        %v3973 = vunpack.c.h.b16 %v2538
        %v3974 = vunpack.c.l.b16 %v2539
        %v3975 = vunpack.c.l.b16 %v2540
        %v3976 = vunpack.c.h.b16 %v2540
        %v3977 = vunpack.c.l.b16 %v2541
        %v3978 = vunpack.c.l.b16 %v2542
        %v3979 = vunpack.c.h.b16 %v2542
        %v3980 = vunpack.c.l.b16 %v2543
        %v3981 = vunpack.c.l.b16 %v2544
        %v3982 = vunpack.c.h.b16 %v2544
        %v3983 = vunpack.c.l.b16 %v2545
        %v3984 = vunpack.c.l.b16 %v2546
        %v3985 = vunpack.c.h.b16 %v2546
        %v3986 = vunpack.c.l.b16 %v2547
        %v3987 = vunpack.c.l.b16 %v2548
        %v3988 = vunpack.c.h.b16 %v2548
        %v3989 = vunpack.c.l.b16 %v2549
        %v3990 = vunpack.c.l.b16 %v2550
        %v3991 = vunpack.c.h.b16 %v2550
        %v3992 = vunpack.c.l.b16 %v2551
        %v3993 = vunpack.c.l.b16 %v2552
        %v3994 = vunpack.c.h.b16 %v2552
        %v3995 = vunpack.c.l.b16 %v2553
        %v3996 = vunpack.c.l.b16 %v2554
        %v3997 = vunpack.c.h.b16 %v2554
        %v3998 = vunpack.c.l.b16 %v2555
        %v3999 = vunpack.c.l.b16 %v2556
        %v4000 = vunpack.c.h.b16 %v2556
        %v4001 = vunpack.c.l.b16 %v2557
        %v4002 = vunpack.c.l.b16 %v2558
        %v4003 = vunpack.c.h.b16 %v2558
        %v4004 = vunpack.c.l.b16 %v2559
        %v4005 = vunpack.c.l.b16 %v2560
        %v4006 = vunpack.c.h.b16 %v2560
        %v4007 = vunpack.c.l.b16 %v2561
        %v4008 = vunpack.c.l.b16 %v2562
        %v4009 = vunpack.c.h.b16 %v2562
        %v4010 = vunpack.c.l.b16 %v2563
        %v4011 = vunpack.c.l.b16 %v2564
        %v4012 = vunpack.c.h.b16 %v2564
        %v4013 = vunpack.c.l.b16 %v2565
        %v4014 = vunpack.c.l.b16 %v2566
        %v4015 = vunpack.c.h.b16 %v2566
        %v4016 = vunpack.c.l.b16 %v2567
        %v4017 = vunpack.c.l.b16 %v2568
        %v4018 = vunpack.c.h.b16 %v2568
        %v4019 = vunpack.c.l.b16 %v2569
        %v4020 = vunpack.c.l.b16 %v2570
        %v4021 = vunpack.c.h.b16 %v2570
        %v4022 = vunpack.c.l.b16 %v2571
        %v4023 = vunpack.c.l.b16 %v2572
        %v4024 = vunpack.c.h.b16 %v2572
        %v4025 = vunpack.c.l.b16 %v2573
        %v4026 = vunpack.c.l.b16 %v2574
        %v4027 = vunpack.c.h.b16 %v2574
        %v4028 = vunpack.c.l.b16 %v2575
        %v4029 = vunpack.c.l.b16 %v2576
        %v4030 = vunpack.c.h.b16 %v2576
        %v4031 = vunpack.c.l.b16 %v2577
        %v4032 = vunpack.c.l.b16 %v2578
        %v4033 = vunpack.c.h.b16 %v2578
        %v4034 = vunpack.c.l.b16 %v2579
        %v4035 = vunpack.c.l.b16 %v2580
        %v4036 = vunpack.c.h.b16 %v2580
        %v4037 = vunpack.c.l.b16 %v2581
        %v4038 = vunpack.c.l.b16 %v2582
        %v4039 = vunpack.c.h.b16 %v2582
        %v4040 = vunpack.c.l.b16 %v2583
        %v4041 = vunpack.c.l.b16 %v2584
        %v4042 = vunpack.c.h.b16 %v2584
        %v4043 = vunpack.c.l.b16 %v2585
        %v4044 = vunpack.c.l.b16 %v2586
        %v4045 = vunpack.c.h.b16 %v2586
        %v4046 = vunpack.c.l.b16 %v2587
        %v4047 = vunpack.c.l.b16 %v2588
        %v4048 = vunpack.c.h.b16 %v2588
        %v4049 = vunpack.c.l.b16 %v2589
        %v4050 = vunpack.c.l.b16 %v2590
        %v4051 = vunpack.c.h.b16 %v2590
        %v4052 = vunpack.c.l.b16 %v2591
        %v4053 = vunpack.c.l.b16 %v2592
        %v4054 = vunpack.c.h.b16 %v2592
        %v4055 = vunpack.c.l.b16 %v2593
        %v4056 = vunpack.c.l.b16 %v2594
        %v4057 = vunpack.c.h.b16 %v2594
        %v4058 = vunpack.c.l.b16 %v2595
        %v4059 = vunpack.c.l.b16 %v2596
        %v4060 = vunpack.c.h.b16 %v2596
        %v4061 = vunpack.c.l.b16 %v2597
        %v4062 = vunpack.c.l.b16 %v2598
        %v4063 = vunpack.c.h.b16 %v2598
        %v4064 = vunpack.c.l.b16 %v2599
        %v4065 = vunpack.c.l.b16 %v2600
        %v4066 = vunpack.c.h.b16 %v2600
        %v4067 = vunpack.c.l.b16 %v2601
        %v4068 = vunpack.c.l.b16 %v2602
        %v4069 = vunpack.c.h.b16 %v2602
        %v4070 = vunpack.c.l.b16 %v2603
        %v4071 = vunpack.c.l.b16 %v2604
        %v4072 = vunpack.c.h.b16 %v2604
        %v4073 = vunpack.c.l.b16 %v2605
        %v4074 = vunpack.c.l.b16 %v2606
        %v4075 = vunpack.c.h.b16 %v2606
        %v4076 = vunpack.c.l.b16 %v2607
        %v4077 = vunpack.c.l.b16 %v2608
        %v4078 = vunpack.c.h.b16 %v2608
        %v4079 = vunpack.c.l.b16 %v2609
        %v4080 = vunpack.c.l.b16 %v2610
        %v4081 = vunpack.c.h.b16 %v2610
        %v4082 = vunpack.c.l.b16 %v2611
        %v4083 = vunpack.c.l.b16 %v2612
        %v4084 = vunpack.c.h.b16 %v2612
        %v4085 = vunpack.c.l.b16 %v2613
        %v4086 = vunpack.c.l.b16 %v2614
        %v4087 = vunpack.c.h.b16 %v2614
        %v4088 = vunpack.c.l.b16 %v2615
        %v4089 = vunpack.c.l.b16 %v2616
        %v4090 = vunpack.c.h.b16 %v2616
        %v4091 = vunpack.c.l.b16 %v2617
        %v4092 = vunpack.c.l.b16 %v2618
        %v4093 = vunpack.c.h.b16 %v2618
        %v4094 = vunpack.c.l.b16 %v2619
        %v4095 = vunpack.c.l.b16 %v2620
        %v4096 = vunpack.c.h.b16 %v2620
        %v4097 = vunpack.c.l.b16 %v2621
        %v4098 = vunpack.c.l.b16 %v2622
        %v4099 = vunpack.c.h.b16 %v2622
        %v4100 = vunpack.c.l.b16 %v2623
        %v4101 = vunpack.c.l.b16 %v2624
        %v4102 = vunpack.c.h.b16 %v2624
        %v4103 = vunpack.c.l.b16 %v2625
        %v4104 = vunpack.c.l.b16 %v2626
        %v4105 = vunpack.c.h.b16 %v2626
        %v4106 = vunpack.c.l.b16 %v2627
        %v4107 = vunpack.c.l.b16 %v2628
        %v4108 = vunpack.c.h.b16 %v2628
        %v4109 = vunpack.c.l.b16 %v2629
        %v4110 = vunpack.c.l.b16 %v2630
        %v4111 = vunpack.c.h.b16 %v2630
        %v4112 = vunpack.c.l.b16 %v2631
        %v4113 = vunpack.c.l.b16 %v2632
        %v4114 = vunpack.c.h.b16 %v2632
        %v4115 = vunpack.c.l.b16 %v2633
        %v4116 = vunpack.c.l.b16 %v2634
        %v4117 = vunpack.c.h.b16 %v2634
        %v4118 = vunpack.c.l.b16 %v2635
        %v4119 = vunpack.c.l.b16 %v2636
        %v4120 = vunpack.c.h.b16 %v2636
        %v4121 = vunpack.c.l.b16 %v2637
        %v4122 = vunpack.c.l.b16 %v2638
        %v4123 = vunpack.c.h.b16 %v2638
        %v4124 = vunpack.c.l.b16 %v2639
        %v4125 = vunpack.c.l.b16 %v2640
        %v4126 = vunpack.c.h.b16 %v2640
        %v4127 = vunpack.c.l.b16 %v2641
        %v4128 = vunpack.c.l.b16 %v2642
        %v4129 = vunpack.c.h.b16 %v2642
        %v4130 = vunpack.c.l.b16 %v2643
        %v4131 = vunpack.c.l.b16 %v2644
        %v4132 = vunpack.c.h.b16 %v2644
        %v4133 = vunpack.c.l.b16 %v2645
        %v4134 = vunpack.c.l.b16 %v2646
        %v4135 = vunpack.c.h.b16 %v2646
        %v4136 = vunpack.c.l.b16 %v2647
        %v4137 = vunpack.c.l.b16 %v2648
        %v4138 = vunpack.c.h.b16 %v2648
        %v4139 = vunpack.c.l.b16 %v2649
        %v4140 = vunpack.c.l.b16 %v2650
        %v4141 = vunpack.c.h.b16 %v2650
        %v4142 = vunpack.c.l.b16 %v2651
        %v4143 = vunpack.c.l.b16 %v2652
        %v4144 = vunpack.c.h.b16 %v2652
        %v4145 = vunpack.c.l.b16 %v2653
        %v4146 = vunpack.c.l.b16 %v2654
        %v4147 = vunpack.c.h.b16 %v2654
        %v4148 = vunpack.c.l.b16 %v2655
        %v4149 = vunpack.c.l.b16 %v2656
        %v4150 = vunpack.c.h.b16 %v2656
        %v4151 = vunpack.c.l.b16 %v2657
        %v4152 = vunpack.c.l.b16 %v2658
        %v4153 = vunpack.c.h.b16 %v2658
        %v4154 = vunpack.c.l.b16 %v2659
        %v4155 = vunpack.c.l.b16 %v2660
        %v4156 = vunpack.c.h.b16 %v2660
        %v4157 = vunpack.c.l.b16 %v2661
        %v4158 = vunpack.c.l.b16 %v2662
        %v4159 = vunpack.c.h.b16 %v2662
        %v4160 = vunpack.c.l.b16 %v2663
        %v4161 = vpack.c.b16 %v3324, %v3321
        %v4162 = vpack.c.b16 %v3325, %v3322
        %v4163 = vpack.c.b16 %v3326, %v3323
        %v4164 = vpack.c.b16 %v3330, %v3327
        %v4165 = vpack.c.b16 %v3331, %v3328
        %v4166 = vpack.c.b16 %v3332, %v3329
        %v4167 = vpack.c.b16 %v3336, %v3333
        %v4168 = vpack.c.b16 %v3337, %v3334
        %v4169 = vpack.c.b16 %v3338, %v3335
        %v4170 = vpack.c.b16 %v3342, %v3339
        %v4171 = vpack.c.b16 %v3343, %v3340
        %v4172 = vpack.c.b16 %v3344, %v3341
        %v4173 = vpack.c.b16 %v3348, %v3345
        %v4174 = vpack.c.b16 %v3349, %v3346
        %v4175 = vpack.c.b16 %v3350, %v3347
        %v4176 = vpack.c.b16 %v3354, %v3351
        %v4177 = vpack.c.b16 %v3355, %v3352
        %v4178 = vpack.c.b16 %v3356, %v3353
        %v4179 = vpack.c.b16 %v3360, %v3357
        %v4180 = vpack.c.b16 %v3361, %v3358
        %v4181 = vpack.c.b16 %v3362, %v3359
        %v4182 = vpack.c.b16 %v3366, %v3363
        %v4183 = vpack.c.b16 %v3367, %v3364
        %v4184 = vpack.c.b16 %v3368, %v3365
        %v4185 = vpack.c.b16 %v3372, %v3369
        %v4186 = vpack.c.b16 %v3373, %v3370
        %v4187 = vpack.c.b16 %v3374, %v3371
        %v4188 = vpack.c.b16 %v3378, %v3375
        %v4189 = vpack.c.b16 %v3379, %v3376
        %v4190 = vpack.c.b16 %v3380, %v3377
        %v4191 = vpack.c.b16 %v3384, %v3381
        %v4192 = vpack.c.b16 %v3385, %v3382
        %v4193 = vpack.c.b16 %v3386, %v3383
        %v4194 = vpack.c.b16 %v3390, %v3387
        %v4195 = vpack.c.b16 %v3391, %v3388
        %v4196 = vpack.c.b16 %v3392, %v3389
        %v4197 = vpack.c.b16 %v3396, %v3393
        %v4198 = vpack.c.b16 %v3397, %v3394
        %v4199 = vpack.c.b16 %v3398, %v3395
        %v4200 = vpack.c.b16 %v3402, %v3399
        %v4201 = vpack.c.b16 %v3403, %v3400
        %v4202 = vpack.c.b16 %v3404, %v3401
        %v4203 = vpack.c.b16 %v3408, %v3405
        %v4204 = vpack.c.b16 %v3409, %v3406
        %v4205 = vpack.c.b16 %v3410, %v3407
        %v4206 = vpack.c.b16 %v3414, %v3411
        %v4207 = vpack.c.b16 %v3415, %v3412
        %v4208 = vpack.c.b16 %v3416, %v3413
        %v4209 = vpack.c.b16 %v3420, %v3417
        %v4210 = vpack.c.b16 %v3421, %v3418
        %v4211 = vpack.c.b16 %v3422, %v3419
        %v4212 = vpack.c.b16 %v3426, %v3423
        %v4213 = vpack.c.b16 %v3427, %v3424
        %v4214 = vpack.c.b16 %v3428, %v3425
        %v4215 = vpack.c.b16 %v3432, %v3429
        %v4216 = vpack.c.b16 %v3433, %v3430
        %v4217 = vpack.c.b16 %v3434, %v3431
        %v4218 = vpack.c.b16 %v3438, %v3435
        %v4219 = vpack.c.b16 %v3439, %v3436
        %v4220 = vpack.c.b16 %v3440, %v3437
        %v4221 = vpack.c.b16 %v3444, %v3441
        %v4222 = vpack.c.b16 %v3445, %v3442
        %v4223 = vpack.c.b16 %v3446, %v3443
        %v4224 = vpack.c.b16 %v3450, %v3447
        %v4225 = vpack.c.b16 %v3451, %v3448
        %v4226 = vpack.c.b16 %v3452, %v3449
        %v4227 = vpack.c.b16 %v3456, %v3453
        %v4228 = vpack.c.b16 %v3457, %v3454
        %v4229 = vpack.c.b16 %v3458, %v3455
        %v4230 = vpack.c.b16 %v3462, %v3459
        %v4231 = vpack.c.b16 %v3463, %v3460
        %v4232 = vpack.c.b16 %v3464, %v3461
        %v4233 = vpack.c.b16 %v3468, %v3465
        %v4234 = vpack.c.b16 %v3469, %v3466
        %v4235 = vpack.c.b16 %v3470, %v3467
        %v4236 = vpack.c.b16 %v3474, %v3471
        %v4237 = vpack.c.b16 %v3475, %v3472
        %v4238 = vpack.c.b16 %v3476, %v3473
        %v4239 = vpack.c.b16 %v3480, %v3477
        %v4240 = vpack.c.b16 %v3481, %v3478
        %v4241 = vpack.c.b16 %v3482, %v3479
        %v4242 = vpack.c.b16 %v3486, %v3483
        %v4243 = vpack.c.b16 %v3487, %v3484
        %v4244 = vpack.c.b16 %v3488, %v3485
        %v4245 = vpack.c.b16 %v3492, %v3489
        %v4246 = vpack.c.b16 %v3493, %v3490
        %v4247 = vpack.c.b16 %v3494, %v3491
        %v4248 = vpack.c.b16 %v3498, %v3495
        %v4249 = vpack.c.b16 %v3499, %v3496
        %v4250 = vpack.c.b16 %v3500, %v3497
        %v4251 = vpack.c.b16 %v3504, %v3501
        %v4252 = vpack.c.b16 %v3505, %v3502
        %v4253 = vpack.c.b16 %v3506, %v3503
        %v4254 = vpack.c.b16 %v3510, %v3507
        %v4255 = vpack.c.b16 %v3511, %v3508
        %v4256 = vpack.c.b16 %v3512, %v3509
        %v4257 = vpack.c.b16 %v3516, %v3513
        %v4258 = vpack.c.b16 %v3517, %v3514
        %v4259 = vpack.c.b16 %v3518, %v3515
        %v4260 = vpack.c.b16 %v3522, %v3519
        %v4261 = vpack.c.b16 %v3523, %v3520
        %v4262 = vpack.c.b16 %v3524, %v3521
        %v4263 = vpack.c.b16 %v3528, %v3525
        %v4264 = vpack.c.b16 %v3529, %v3526
        %v4265 = vpack.c.b16 %v3530, %v3527
        %v4266 = vpack.c.b16 %v3534, %v3531
        %v4267 = vpack.c.b16 %v3535, %v3532
        %v4268 = vpack.c.b16 %v3536, %v3533
        %v4269 = vpack.c.b16 %v3540, %v3537
        %v4270 = vpack.c.b16 %v3541, %v3538
        %v4271 = vpack.c.b16 %v3542, %v3539
        %v4272 = vpack.c.b16 %v3546, %v3543
        %v4273 = vpack.c.b16 %v3547, %v3544
        %v4274 = vpack.c.b16 %v3548, %v3545
        %v4275 = vpack.c.b16 %v3552, %v3549
        %v4276 = vpack.c.b16 %v3553, %v3550
        %v4277 = vpack.c.b16 %v3554, %v3551
        %v4278 = vpack.c.b16 %v3558, %v3555
        %v4279 = vpack.c.b16 %v3559, %v3556
        %v4280 = vpack.c.b16 %v3560, %v3557
        %v4281 = vpack.c.b16 %v3564, %v3561
        %v4282 = vpack.c.b16 %v3565, %v3562
        %v4283 = vpack.c.b16 %v3566, %v3563
        %v4284 = vpack.c.b16 %v3570, %v3567
        %v4285 = vpack.c.b16 %v3571, %v3568
        %v4286 = vpack.c.b16 %v3572, %v3569
        %v4287 = vpack.c.b16 %v3576, %v3573
        %v4288 = vpack.c.b16 %v3577, %v3574
        %v4289 = vpack.c.b16 %v3578, %v3575
        %v4290 = vpack.c.b16 %v3582, %v3579
        %v4291 = vpack.c.b16 %v3583, %v3580
        %v4292 = vpack.c.b16 %v3584, %v3581
        %v4293 = vpack.c.b16 %v3588, %v3585
        %v4294 = vpack.c.b16 %v3589, %v3586
        %v4295 = vpack.c.b16 %v3590, %v3587
        %v4296 = vpack.c.b16 %v3594, %v3591
        %v4297 = vpack.c.b16 %v3595, %v3592
        %v4298 = vpack.c.b16 %v3596, %v3593
        %v4299 = vpack.c.b16 %v3600, %v3597
        %v4300 = vpack.c.b16 %v3601, %v3598
        %v4301 = vpack.c.b16 %v3602, %v3599
        %v4302 = vpack.c.b16 %v3606, %v3603
        %v4303 = vpack.c.b16 %v3607, %v3604
        %v4304 = vpack.c.b16 %v3608, %v3605
        %v4305 = vpack.c.b16 %v3612, %v3609
        %v4306 = vpack.c.b16 %v3613, %v3610
        %v4307 = vpack.c.b16 %v3614, %v3611
        %v4308 = vpack.c.b16 %v3618, %v3615
        %v4309 = vpack.c.b16 %v3619, %v3616
        %v4310 = vpack.c.b16 %v3620, %v3617
        %v4311 = vpack.c.b16 %v3624, %v3621
        %v4312 = vpack.c.b16 %v3625, %v3622
        %v4313 = vpack.c.b16 %v3626, %v3623
        %v4314 = vpack.c.b16 %v3630, %v3627
        %v4315 = vpack.c.b16 %v3631, %v3628
        %v4316 = vpack.c.b16 %v3632, %v3629
        %v4317 = vpack.c.b16 %v3636, %v3633
        %v4318 = vpack.c.b16 %v3637, %v3634
        %v4319 = vpack.c.b16 %v3638, %v3635
        %v4320 = vpack.c.b16 %v3642, %v3639
        %v4321 = vpack.c.b16 %v3643, %v3640
        %v4322 = vpack.c.b16 %v3644, %v3641
        %v4323 = vpack.c.b16 %v3648, %v3645
        %v4324 = vpack.c.b16 %v3649, %v3646
        %v4325 = vpack.c.b16 %v3650, %v3647
        %v4326 = vpack.c.b16 %v3654, %v3651
        %v4327 = vpack.c.b16 %v3655, %v3652
        %v4328 = vpack.c.b16 %v3656, %v3653
        %v4329 = vpack.c.b16 %v3660, %v3657
        %v4330 = vpack.c.b16 %v3661, %v3658
        %v4331 = vpack.c.b16 %v3662, %v3659
        %v4332 = vpack.c.b16 %v3666, %v3663
        %v4333 = vpack.c.b16 %v3667, %v3664
        %v4334 = vpack.c.b16 %v3668, %v3665
        %v4335 = vpack.c.b16 %v3672, %v3669
        %v4336 = vpack.c.b16 %v3673, %v3670
        %v4337 = vpack.c.b16 %v3674, %v3671
        %v4338 = vpack.c.b16 %v3678, %v3675
        %v4339 = vpack.c.b16 %v3679, %v3676
        %v4340 = vpack.c.b16 %v3680, %v3677
        %v4341 = vpack.c.b16 %v3684, %v3681
        %v4342 = vpack.c.b16 %v3685, %v3682
        %v4343 = vpack.c.b16 %v3686, %v3683
        %v4344 = vpack.c.b16 %v3690, %v3687
        %v4345 = vpack.c.b16 %v3691, %v3688
        %v4346 = vpack.c.b16 %v3692, %v3689
        %v4347 = vpack.c.b16 %v3696, %v3693
        %v4348 = vpack.c.b16 %v3697, %v3694
        %v4349 = vpack.c.b16 %v3698, %v3695
        %v4350 = vpack.c.b16 %v3702, %v3699
        %v4351 = vpack.c.b16 %v3703, %v3700
        %v4352 = vpack.c.b16 %v3704, %v3701
        %v4353 = vpack.c.b16 %v3708, %v3705
        %v4354 = vpack.c.b16 %v3709, %v3706
        %v4355 = vpack.c.b16 %v3710, %v3707
        %v4356 = vpack.c.b16 %v3714, %v3711
        %v4357 = vpack.c.b16 %v3715, %v3712
        %v4358 = vpack.c.b16 %v3716, %v3713
        %v4359 = vpack.c.b16 %v3720, %v3717
        %v4360 = vpack.c.b16 %v3721, %v3718
        %v4361 = vpack.c.b16 %v3722, %v3719
        %v4362 = vpack.c.b16 %v3726, %v3723
        %v4363 = vpack.c.b16 %v3727, %v3724
        %v4364 = vpack.c.b16 %v3728, %v3725
        %v4365 = vpack.c.b16 %v3732, %v3729
        %v4366 = vpack.c.b16 %v3733, %v3730
        %v4367 = vpack.c.b16 %v3734, %v3731
        %v4368 = vpack.c.b16 %v3738, %v3735
        %v4369 = vpack.c.b16 %v3739, %v3736
        %v4370 = vpack.c.b16 %v3740, %v3737
        %v4371 = vpack.c.b16 %v3744, %v3741
        %v4372 = vpack.c.b16 %v3745, %v3742
        %v4373 = vpack.c.b16 %v3746, %v3743
        %v4374 = vpack.c.b16 %v3750, %v3747
        %v4375 = vpack.c.b16 %v3751, %v3748
        %v4376 = vpack.c.b16 %v3752, %v3749
        %v4377 = vpack.c.b16 %v3756, %v3753
        %v4378 = vpack.c.b16 %v3757, %v3754
        %v4379 = vpack.c.b16 %v3758, %v3755
        %v4380 = vpack.c.b16 %v3762, %v3759
        %v4381 = vpack.c.b16 %v3763, %v3760
        %v4382 = vpack.c.b16 %v3764, %v3761
        %v4383 = vpack.c.b16 %v3768, %v3765
        %v4384 = vpack.c.b16 %v3769, %v3766
        %v4385 = vpack.c.b16 %v3770, %v3767
        %v4386 = vpack.c.b16 %v3774, %v3771
        %v4387 = vpack.c.b16 %v3775, %v3772
        %v4388 = vpack.c.b16 %v3776, %v3773
        %v4389 = vpack.c.b16 %v3780, %v3777
        %v4390 = vpack.c.b16 %v3781, %v3778
        %v4391 = vpack.c.b16 %v3782, %v3779
        %v4392 = vpack.c.b16 %v3786, %v3783
        %v4393 = vpack.c.b16 %v3787, %v3784
        %v4394 = vpack.c.b16 %v3788, %v3785
        %v4395 = vpack.c.b16 %v3792, %v3789
        %v4396 = vpack.c.b16 %v3793, %v3790
        %v4397 = vpack.c.b16 %v3794, %v3791
        %v4398 = vpack.c.b16 %v3798, %v3795
        %v4399 = vpack.c.b16 %v3799, %v3796
        %v4400 = vpack.c.b16 %v3800, %v3797
        %v4401 = vpack.c.b16 %v3804, %v3801
        %v4402 = vpack.c.b16 %v3805, %v3802
        %v4403 = vpack.c.b16 %v3806, %v3803
        %v4404 = vpack.c.b16 %v3810, %v3807
        %v4405 = vpack.c.b16 %v3811, %v3808
        %v4406 = vpack.c.b16 %v3812, %v3809
        %v4407 = vpack.c.b16 %v3816, %v3813
        %v4408 = vpack.c.b16 %v3817, %v3814
        %v4409 = vpack.c.b16 %v3818, %v3815
        %v4410 = vpack.c.b16 %v3822, %v3819
        %v4411 = vpack.c.b16 %v3823, %v3820
        %v4412 = vpack.c.b16 %v3824, %v3821
        %v4413 = vpack.c.b16 %v3828, %v3825
        %v4414 = vpack.c.b16 %v3829, %v3826
        %v4415 = vpack.c.b16 %v3830, %v3827
        %v4416 = vpack.c.b16 %v3834, %v3831
        %v4417 = vpack.c.b16 %v3835, %v3832
        %v4418 = vpack.c.b16 %v3836, %v3833
        %v4419 = vpack.c.b16 %v3840, %v3837
        %v4420 = vpack.c.b16 %v3841, %v3838
        %v4421 = vpack.c.b16 %v3842, %v3839
        %v4422 = vpack.c.b16 %v3846, %v3843
        %v4423 = vpack.c.b16 %v3847, %v3844
        %v4424 = vpack.c.b16 %v3848, %v3845
        %v4425 = vpack.c.b16 %v3852, %v3849
        %v4426 = vpack.c.b16 %v3853, %v3850
        %v4427 = vpack.c.b16 %v3854, %v3851
        %v4428 = vpack.c.b16 %v3858, %v3855
        %v4429 = vpack.c.b16 %v3859, %v3856
        %v4430 = vpack.c.b16 %v3860, %v3857
        %v4431 = vpack.c.b16 %v3864, %v3861
        %v4432 = vpack.c.b16 %v3865, %v3862
        %v4433 = vpack.c.b16 %v3866, %v3863
        %v4434 = vpack.c.b16 %v3870, %v3867
        %v4435 = vpack.c.b16 %v3871, %v3868
        %v4436 = vpack.c.b16 %v3872, %v3869
        %v4437 = vpack.c.b16 %v3876, %v3873
        %v4438 = vpack.c.b16 %v3877, %v3874
        %v4439 = vpack.c.b16 %v3878, %v3875
        %v4440 = vpack.c.b16 %v3882, %v3879
        %v4441 = vpack.c.b16 %v3883, %v3880
        %v4442 = vpack.c.b16 %v3884, %v3881
        %v4443 = vpack.c.b16 %v3888, %v3885
        %v4444 = vpack.c.b16 %v3889, %v3886
        %v4445 = vpack.c.b16 %v3890, %v3887
        %v4446 = vpack.c.b16 %v3894, %v3891
        %v4447 = vpack.c.b16 %v3895, %v3892
        %v4448 = vpack.c.b16 %v3896, %v3893
        %v4449 = vpack.c.b16 %v3900, %v3897
        %v4450 = vpack.c.b16 %v3901, %v3898
        %v4451 = vpack.c.b16 %v3902, %v3899
        %v4452 = vpack.c.b16 %v3906, %v3903
        %v4453 = vpack.c.b16 %v3907, %v3904
        %v4454 = vpack.c.b16 %v3908, %v3905
        %v4455 = vpack.c.b16 %v3912, %v3909
        %v4456 = vpack.c.b16 %v3913, %v3910
        %v4457 = vpack.c.b16 %v3914, %v3911
        %v4458 = vpack.c.b16 %v3918, %v3915
        %v4459 = vpack.c.b16 %v3919, %v3916
        %v4460 = vpack.c.b16 %v3920, %v3917
        %v4461 = vpack.c.b16 %v3924, %v3921
        %v4462 = vpack.c.b16 %v3925, %v3922
        %v4463 = vpack.c.b16 %v3926, %v3923
        %v4464 = vpack.c.b16 %v3930, %v3927
        %v4465 = vpack.c.b16 %v3931, %v3928
        %v4466 = vpack.c.b16 %v3932, %v3929
        %v4467 = vpack.c.b16 %v3936, %v3933
        %v4468 = vpack.c.b16 %v3937, %v3934
        %v4469 = vpack.c.b16 %v3938, %v3935
        %v4470 = vpack.c.b16 %v3942, %v3939
        %v4471 = vpack.c.b16 %v3943, %v3940
        %v4472 = vpack.c.b16 %v3944, %v3941
        %v4473 = vpack.c.b16 %v3948, %v3945
        %v4474 = vpack.c.b16 %v3949, %v3946
        %v4475 = vpack.c.b16 %v3950, %v3947
        %v4476 = vpack.c.b16 %v3954, %v3951
        %v4477 = vpack.c.b16 %v3955, %v3952
        %v4478 = vpack.c.b16 %v3956, %v3953
        %v4479 = vpack.c.b16 %v3960, %v3957
        %v4480 = vpack.c.b16 %v3961, %v3958
        %v4481 = vpack.c.b16 %v3962, %v3959
        %v4482 = vpack.c.b16 %v3966, %v3963
        %v4483 = vpack.c.b16 %v3967, %v3964
        %v4484 = vpack.c.b16 %v3968, %v3965
        %v4485 = vpack.c.b16 %v3972, %v3969
        %v4486 = vpack.c.b16 %v3973, %v3970
        %v4487 = vpack.c.b16 %v3974, %v3971
        %v4488 = vpack.c.b16 %v3978, %v3975
        %v4489 = vpack.c.b16 %v3979, %v3976
        %v4490 = vpack.c.b16 %v3980, %v3977
        %v4491 = vpack.c.b16 %v3984, %v3981
        %v4492 = vpack.c.b16 %v3985, %v3982
        %v4493 = vpack.c.b16 %v3986, %v3983
        %v4494 = vpack.c.b16 %v3990, %v3987
        %v4495 = vpack.c.b16 %v3991, %v3988
        %v4496 = vpack.c.b16 %v3992, %v3989
        %v4497 = vpack.c.b16 %v3996, %v3993
        %v4498 = vpack.c.b16 %v3997, %v3994
        %v4499 = vpack.c.b16 %v3998, %v3995
        %v4500 = vpack.c.b16 %v4002, %v3999
        %v4501 = vpack.c.b16 %v4003, %v4000
        %v4502 = vpack.c.b16 %v4004, %v4001
        %v4503 = vpack.c.b16 %v4008, %v4005
        %v4504 = vpack.c.b16 %v4009, %v4006
        %v4505 = vpack.c.b16 %v4010, %v4007
        %v4506 = vpack.c.b16 %v4014, %v4011
        %v4507 = vpack.c.b16 %v4015, %v4012
        %v4508 = vpack.c.b16 %v4016, %v4013
        %v4509 = vpack.c.b16 %v4020, %v4017
        %v4510 = vpack.c.b16 %v4021, %v4018
        %v4511 = vpack.c.b16 %v4022, %v4019
        %v4512 = vpack.c.b16 %v4026, %v4023
        %v4513 = vpack.c.b16 %v4027, %v4024
        %v4514 = vpack.c.b16 %v4028, %v4025
        %v4515 = vpack.c.b16 %v4032, %v4029
        %v4516 = vpack.c.b16 %v4033, %v4030
        %v4517 = vpack.c.b16 %v4034, %v4031
        %v4518 = vpack.c.b16 %v4038, %v4035
        %v4519 = vpack.c.b16 %v4039, %v4036
        %v4520 = vpack.c.b16 %v4040, %v4037
        %v4521 = vpack.c.b16 %v4044, %v4041
        %v4522 = vpack.c.b16 %v4045, %v4042
        %v4523 = vpack.c.b16 %v4046, %v4043
        %v4524 = vpack.c.b16 %v4050, %v4047
        %v4525 = vpack.c.b16 %v4051, %v4048
        %v4526 = vpack.c.b16 %v4052, %v4049
        %v4527 = vpack.c.b16 %v4056, %v4053
        %v4528 = vpack.c.b16 %v4057, %v4054
        %v4529 = vpack.c.b16 %v4058, %v4055
        %v4530 = vpack.c.b16 %v4062, %v4059
        %v4531 = vpack.c.b16 %v4063, %v4060
        %v4532 = vpack.c.b16 %v4064, %v4061
        %v4533 = vpack.c.b16 %v4068, %v4065
        %v4534 = vpack.c.b16 %v4069, %v4066
        %v4535 = vpack.c.b16 %v4070, %v4067
        %v4536 = vpack.c.b16 %v4074, %v4071
        %v4537 = vpack.c.b16 %v4075, %v4072
        %v4538 = vpack.c.b16 %v4076, %v4073
        %v4539 = vpack.c.b16 %v4080, %v4077
        %v4540 = vpack.c.b16 %v4081, %v4078
        %v4541 = vpack.c.b16 %v4082, %v4079
        %v4542 = vpack.c.b16 %v4086, %v4083
        %v4543 = vpack.c.b16 %v4087, %v4084
        %v4544 = vpack.c.b16 %v4088, %v4085
        %v4545 = vpack.c.b16 %v4092, %v4089
        %v4546 = vpack.c.b16 %v4093, %v4090
        %v4547 = vpack.c.b16 %v4094, %v4091
        %v4548 = vpack.c.b16 %v4098, %v4095
        %v4549 = vpack.c.b16 %v4099, %v4096
        %v4550 = vpack.c.b16 %v4100, %v4097
        %v4551 = vpack.c.b16 %v4104, %v4101
        %v4552 = vpack.c.b16 %v4105, %v4102
        %v4553 = vpack.c.b16 %v4106, %v4103
        %v4554 = vpack.c.b16 %v4110, %v4107
        %v4555 = vpack.c.b16 %v4111, %v4108
        %v4556 = vpack.c.b16 %v4112, %v4109
        %v4557 = vpack.c.b16 %v4116, %v4113
        %v4558 = vpack.c.b16 %v4117, %v4114
        %v4559 = vpack.c.b16 %v4118, %v4115
        %v4560 = vpack.c.b16 %v4122, %v4119
        %v4561 = vpack.c.b16 %v4123, %v4120
        %v4562 = vpack.c.b16 %v4124, %v4121
        %v4563 = vpack.c.b16 %v4128, %v4125
        %v4564 = vpack.c.b16 %v4129, %v4126
        %v4565 = vpack.c.b16 %v4130, %v4127
        %v4566 = vpack.c.b16 %v4134, %v4131
        %v4567 = vpack.c.b16 %v4135, %v4132
        %v4568 = vpack.c.b16 %v4136, %v4133
        %v4569 = vpack.c.b16 %v4140, %v4137
        %v4570 = vpack.c.b16 %v4141, %v4138
        %v4571 = vpack.c.b16 %v4142, %v4139
        %v4572 = vpack.c.b16 %v4146, %v4143
        %v4573 = vpack.c.b16 %v4147, %v4144
        %v4574 = vpack.c.b16 %v4148, %v4145
        %v4575 = vpack.c.b16 %v4152, %v4149
        %v4576 = vpack.c.b16 %v4153, %v4150
        %v4577 = vpack.c.b16 %v4154, %v4151
        %v4578 = vpack.c.b16 %v4158, %v4155
        %v4579 = vpack.c.b16 %v4159, %v4156
        %v4580 = vpack.c.b16 %v4160, %v4157
        %vm5001 = vcmask 523264
        %v5003 = vsel %vm5001, %v2743, 0
        %5005 = vmatpush.bf16.msra.mxu0 %v4182
        %5006 = vmatpush.bf16.msra.mxu0 %v4179
        %5007 = vmatpush.bf16.msra.mxu0 %v4176
        %5008 = vmatpush.bf16.msra.mxu0 %v4173
        %5009 = vmatpush.bf16.msra.mxu0 %v4170
        %5010 = vmatpush.bf16.msra.mxu0 %v4167
        %5011 = vmatpush.bf16.msra.mxu0 %v4164
        %5012 = vmatpush.bf16.msra.mxu0 %v4161
        %5013 = vmatmul.bf16.gmra.mxu0 %v2726
        %v5014 = vpop.f32.mrf.mxu0
        %v5015 = vadd.f32 %v2666, %v5014
        %v5016 = vpop.f32.mrf.mxu0
        %v5017 = vadd.f32 %v2666, %v5016
        %5018 = vdwg.mxu0
        %5019 = vmatpush.bf16.msra.mxu0 %v4206
        %5020 = vmatpush.bf16.msra.mxu0 %v4203
        %5021 = vmatpush.bf16.msra.mxu0 %v4200
        %5022 = vmatpush.bf16.msra.mxu0 %v4197
        %5023 = vmatpush.bf16.msra.mxu0 %v4194
        %5024 = vmatpush.bf16.msra.mxu0 %v4191
        %5025 = vmatpush.bf16.msra.mxu0 %v4188
        %5026 = vmatpush.bf16.msra.mxu0 %v4185
        %5027 = vmatmul.bf16.gmra.mxu0 %v2727
        %v5028 = vpop.f32.mrf.mxu0
        %v5029 = vadd.f32 %v5015, %v5028
        %v5030 = vpop.f32.mrf.mxu0
        %v5031 = vadd.f32 %v5017, %v5030
        %5032 = vdwg.mxu0
        %5033 = vmatpush.bf16.msra.mxu0 %v4230
        %5034 = vmatpush.bf16.msra.mxu0 %v4227
        %5035 = vmatpush.bf16.msra.mxu0 %v4224
        %5036 = vmatpush.bf16.msra.mxu0 %v4221
        %5037 = vmatpush.bf16.msra.mxu0 %v4218
        %5038 = vmatpush.bf16.msra.mxu0 %v4215
        %5039 = vmatpush.bf16.msra.mxu0 %v4212
        %5040 = vmatpush.bf16.msra.mxu0 %v4209
        %5041 = vmatmul.bf16.gmra.mxu0 %v2728
        %v5042 = vpop.f32.mrf.mxu0
        %v5043 = vadd.f32 %v5029, %v5042
        %v5044 = vpop.f32.mrf.mxu0
        %v5045 = vadd.f32 %v5031, %v5044
        %5046 = vdwg.mxu0
        %5047 = vmatpush.bf16.msra.mxu0 %v4254
        %5048 = vmatpush.bf16.msra.mxu0 %v4251
        %5049 = vmatpush.bf16.msra.mxu0 %v4248
        %5050 = vmatpush.bf16.msra.mxu0 %v4245
        %5051 = vmatpush.bf16.msra.mxu0 %v4242
        %5052 = vmatpush.bf16.msra.mxu0 %v4239
        %5053 = vmatpush.bf16.msra.mxu0 %v4236
        %5054 = vmatpush.bf16.msra.mxu0 %v4233
        %5055 = vmatmul.bf16.gmra.mxu0 %v2729
        %v5056 = vpop.f32.mrf.mxu0
        %v5057 = vadd.f32 %v5043, %v5056
        %v5058 = vpop.f32.mrf.mxu0
        %v5059 = vadd.f32 %v5045, %v5058
        %5060 = vdwg.mxu0
        %5061 = vmatpush.bf16.msra.mxu0 %v4278
        %5062 = vmatpush.bf16.msra.mxu0 %v4275
        %5063 = vmatpush.bf16.msra.mxu0 %v4272
        %5064 = vmatpush.bf16.msra.mxu0 %v4269
        %5065 = vmatpush.bf16.msra.mxu0 %v4266
        %5066 = vmatpush.bf16.msra.mxu0 %v4263
        %5067 = vmatpush.bf16.msra.mxu0 %v4260
        %5068 = vmatpush.bf16.msra.mxu0 %v4257
        %5069 = vmatmul.bf16.gmra.mxu0 %v2730
        %v5070 = vpop.f32.mrf.mxu0
        %v5071 = vadd.f32 %v5057, %v5070
        %v5072 = vpop.f32.mrf.mxu0
        %v5073 = vadd.f32 %v5059, %v5072
        %5074 = vdwg.mxu0
        %5075 = vmatpush.bf16.msra.mxu0 %v4302
        %5076 = vmatpush.bf16.msra.mxu0 %v4299
        %5077 = vmatpush.bf16.msra.mxu0 %v4296
        %5078 = vmatpush.bf16.msra.mxu0 %v4293
        %5079 = vmatpush.bf16.msra.mxu0 %v4290
        %5080 = vmatpush.bf16.msra.mxu0 %v4287
        %5081 = vmatpush.bf16.msra.mxu0 %v4284
        %5082 = vmatpush.bf16.msra.mxu0 %v4281
        %5083 = vmatmul.bf16.gmra.mxu0 %v2731
        %v5084 = vpop.f32.mrf.mxu0
        %v5085 = vadd.f32 %v5071, %v5084
        %v5086 = vpop.f32.mrf.mxu0
        %v5087 = vadd.f32 %v5073, %v5086
        %5088 = vdwg.mxu0
        %5089 = vmatpush.bf16.msra.mxu0 %v4326
        %5090 = vmatpush.bf16.msra.mxu0 %v4323
        %5091 = vmatpush.bf16.msra.mxu0 %v4320
        %5092 = vmatpush.bf16.msra.mxu0 %v4317
        %5093 = vmatpush.bf16.msra.mxu0 %v4314
        %5094 = vmatpush.bf16.msra.mxu0 %v4311
        %5095 = vmatpush.bf16.msra.mxu0 %v4308
        %5096 = vmatpush.bf16.msra.mxu0 %v4305
        %5097 = vmatmul.bf16.gmra.mxu0 %v2732
        %v5098 = vpop.f32.mrf.mxu0
        %v5099 = vadd.f32 %v5085, %v5098
        %v5100 = vpop.f32.mrf.mxu0
        %v5101 = vadd.f32 %v5087, %v5100
        %5102 = vdwg.mxu0
        %5103 = vmatpush.bf16.msra.mxu0 %v4350
        %5104 = vmatpush.bf16.msra.mxu0 %v4347
        %5105 = vmatpush.bf16.msra.mxu0 %v4344
        %5106 = vmatpush.bf16.msra.mxu0 %v4341
        %5107 = vmatpush.bf16.msra.mxu0 %v4338
        %5108 = vmatpush.bf16.msra.mxu0 %v4335
        %5109 = vmatpush.bf16.msra.mxu0 %v4332
        %5110 = vmatpush.bf16.msra.mxu0 %v4329
        %5111 = vmatmul.bf16.gmra.mxu0 %v2733
        %v5112 = vpop.f32.mrf.mxu0
        %v5113 = vadd.f32 %v5099, %v5112
        %v5114 = vpop.f32.mrf.mxu0
        %v5115 = vadd.f32 %v5101, %v5114
        %5116 = vdwg.mxu0
        %5117 = vmatpush.bf16.msra.mxu0 %v4374
        %5118 = vmatpush.bf16.msra.mxu0 %v4371
        %5119 = vmatpush.bf16.msra.mxu0 %v4368
        %5120 = vmatpush.bf16.msra.mxu0 %v4365
        %5121 = vmatpush.bf16.msra.mxu0 %v4362
        %5122 = vmatpush.bf16.msra.mxu0 %v4359
        %5123 = vmatpush.bf16.msra.mxu0 %v4356
        %5124 = vmatpush.bf16.msra.mxu0 %v4353
        %5125 = vmatmul.bf16.gmra.mxu0 %v2734
        %v5126 = vpop.f32.mrf.mxu0
        %v5127 = vadd.f32 %v5113, %v5126
        %v5128 = vpop.f32.mrf.mxu0
        %v5129 = vadd.f32 %v5115, %v5128
        %5130 = vdwg.mxu0
        %5131 = vmatpush.bf16.msra.mxu0 %v4398
        %5132 = vmatpush.bf16.msra.mxu0 %v4395
        %5133 = vmatpush.bf16.msra.mxu0 %v4392
        %5134 = vmatpush.bf16.msra.mxu0 %v4389
        %5135 = vmatpush.bf16.msra.mxu0 %v4386
        %5136 = vmatpush.bf16.msra.mxu0 %v4383
        %5137 = vmatpush.bf16.msra.mxu0 %v4380
        %5138 = vmatpush.bf16.msra.mxu0 %v4377
        %5139 = vmatmul.bf16.gmra.mxu0 %v2735
        %v5140 = vpop.f32.mrf.mxu0
        %v5141 = vadd.f32 %v5127, %v5140
        %v5142 = vpop.f32.mrf.mxu0
        %v5143 = vadd.f32 %v5129, %v5142
        %5144 = vdwg.mxu0
        %5145 = vmatpush.bf16.msra.mxu0 %v4422
        %5146 = vmatpush.bf16.msra.mxu0 %v4419
        %5147 = vmatpush.bf16.msra.mxu0 %v4416
        %5148 = vmatpush.bf16.msra.mxu0 %v4413
        %5149 = vmatpush.bf16.msra.mxu0 %v4410
        %5150 = vmatpush.bf16.msra.mxu0 %v4407
        %5151 = vmatpush.bf16.msra.mxu0 %v4404
        %5152 = vmatpush.bf16.msra.mxu0 %v4401
        %5153 = vmatmul.bf16.gmra.mxu0 %v2736
        %v5154 = vpop.f32.mrf.mxu0
        %v5155 = vadd.f32 %v5141, %v5154
        %v5156 = vpop.f32.mrf.mxu0
        %v5157 = vadd.f32 %v5143, %v5156
        %5158 = vdwg.mxu0
        %5159 = vmatpush.bf16.msra.mxu0 %v4446
        %5160 = vmatpush.bf16.msra.mxu0 %v4443
        %5161 = vmatpush.bf16.msra.mxu0 %v4440
        %5162 = vmatpush.bf16.msra.mxu0 %v4437
        %5163 = vmatpush.bf16.msra.mxu0 %v4434
        %5164 = vmatpush.bf16.msra.mxu0 %v4431
        %5165 = vmatpush.bf16.msra.mxu0 %v4428
        %5166 = vmatpush.bf16.msra.mxu0 %v4425
        %5167 = vmatmul.bf16.gmra.mxu0 %v2737
        %v5168 = vpop.f32.mrf.mxu0
        %v5169 = vadd.f32 %v5155, %v5168
        %v5170 = vpop.f32.mrf.mxu0
        %v5171 = vadd.f32 %v5157, %v5170
        %5172 = vdwg.mxu0
        %5173 = vmatpush.bf16.msra.mxu0 %v4470
        %5174 = vmatpush.bf16.msra.mxu0 %v4467
        %5175 = vmatpush.bf16.msra.mxu0 %v4464
        %5176 = vmatpush.bf16.msra.mxu0 %v4461
        %5177 = vmatpush.bf16.msra.mxu0 %v4458
        %5178 = vmatpush.bf16.msra.mxu0 %v4455
        %5179 = vmatpush.bf16.msra.mxu0 %v4452
        %5180 = vmatpush.bf16.msra.mxu0 %v4449
        %5181 = vmatmul.bf16.gmra.mxu0 %v2738
        %v5182 = vpop.f32.mrf.mxu0
        %v5183 = vadd.f32 %v5169, %v5182
        %v5184 = vpop.f32.mrf.mxu0
        %v5185 = vadd.f32 %v5171, %v5184
        %5186 = vdwg.mxu0
        %5187 = vmatpush.bf16.msra.mxu0 %v4494
        %5188 = vmatpush.bf16.msra.mxu0 %v4491
        %5189 = vmatpush.bf16.msra.mxu0 %v4488
        %5190 = vmatpush.bf16.msra.mxu0 %v4485
        %5191 = vmatpush.bf16.msra.mxu0 %v4482
        %5192 = vmatpush.bf16.msra.mxu0 %v4479
        %5193 = vmatpush.bf16.msra.mxu0 %v4476
        %5194 = vmatpush.bf16.msra.mxu0 %v4473
        %5195 = vmatmul.bf16.gmra.mxu0 %v2739
        %v5196 = vpop.f32.mrf.mxu0
        %v5197 = vadd.f32 %v5183, %v5196
        %v5198 = vpop.f32.mrf.mxu0
        %v5199 = vadd.f32 %v5185, %v5198
        %5200 = vdwg.mxu0
        %5201 = vmatpush.bf16.msra.mxu0 %v4518
        %5202 = vmatpush.bf16.msra.mxu0 %v4515
        %5203 = vmatpush.bf16.msra.mxu0 %v4512
        %5204 = vmatpush.bf16.msra.mxu0 %v4509
        %5205 = vmatpush.bf16.msra.mxu0 %v4506
        %5206 = vmatpush.bf16.msra.mxu0 %v4503
        %5207 = vmatpush.bf16.msra.mxu0 %v4500
        %5208 = vmatpush.bf16.msra.mxu0 %v4497
        %5209 = vmatmul.bf16.gmra.mxu0 %v2740
        %v5210 = vpop.f32.mrf.mxu0
        %v5211 = vadd.f32 %v5197, %v5210
        %v5212 = vpop.f32.mrf.mxu0
        %v5213 = vadd.f32 %v5199, %v5212
        %5214 = vdwg.mxu0
        %5215 = vmatpush.bf16.msra.mxu0 %v4542
        %5216 = vmatpush.bf16.msra.mxu0 %v4539
        %5217 = vmatpush.bf16.msra.mxu0 %v4536
        %5218 = vmatpush.bf16.msra.mxu0 %v4533
        %5219 = vmatpush.bf16.msra.mxu0 %v4530
        %5220 = vmatpush.bf16.msra.mxu0 %v4527
        %5221 = vmatpush.bf16.msra.mxu0 %v4524
        %5222 = vmatpush.bf16.msra.mxu0 %v4521
        %5223 = vmatmul.bf16.gmra.mxu0 %v2741
        %v5224 = vpop.f32.mrf.mxu0
        %v5225 = vadd.f32 %v5211, %v5224
        %v5226 = vpop.f32.mrf.mxu0
        %v5227 = vadd.f32 %v5213, %v5226
        %5228 = vdwg.mxu0
        %5229 = vmatpush.bf16.msra.mxu0 %v4566
        %5230 = vmatpush.bf16.msra.mxu0 %v4563
        %5231 = vmatpush.bf16.msra.mxu0 %v4560
        %5232 = vmatpush.bf16.msra.mxu0 %v4557
        %5233 = vmatpush.bf16.msra.mxu0 %v4554
        %5234 = vmatpush.bf16.msra.mxu0 %v4551
        %5235 = vmatpush.bf16.msra.mxu0 %v4548
        %5236 = vmatpush.bf16.msra.mxu0 %v4545
        %5237 = vmatmul.bf16.gmra.mxu0 %v2742
        %v5238 = vpop.f32.mrf.mxu0
        %v5239 = vadd.f32 %v5225, %v5238
        %v5240 = vpop.f32.mrf.mxu0
        %v5241 = vadd.f32 %v5227, %v5240
        %5242 = vdwg.mxu0
        %5243 = vmatpush.bf16.msra.mxu0 0
        %5244 = vmatpush.bf16.msra.mxu0 0
        %5245 = vmatpush.bf16.msra.mxu0 0
        %5246 = vmatpush.bf16.msra.mxu0 0
        %5247 = vmatpush.bf16.msra.mxu0 %v4578
        %5248 = vmatpush.bf16.msra.mxu0 %v4575
        %5249 = vmatpush.bf16.msra.mxu0 %v4572
        %5250 = vmatpush.bf16.msra.mxu0 %v4569
        %5251 = vmatmul.bf16.gmra.mxu0 %v5003
        %v5252 = vpop.f32.mrf.mxu0
        %v5253 = vadd.f32 %v5239, %v5252
        %v5254 = vpop.f32.mrf.mxu0
        %v5255 = vadd.f32 %v5241, %v5254
        %5256 = vdwg.mxu0
        %5257 = vmatpush.bf16.msra.mxu0 %v4183
        %5258 = vmatpush.bf16.msra.mxu0 %v4180
        %5259 = vmatpush.bf16.msra.mxu0 %v4177
        %5260 = vmatpush.bf16.msra.mxu0 %v4174
        %5261 = vmatpush.bf16.msra.mxu0 %v4171
        %5262 = vmatpush.bf16.msra.mxu0 %v4168
        %5263 = vmatpush.bf16.msra.mxu0 %v4165
        %5264 = vmatpush.bf16.msra.mxu0 %v4162
        %5265 = vmatmul.bf16.gmra.mxu0 %v2726
        %v5266 = vpop.f32.mrf.mxu0
        %v5267 = vadd.f32 %v2667, %v5266
        %v5268 = vpop.f32.mrf.mxu0
        %v5269 = vadd.f32 %v2667, %v5268
        %5270 = vdwg.mxu0
        %5271 = vmatpush.bf16.msra.mxu0 %v4207
        %5272 = vmatpush.bf16.msra.mxu0 %v4204
        %5273 = vmatpush.bf16.msra.mxu0 %v4201
        %5274 = vmatpush.bf16.msra.mxu0 %v4198
        %5275 = vmatpush.bf16.msra.mxu0 %v4195
        %5276 = vmatpush.bf16.msra.mxu0 %v4192
        %5277 = vmatpush.bf16.msra.mxu0 %v4189
        %5278 = vmatpush.bf16.msra.mxu0 %v4186
        %5279 = vmatmul.bf16.gmra.mxu0 %v2727
        %v5280 = vpop.f32.mrf.mxu0
        %v5281 = vadd.f32 %v5267, %v5280
        %v5282 = vpop.f32.mrf.mxu0
        %v5283 = vadd.f32 %v5269, %v5282
        %5284 = vdwg.mxu0
        %5285 = vmatpush.bf16.msra.mxu0 %v4231
        %5286 = vmatpush.bf16.msra.mxu0 %v4228
        %5287 = vmatpush.bf16.msra.mxu0 %v4225
        %5288 = vmatpush.bf16.msra.mxu0 %v4222
        %5289 = vmatpush.bf16.msra.mxu0 %v4219
        %5290 = vmatpush.bf16.msra.mxu0 %v4216
        %5291 = vmatpush.bf16.msra.mxu0 %v4213
        %5292 = vmatpush.bf16.msra.mxu0 %v4210
        %5293 = vmatmul.bf16.gmra.mxu0 %v2728
        %v5294 = vpop.f32.mrf.mxu0
        %v5295 = vadd.f32 %v5281, %v5294
        %v5296 = vpop.f32.mrf.mxu0
        %v5297 = vadd.f32 %v5283, %v5296
        %5298 = vdwg.mxu0
        %5299 = vmatpush.bf16.msra.mxu0 %v4255
        %5300 = vmatpush.bf16.msra.mxu0 %v4252
        %5301 = vmatpush.bf16.msra.mxu0 %v4249
        %5302 = vmatpush.bf16.msra.mxu0 %v4246
        %5303 = vmatpush.bf16.msra.mxu0 %v4243
        %5304 = vmatpush.bf16.msra.mxu0 %v4240
        %5305 = vmatpush.bf16.msra.mxu0 %v4237
        %5306 = vmatpush.bf16.msra.mxu0 %v4234
        %5307 = vmatmul.bf16.gmra.mxu0 %v2729
        %v5308 = vpop.f32.mrf.mxu0
        %v5309 = vadd.f32 %v5295, %v5308
        %v5310 = vpop.f32.mrf.mxu0
        %v5311 = vadd.f32 %v5297, %v5310
        %5312 = vdwg.mxu0
        %5313 = vmatpush.bf16.msra.mxu0 %v4279
        %5314 = vmatpush.bf16.msra.mxu0 %v4276
        %5315 = vmatpush.bf16.msra.mxu0 %v4273
        %5316 = vmatpush.bf16.msra.mxu0 %v4270
        %5317 = vmatpush.bf16.msra.mxu0 %v4267
        %5318 = vmatpush.bf16.msra.mxu0 %v4264
        %5319 = vmatpush.bf16.msra.mxu0 %v4261
        %5320 = vmatpush.bf16.msra.mxu0 %v4258
        %5321 = vmatmul.bf16.gmra.mxu0 %v2730
        %v5322 = vpop.f32.mrf.mxu0
        %v5323 = vadd.f32 %v5309, %v5322
        %v5324 = vpop.f32.mrf.mxu0
        %v5325 = vadd.f32 %v5311, %v5324
        %5326 = vdwg.mxu0
        %5327 = vmatpush.bf16.msra.mxu0 %v4303
        %5328 = vmatpush.bf16.msra.mxu0 %v4300
        %5329 = vmatpush.bf16.msra.mxu0 %v4297
        %5330 = vmatpush.bf16.msra.mxu0 %v4294
        %5331 = vmatpush.bf16.msra.mxu0 %v4291
        %5332 = vmatpush.bf16.msra.mxu0 %v4288
        %5333 = vmatpush.bf16.msra.mxu0 %v4285
        %5334 = vmatpush.bf16.msra.mxu0 %v4282
        %5335 = vmatmul.bf16.gmra.mxu0 %v2731
        %v5336 = vpop.f32.mrf.mxu0
        %v5337 = vadd.f32 %v5323, %v5336
        %v5338 = vpop.f32.mrf.mxu0
        %v5339 = vadd.f32 %v5325, %v5338
        %5340 = vdwg.mxu0
        %5341 = vmatpush.bf16.msra.mxu0 %v4327
        %5342 = vmatpush.bf16.msra.mxu0 %v4324
        %5343 = vmatpush.bf16.msra.mxu0 %v4321
        %5344 = vmatpush.bf16.msra.mxu0 %v4318
        %5345 = vmatpush.bf16.msra.mxu0 %v4315
        %5346 = vmatpush.bf16.msra.mxu0 %v4312
        %5347 = vmatpush.bf16.msra.mxu0 %v4309
        %5348 = vmatpush.bf16.msra.mxu0 %v4306
        %5349 = vmatmul.bf16.gmra.mxu0 %v2732
        %v5350 = vpop.f32.mrf.mxu0
        %v5351 = vadd.f32 %v5337, %v5350
        %v5352 = vpop.f32.mrf.mxu0
        %v5353 = vadd.f32 %v5339, %v5352
        %5354 = vdwg.mxu0
        %5355 = vmatpush.bf16.msra.mxu0 %v4351
        %5356 = vmatpush.bf16.msra.mxu0 %v4348
        %5357 = vmatpush.bf16.msra.mxu0 %v4345
        %5358 = vmatpush.bf16.msra.mxu0 %v4342
        %5359 = vmatpush.bf16.msra.mxu0 %v4339
        %5360 = vmatpush.bf16.msra.mxu0 %v4336
        %5361 = vmatpush.bf16.msra.mxu0 %v4333
        %5362 = vmatpush.bf16.msra.mxu0 %v4330
        %5363 = vmatmul.bf16.gmra.mxu0 %v2733
        %v5364 = vpop.f32.mrf.mxu0
        %v5365 = vadd.f32 %v5351, %v5364
        %v5366 = vpop.f32.mrf.mxu0
        %v5367 = vadd.f32 %v5353, %v5366
        %5368 = vdwg.mxu0
        %5369 = vmatpush.bf16.msra.mxu0 %v4375
        %5370 = vmatpush.bf16.msra.mxu0 %v4372
        %5371 = vmatpush.bf16.msra.mxu0 %v4369
        %5372 = vmatpush.bf16.msra.mxu0 %v4366
        %5373 = vmatpush.bf16.msra.mxu0 %v4363
        %5374 = vmatpush.bf16.msra.mxu0 %v4360
        %5375 = vmatpush.bf16.msra.mxu0 %v4357
        %5376 = vmatpush.bf16.msra.mxu0 %v4354
        %5377 = vmatmul.bf16.gmra.mxu0 %v2734
        %v5378 = vpop.f32.mrf.mxu0
        %v5379 = vadd.f32 %v5365, %v5378
        %v5380 = vpop.f32.mrf.mxu0
        %v5381 = vadd.f32 %v5367, %v5380
        %5382 = vdwg.mxu0
        %5383 = vmatpush.bf16.msra.mxu0 %v4399
        %5384 = vmatpush.bf16.msra.mxu0 %v4396
        %5385 = vmatpush.bf16.msra.mxu0 %v4393
        %5386 = vmatpush.bf16.msra.mxu0 %v4390
        %5387 = vmatpush.bf16.msra.mxu0 %v4387
        %5388 = vmatpush.bf16.msra.mxu0 %v4384
        %5389 = vmatpush.bf16.msra.mxu0 %v4381
        %5390 = vmatpush.bf16.msra.mxu0 %v4378
        %5391 = vmatmul.bf16.gmra.mxu0 %v2735
        %v5392 = vpop.f32.mrf.mxu0
        %v5393 = vadd.f32 %v5379, %v5392
        %v5394 = vpop.f32.mrf.mxu0
        %v5395 = vadd.f32 %v5381, %v5394
        %5396 = vdwg.mxu0
        %5397 = vmatpush.bf16.msra.mxu0 %v4423
        %5398 = vmatpush.bf16.msra.mxu0 %v4420
        %5399 = vmatpush.bf16.msra.mxu0 %v4417
        %5400 = vmatpush.bf16.msra.mxu0 %v4414
        %5401 = vmatpush.bf16.msra.mxu0 %v4411
        %5402 = vmatpush.bf16.msra.mxu0 %v4408
        %5403 = vmatpush.bf16.msra.mxu0 %v4405
        %5404 = vmatpush.bf16.msra.mxu0 %v4402
        %5405 = vmatmul.bf16.gmra.mxu0 %v2736
        %v5406 = vpop.f32.mrf.mxu0
        %v5407 = vadd.f32 %v5393, %v5406
        %v5408 = vpop.f32.mrf.mxu0
        %v5409 = vadd.f32 %v5395, %v5408
        %5410 = vdwg.mxu0
        %5411 = vmatpush.bf16.msra.mxu0 %v4447
        %5412 = vmatpush.bf16.msra.mxu0 %v4444
        %5413 = vmatpush.bf16.msra.mxu0 %v4441
        %5414 = vmatpush.bf16.msra.mxu0 %v4438
        %5415 = vmatpush.bf16.msra.mxu0 %v4435
        %5416 = vmatpush.bf16.msra.mxu0 %v4432
        %5417 = vmatpush.bf16.msra.mxu0 %v4429
        %5418 = vmatpush.bf16.msra.mxu0 %v4426
        %5419 = vmatmul.bf16.gmra.mxu0 %v2737
        %v5420 = vpop.f32.mrf.mxu0
        %v5421 = vadd.f32 %v5407, %v5420
        %v5422 = vpop.f32.mrf.mxu0
        %v5423 = vadd.f32 %v5409, %v5422
        %5424 = vdwg.mxu0
        %5425 = vmatpush.bf16.msra.mxu0 %v4471
        %5426 = vmatpush.bf16.msra.mxu0 %v4468
        %5427 = vmatpush.bf16.msra.mxu0 %v4465
        %5428 = vmatpush.bf16.msra.mxu0 %v4462
        %5429 = vmatpush.bf16.msra.mxu0 %v4459
        %5430 = vmatpush.bf16.msra.mxu0 %v4456
        %5431 = vmatpush.bf16.msra.mxu0 %v4453
        %5432 = vmatpush.bf16.msra.mxu0 %v4450
        %5433 = vmatmul.bf16.gmra.mxu0 %v2738
        %v5434 = vpop.f32.mrf.mxu0
        %v5435 = vadd.f32 %v5421, %v5434
        %v5436 = vpop.f32.mrf.mxu0
        %v5437 = vadd.f32 %v5423, %v5436
        %5438 = vdwg.mxu0
        %5439 = vmatpush.bf16.msra.mxu0 %v4495
        %5440 = vmatpush.bf16.msra.mxu0 %v4492
        %5441 = vmatpush.bf16.msra.mxu0 %v4489
        %5442 = vmatpush.bf16.msra.mxu0 %v4486
        %5443 = vmatpush.bf16.msra.mxu0 %v4483
        %5444 = vmatpush.bf16.msra.mxu0 %v4480
        %5445 = vmatpush.bf16.msra.mxu0 %v4477
        %5446 = vmatpush.bf16.msra.mxu0 %v4474
        %5447 = vmatmul.bf16.gmra.mxu0 %v2739
        %v5448 = vpop.f32.mrf.mxu0
        %v5449 = vadd.f32 %v5435, %v5448
        %v5450 = vpop.f32.mrf.mxu0
        %v5451 = vadd.f32 %v5437, %v5450
        %5452 = vdwg.mxu0
        %5453 = vmatpush.bf16.msra.mxu0 %v4519
        %5454 = vmatpush.bf16.msra.mxu0 %v4516
        %5455 = vmatpush.bf16.msra.mxu0 %v4513
        %5456 = vmatpush.bf16.msra.mxu0 %v4510
        %5457 = vmatpush.bf16.msra.mxu0 %v4507
        %5458 = vmatpush.bf16.msra.mxu0 %v4504
        %5459 = vmatpush.bf16.msra.mxu0 %v4501
        %5460 = vmatpush.bf16.msra.mxu0 %v4498
        %5461 = vmatmul.bf16.gmra.mxu0 %v2740
        %v5462 = vpop.f32.mrf.mxu0
        %v5463 = vadd.f32 %v5449, %v5462
        %v5464 = vpop.f32.mrf.mxu0
        %v5465 = vadd.f32 %v5451, %v5464
        %5466 = vdwg.mxu0
        %5467 = vmatpush.bf16.msra.mxu0 %v4543
        %5468 = vmatpush.bf16.msra.mxu0 %v4540
        %5469 = vmatpush.bf16.msra.mxu0 %v4537
        %5470 = vmatpush.bf16.msra.mxu0 %v4534
        %5471 = vmatpush.bf16.msra.mxu0 %v4531
        %5472 = vmatpush.bf16.msra.mxu0 %v4528
        %5473 = vmatpush.bf16.msra.mxu0 %v4525
        %5474 = vmatpush.bf16.msra.mxu0 %v4522
        %5475 = vmatmul.bf16.gmra.mxu0 %v2741
        %v5476 = vpop.f32.mrf.mxu0
        %v5477 = vadd.f32 %v5463, %v5476
        %v5478 = vpop.f32.mrf.mxu0
        %v5479 = vadd.f32 %v5465, %v5478
        %5480 = vdwg.mxu0
        %5481 = vmatpush.bf16.msra.mxu0 %v4567
        %5482 = vmatpush.bf16.msra.mxu0 %v4564
        %5483 = vmatpush.bf16.msra.mxu0 %v4561
        %5484 = vmatpush.bf16.msra.mxu0 %v4558
        %5485 = vmatpush.bf16.msra.mxu0 %v4555
        %5486 = vmatpush.bf16.msra.mxu0 %v4552
        %5487 = vmatpush.bf16.msra.mxu0 %v4549
        %5488 = vmatpush.bf16.msra.mxu0 %v4546
        %5489 = vmatmul.bf16.gmra.mxu0 %v2742
        %v5490 = vpop.f32.mrf.mxu0
        %v5491 = vadd.f32 %v5477, %v5490
        %v5492 = vpop.f32.mrf.mxu0
        %v5493 = vadd.f32 %v5479, %v5492
        %5494 = vdwg.mxu0
        %5495 = vmatpush.bf16.msra.mxu0 0
        %5496 = vmatpush.bf16.msra.mxu0 0
        %5497 = vmatpush.bf16.msra.mxu0 0
        %5498 = vmatpush.bf16.msra.mxu0 0
        %5499 = vmatpush.bf16.msra.mxu0 %v4579
        %5500 = vmatpush.bf16.msra.mxu0 %v4576
        %5501 = vmatpush.bf16.msra.mxu0 %v4573
        %5502 = vmatpush.bf16.msra.mxu0 %v4570
        %5503 = vmatmul.bf16.gmra.mxu0 %v5003
        %v5504 = vpop.f32.mrf.mxu0
        %v5505 = vadd.f32 %v5491, %v5504
        %v5506 = vpop.f32.mrf.mxu0
        %v5507 = vadd.f32 %v5493, %v5506
        %5508 = vdwg.mxu0
        %5509 = vmatpush.bf16.msra.mxu0 %v4184
        %5510 = vmatpush.bf16.msra.mxu0 %v4181
        %5511 = vmatpush.bf16.msra.mxu0 %v4178
        %5512 = vmatpush.bf16.msra.mxu0 %v4175
        %5513 = vmatpush.bf16.msra.mxu0 %v4172
        %5514 = vmatpush.bf16.msra.mxu0 %v4169
        %5515 = vmatpush.bf16.msra.mxu0 %v4166
        %5516 = vmatpush.bf16.msra.mxu0 %v4163
        %5517 = vmatmul.bf16.gmra.mxu0 %v2726
        %v5518 = vpop.f32.mrf.mxu0
        %v5519 = vadd.f32 %v2668, %v5518
        %v5520 = vpop.f32.mrf.mxu0
        %v5521 = vadd.f32 %v2668, %v5520
        %5522 = vdwg.mxu0
        %5523 = vmatpush.bf16.msra.mxu0 %v4208
        %5524 = vmatpush.bf16.msra.mxu0 %v4205
        %5525 = vmatpush.bf16.msra.mxu0 %v4202
        %5526 = vmatpush.bf16.msra.mxu0 %v4199
        %5527 = vmatpush.bf16.msra.mxu0 %v4196
        %5528 = vmatpush.bf16.msra.mxu0 %v4193
        %5529 = vmatpush.bf16.msra.mxu0 %v4190
        %5530 = vmatpush.bf16.msra.mxu0 %v4187
        %5531 = vmatmul.bf16.gmra.mxu0 %v2727
        %v5532 = vpop.f32.mrf.mxu0
        %v5533 = vadd.f32 %v5519, %v5532
        %v5534 = vpop.f32.mrf.mxu0
        %v5535 = vadd.f32 %v5521, %v5534
        %5536 = vdwg.mxu0
        %5537 = vmatpush.bf16.msra.mxu0 %v4232
        %5538 = vmatpush.bf16.msra.mxu0 %v4229
        %5539 = vmatpush.bf16.msra.mxu0 %v4226
        %5540 = vmatpush.bf16.msra.mxu0 %v4223
        %5541 = vmatpush.bf16.msra.mxu0 %v4220
        %5542 = vmatpush.bf16.msra.mxu0 %v4217
        %5543 = vmatpush.bf16.msra.mxu0 %v4214
        %5544 = vmatpush.bf16.msra.mxu0 %v4211
        %5545 = vmatmul.bf16.gmra.mxu0 %v2728
        %v5546 = vpop.f32.mrf.mxu0
        %v5547 = vadd.f32 %v5533, %v5546
        %v5548 = vpop.f32.mrf.mxu0
        %v5549 = vadd.f32 %v5535, %v5548
        %5550 = vdwg.mxu0
        %5551 = vmatpush.bf16.msra.mxu0 %v4256
        %5552 = vmatpush.bf16.msra.mxu0 %v4253
        %5553 = vmatpush.bf16.msra.mxu0 %v4250
        %5554 = vmatpush.bf16.msra.mxu0 %v4247
        %5555 = vmatpush.bf16.msra.mxu0 %v4244
        %5556 = vmatpush.bf16.msra.mxu0 %v4241
        %5557 = vmatpush.bf16.msra.mxu0 %v4238
        %5558 = vmatpush.bf16.msra.mxu0 %v4235
        %5559 = vmatmul.bf16.gmra.mxu0 %v2729
        %v5560 = vpop.f32.mrf.mxu0
        %v5561 = vadd.f32 %v5547, %v5560
        %v5562 = vpop.f32.mrf.mxu0
        %v5563 = vadd.f32 %v5549, %v5562
        %5564 = vdwg.mxu0
        %5565 = vmatpush.bf16.msra.mxu0 %v4280
        %5566 = vmatpush.bf16.msra.mxu0 %v4277
        %5567 = vmatpush.bf16.msra.mxu0 %v4274
        %5568 = vmatpush.bf16.msra.mxu0 %v4271
        %5569 = vmatpush.bf16.msra.mxu0 %v4268
        %5570 = vmatpush.bf16.msra.mxu0 %v4265
        %5571 = vmatpush.bf16.msra.mxu0 %v4262
        %5572 = vmatpush.bf16.msra.mxu0 %v4259
        %5573 = vmatmul.bf16.gmra.mxu0 %v2730
        %v5574 = vpop.f32.mrf.mxu0
        %v5575 = vadd.f32 %v5561, %v5574
        %v5576 = vpop.f32.mrf.mxu0
        %v5577 = vadd.f32 %v5563, %v5576
        %5578 = vdwg.mxu0
        %5579 = vmatpush.bf16.msra.mxu0 %v4304
        %5580 = vmatpush.bf16.msra.mxu0 %v4301
        %5581 = vmatpush.bf16.msra.mxu0 %v4298
        %5582 = vmatpush.bf16.msra.mxu0 %v4295
        %5583 = vmatpush.bf16.msra.mxu0 %v4292
        %5584 = vmatpush.bf16.msra.mxu0 %v4289
        %5585 = vmatpush.bf16.msra.mxu0 %v4286
        %5586 = vmatpush.bf16.msra.mxu0 %v4283
        %5587 = vmatmul.bf16.gmra.mxu0 %v2731
        %v5588 = vpop.f32.mrf.mxu0
        %v5589 = vadd.f32 %v5575, %v5588
        %v5590 = vpop.f32.mrf.mxu0
        %v5591 = vadd.f32 %v5577, %v5590
        %5592 = vdwg.mxu0
        %5593 = vmatpush.bf16.msra.mxu0 %v4328
        %5594 = vmatpush.bf16.msra.mxu0 %v4325
        %5595 = vmatpush.bf16.msra.mxu0 %v4322
        %5596 = vmatpush.bf16.msra.mxu0 %v4319
        %5597 = vmatpush.bf16.msra.mxu0 %v4316
        %5598 = vmatpush.bf16.msra.mxu0 %v4313
        %5599 = vmatpush.bf16.msra.mxu0 %v4310
        %5600 = vmatpush.bf16.msra.mxu0 %v4307
        %5601 = vmatmul.bf16.gmra.mxu0 %v2732
        %v5602 = vpop.f32.mrf.mxu0
        %v5603 = vadd.f32 %v5589, %v5602
        %v5604 = vpop.f32.mrf.mxu0
        %v5605 = vadd.f32 %v5591, %v5604
        %5606 = vdwg.mxu0
        %5607 = vmatpush.bf16.msra.mxu0 %v4352
        %5608 = vmatpush.bf16.msra.mxu0 %v4349
        %5609 = vmatpush.bf16.msra.mxu0 %v4346
        %5610 = vmatpush.bf16.msra.mxu0 %v4343
        %5611 = vmatpush.bf16.msra.mxu0 %v4340
        %5612 = vmatpush.bf16.msra.mxu0 %v4337
        %5613 = vmatpush.bf16.msra.mxu0 %v4334
        %5614 = vmatpush.bf16.msra.mxu0 %v4331
        %5615 = vmatmul.bf16.gmra.mxu0 %v2733
        %v5616 = vpop.f32.mrf.mxu0
        %v5617 = vadd.f32 %v5603, %v5616
        %v5618 = vpop.f32.mrf.mxu0
        %v5619 = vadd.f32 %v5605, %v5618
        %5620 = vdwg.mxu0
        %5621 = vmatpush.bf16.msra.mxu0 %v4376
        %5622 = vmatpush.bf16.msra.mxu0 %v4373
        %5623 = vmatpush.bf16.msra.mxu0 %v4370
        %5624 = vmatpush.bf16.msra.mxu0 %v4367
        %5625 = vmatpush.bf16.msra.mxu0 %v4364
        %5626 = vmatpush.bf16.msra.mxu0 %v4361
        %5627 = vmatpush.bf16.msra.mxu0 %v4358
        %5628 = vmatpush.bf16.msra.mxu0 %v4355
        %5629 = vmatmul.bf16.gmra.mxu0 %v2734
        %v5630 = vpop.f32.mrf.mxu0
        %v5631 = vadd.f32 %v5617, %v5630
        %v5632 = vpop.f32.mrf.mxu0
        %v5633 = vadd.f32 %v5619, %v5632
        %5634 = vdwg.mxu0
        %5635 = vmatpush.bf16.msra.mxu0 %v4400
        %5636 = vmatpush.bf16.msra.mxu0 %v4397
        %5637 = vmatpush.bf16.msra.mxu0 %v4394
        %5638 = vmatpush.bf16.msra.mxu0 %v4391
        %5639 = vmatpush.bf16.msra.mxu0 %v4388
        %5640 = vmatpush.bf16.msra.mxu0 %v4385
        %5641 = vmatpush.bf16.msra.mxu0 %v4382
        %5642 = vmatpush.bf16.msra.mxu0 %v4379
        %5643 = vmatmul.bf16.gmra.mxu0 %v2735
        %v5644 = vpop.f32.mrf.mxu0
        %v5645 = vadd.f32 %v5631, %v5644
        %v5646 = vpop.f32.mrf.mxu0
        %v5647 = vadd.f32 %v5633, %v5646
        %5648 = vdwg.mxu0
        %5649 = vmatpush.bf16.msra.mxu0 %v4424
        %5650 = vmatpush.bf16.msra.mxu0 %v4421
        %5651 = vmatpush.bf16.msra.mxu0 %v4418
        %5652 = vmatpush.bf16.msra.mxu0 %v4415
        %5653 = vmatpush.bf16.msra.mxu0 %v4412
        %5654 = vmatpush.bf16.msra.mxu0 %v4409
        %5655 = vmatpush.bf16.msra.mxu0 %v4406
        %5656 = vmatpush.bf16.msra.mxu0 %v4403
        %5657 = vmatmul.bf16.gmra.mxu0 %v2736
        %v5658 = vpop.f32.mrf.mxu0
        %v5659 = vadd.f32 %v5645, %v5658
        %v5660 = vpop.f32.mrf.mxu0
        %v5661 = vadd.f32 %v5647, %v5660
        %5662 = vdwg.mxu0
        %5663 = vmatpush.bf16.msra.mxu0 %v4448
        %5664 = vmatpush.bf16.msra.mxu0 %v4445
        %5665 = vmatpush.bf16.msra.mxu0 %v4442
        %5666 = vmatpush.bf16.msra.mxu0 %v4439
        %5667 = vmatpush.bf16.msra.mxu0 %v4436
        %5668 = vmatpush.bf16.msra.mxu0 %v4433
        %5669 = vmatpush.bf16.msra.mxu0 %v4430
        %5670 = vmatpush.bf16.msra.mxu0 %v4427
        %5671 = vmatmul.bf16.gmra.mxu0 %v2737
        %v5672 = vpop.f32.mrf.mxu0
        %v5673 = vadd.f32 %v5659, %v5672
        %v5674 = vpop.f32.mrf.mxu0
        %v5675 = vadd.f32 %v5661, %v5674
        %5676 = vdwg.mxu0
        %5677 = vmatpush.bf16.msra.mxu0 %v4472
        %5678 = vmatpush.bf16.msra.mxu0 %v4469
        %5679 = vmatpush.bf16.msra.mxu0 %v4466
        %5680 = vmatpush.bf16.msra.mxu0 %v4463
        %5681 = vmatpush.bf16.msra.mxu0 %v4460
        %5682 = vmatpush.bf16.msra.mxu0 %v4457
        %5683 = vmatpush.bf16.msra.mxu0 %v4454
        %5684 = vmatpush.bf16.msra.mxu0 %v4451
        %5685 = vmatmul.bf16.gmra.mxu0 %v2738
        %v5686 = vpop.f32.mrf.mxu0
        %v5687 = vadd.f32 %v5673, %v5686
        %v5688 = vpop.f32.mrf.mxu0
        %v5689 = vadd.f32 %v5675, %v5688
        %5690 = vdwg.mxu0
        %5691 = vmatpush.bf16.msra.mxu0 %v4496
        %5692 = vmatpush.bf16.msra.mxu0 %v4493
        %5693 = vmatpush.bf16.msra.mxu0 %v4490
        %5694 = vmatpush.bf16.msra.mxu0 %v4487
        %5695 = vmatpush.bf16.msra.mxu0 %v4484
        %5696 = vmatpush.bf16.msra.mxu0 %v4481
        %5697 = vmatpush.bf16.msra.mxu0 %v4478
        %5698 = vmatpush.bf16.msra.mxu0 %v4475
        %5699 = vmatmul.bf16.gmra.mxu0 %v2739
        %v5700 = vpop.f32.mrf.mxu0
        %v5701 = vadd.f32 %v5687, %v5700
        %v5702 = vpop.f32.mrf.mxu0
        %v5703 = vadd.f32 %v5689, %v5702
        %5704 = vdwg.mxu0
        %5705 = vmatpush.bf16.msra.mxu0 %v4520
        %5706 = vmatpush.bf16.msra.mxu0 %v4517
        %5707 = vmatpush.bf16.msra.mxu0 %v4514
        %5708 = vmatpush.bf16.msra.mxu0 %v4511
        %5709 = vmatpush.bf16.msra.mxu0 %v4508
        %5710 = vmatpush.bf16.msra.mxu0 %v4505
        %5711 = vmatpush.bf16.msra.mxu0 %v4502
        %5712 = vmatpush.bf16.msra.mxu0 %v4499
        %5713 = vmatmul.bf16.gmra.mxu0 %v2740
        %v5714 = vpop.f32.mrf.mxu0
        %v5715 = vadd.f32 %v5701, %v5714
        %v5716 = vpop.f32.mrf.mxu0
        %v5717 = vadd.f32 %v5703, %v5716
        %5718 = vdwg.mxu0
        %5719 = vmatpush.bf16.msra.mxu0 %v4544
        %5720 = vmatpush.bf16.msra.mxu0 %v4541
        %5721 = vmatpush.bf16.msra.mxu0 %v4538
        %5722 = vmatpush.bf16.msra.mxu0 %v4535
        %5723 = vmatpush.bf16.msra.mxu0 %v4532
        %5724 = vmatpush.bf16.msra.mxu0 %v4529
        %5725 = vmatpush.bf16.msra.mxu0 %v4526
        %5726 = vmatpush.bf16.msra.mxu0 %v4523
        %5727 = vmatmul.bf16.gmra.mxu0 %v2741
        %v5728 = vpop.f32.mrf.mxu0
        %v5729 = vadd.f32 %v5715, %v5728
        %v5730 = vpop.f32.mrf.mxu0
        %v5731 = vadd.f32 %v5717, %v5730
        %5732 = vdwg.mxu0
        %5733 = vmatpush.bf16.msra.mxu0 %v4568
        %5734 = vmatpush.bf16.msra.mxu0 %v4565
        %5735 = vmatpush.bf16.msra.mxu0 %v4562
        %5736 = vmatpush.bf16.msra.mxu0 %v4559
        %5737 = vmatpush.bf16.msra.mxu0 %v4556
        %5738 = vmatpush.bf16.msra.mxu0 %v4553
        %5739 = vmatpush.bf16.msra.mxu0 %v4550
        %5740 = vmatpush.bf16.msra.mxu0 %v4547
        %5741 = vmatmul.bf16.gmra.mxu0 %v2742
        %v5742 = vpop.f32.mrf.mxu0
        %v5743 = vadd.f32 %v5729, %v5742
        %v5744 = vpop.f32.mrf.mxu0
        %v5745 = vadd.f32 %v5731, %v5744
        %5746 = vdwg.mxu0
        %5747 = vmatpush.bf16.msra.mxu0 0
        %5748 = vmatpush.bf16.msra.mxu0 0
        %5749 = vmatpush.bf16.msra.mxu0 0
        %5750 = vmatpush.bf16.msra.mxu0 0
        %5751 = vmatpush.bf16.msra.mxu0 %v4580
        %5752 = vmatpush.bf16.msra.mxu0 %v4577
        %5753 = vmatpush.bf16.msra.mxu0 %v4574
        %5754 = vmatpush.bf16.msra.mxu0 %v4571
        %5755 = vmatmul.bf16.gmra.mxu0 %v5003
        %v5756 = vpop.f32.mrf.mxu0
        %v5757 = vadd.f32 %v5743, %v5756
        %v5758 = vpop.f32.mrf.mxu0
        %v5759 = vadd.f32 %v5745, %v5758
        %5760 = vdwg.mxu0
        %v5761 = vmax.f32 %v5253, 0.0
        %v5762 = vmax.f32 %v5505, 0.0
        %v5763 = vmax.f32 %v5757, 0.0
        %v5764 = vmax.f32 %v5255, 0.0
        %v5765 = vmax.f32 %v5507, 0.0
        %v5766 = vmax.f32 %v5759, 0.0
        %5773 = vrot.lane.b32.xlu0 %v5761, 96
        %v5774 = vpop.permute.xlu0 %5773
        %5775 = vrot.lane.b32.xlu0 %v5762, 96
        %v5776 = vpop.permute.xlu0 %5775
        %5777 = vrot.lane.b32.xlu0 %v5763, 96
        %v5778 = vpop.permute.xlu0 %5777
        %5779 = vrot.lane.b32.xlu0 %v5764, 96
        %v5780 = vpop.permute.xlu0 %5779
        %5781 = vrot.lane.b32.xlu0 %v5765, 96
        %v5782 = vpop.permute.xlu0 %5781
        %5783 = vrot.lane.b32.xlu0 %v5766, 96
        %v5784 = vpop.permute.xlu0 %5783
        %v5785 = vsel %vm1366, %v5774, %v5776
        %v5786 = vsel %vm1366, %v5776, %v5778
        %v5787 = vsel %vm1366, %v5780, %v5782
        %v5788 = vsel %vm1366, %v5782, %v5784
        %v5795 = vmax.f32 %v5761, %v5785
        %v5796 = vmax.f32 %v5762, %v5786
        %v5797 = vmax.f32 %v5763, %v5778
        %v5798 = vmax.f32 %v5764, %v5787
        %v5799 = vmax.f32 %v5765, %v5788
        %v5800 = vmax.f32 %v5766, %v5784
        %5801 = vst.msk [vmem:[#allocation6] sm:$0xff] %vm981, %v5795
        %5802 = vst.msk [vmem:[#allocation6 + $0x10] sm:$0x3] %vm343, %v5798
        %5805 = vrot.lane.b32.xlu0 %v5795, 96
        %v5806 = vpop.permute.xlu0 %5805
        %5807 = vrot.lane.b32.xlu0 %v5798, 96
        %v5808 = vpop.permute.xlu0 %5807
        %5811 = vst.msk [vmem:[#allocation6] sm:$0xff] %vm1467, %v5806
        %5812 = vst.msk [vmem:[#allocation6 + $0x10] sm:$0x3] %vm403, %v5808
        %5815 = vrot.lane.b32.xlu0 %v5796, 64
        %v5816 = vpop.permute.xlu0 %5815
        %5817 = vrot.lane.b32.xlu0 %v5799, 64
        %v5818 = vpop.permute.xlu0 %5817
        %5821 = vst.msk [vmem:[#allocation6] sm:$0xff] %vm1488, %v5816
        %5822 = vst.msk [vmem:[#allocation6 + $0x10] sm:$0x3] %vm439, %v5818
        %5823 = vrot.lane.b32.xlu0 %v5796, 32
        %v5824 = vpop.permute.xlu0 %5823
        %5825 = vrot.lane.b32.xlu0 %v5799, 32
        %v5826 = vpop.permute.xlu0 %5825
        %5829 = vst.msk [vmem:[#allocation6] sm:$0xff] %vm1505, %v5824
        %5830 = vst.msk [vmem:[#allocation6 + $0x10] sm:$0x3] %vm479, %v5826
        %5831 = vst.msk [vmem:[#allocation6 + $0x8] sm:$0xff] %vm981, %v5797
        %5832 = vst.msk [vmem:[#allocation6 + $0x18] sm:$0x3] %vm343, %v5800
        %v5833 = vld [vmem:[#allocation6] sm:$0xff]
        %v5834 = vld [vmem:[#allocation6 + $0x8] sm:$0xff]
        %v5835 = vld [vmem:[#allocation6 + $0x10] sm:$0x3]
        %v5836 = vld [vmem:[#allocation6 + $0x18] sm:$0x3]
        %v5841 = vrot.slane %v5833, 1
        %v5842 = vrot.slane %v5835, 1
        %v5843 = vsel %vm1686, %v5841, %v5842
        %v5844 = vrot.slane %v5834, 1
        %v5845 = vrot.slane %v5836, 1
        %v5846 = vsel %vm1686, %v5844, %v5845
        %v5851 = vmax.f32 %v5833, %v5843
        %v5852 = vmax.f32 %v5834, %v5846
        %v5853 = vmax.f32 %v5835, %v5842
        %v5854 = vmax.f32 %v5836, %v5845
        %v5855 = vpack.c.bf16 %v5852, %v5851
        %v5857 = vrot.slane %v5855, 3
        %v5860 = vsel %vm1754, %v5855, %v5857
        %vm5862 = vcmask 1040384
        %vm5863 = vsmask.f32 256
        %vm5864 = vmand %vm5862, %vm5863
        %vm5865 = vcmask 254977
        %vm5866 = vsmask.f32 1280
        %vm5867 = vmand %vm5865, %vm5866
        %vm5868 = vmor %vm5867, %vm5864
        %v5869 = vld [vmem:[#allocation7] sm:$0x3]
        %v5870 = vsel %vm5868, %v5860, %v5869
        %5871 = vst [vmem:[#allocation7] sm:$0x3] %v5870
        %5872 = vst [vmem:[#allocation1] sm:$0xff] %v5855
        %s5873 = scalar_lea.vmem [#allocation1], 1
        %v5874 = vld [vmem:[%s5873] ss:$4 sm:$0xff]
        %5876 = vrot.lane.b32.xlu0 %v5874, 32
        %v5877 = vpop.permute.xlu0 %5876
        %v5878 = vrot.slane %v5877, 7
        %vm5879 = vcmask 261120
        %v5880 = vsel %vm5879, %v5878, %v5877
        %vm5882 = vcmask 1040640
        %vm5883 = vmand %vm5882, %vm5863
        %vm5884 = vcmask 517121
        %vm5885 = vmand %vm5884, %vm5866
        %vm5886 = vmor %vm5885, %vm5883
        %v5887 = vld [vmem:[#allocation7 + $0x1] sm:$0x3]
        %v5888 = vsel %vm5886, %v5880, %v5887
        %5889 = vst [vmem:[#allocation7 + $0x1] sm:$0x3] %v5888
        %5890 = vst [vmem:[#allocation1] sm:$0xff] %v5855
        %s5891 = scalar_lea.vmem [#allocation1], 2
        %v5892 = vld [vmem:[%s5891] ss:$4 sm:$0xff]
        %5894 = vrot.lane.b32.xlu0 %v5892, 64
        %v5895 = vpop.permute.xlu0 %5894
        %v5896 = vrot.slane %v5895, 7
        %v5897 = vsel %vm1980, %v5896, %v5895
        %vm5899 = vcmask 1040896
        %vm5900 = vmand %vm5899, %vm5863
        %vm5901 = vcmask 779265
        %vm5902 = vmand %vm5901, %vm5866
        %vm5903 = vmor %vm5902, %vm5900
        %v5904 = vld [vmem:[#allocation7 + $0x2] sm:$0x3]
        %v5905 = vsel %vm5903, %v5897, %v5904
        %5906 = vst [vmem:[#allocation7 + $0x2] sm:$0x3] %v5905
        %5907 = vst [vmem:[#allocation1] sm:$0xff] %v5855
        %s5908 = scalar_lea.vmem [#allocation1], 3
        %v5909 = vld [vmem:[%s5908] ss:$4 sm:$0xff]
        %5911 = vrot.lane.b32.xlu0 %v5909, 96
        %v5912 = vpop.permute.xlu0 %5911
        %v5913 = vrot.slane %v5912, 7
        %vm5914 = vcmask 785408
        %v5915 = vsel %vm5914, %v5913, %v5912
        %vm5917 = vcmask 1041152
        %vm5918 = vmand %vm5917, %vm5863
        %vm5919 = vcmask 1041409
        %vm5920 = vmand %vm5919, %vm5866
        %vm5921 = vmor %vm5920, %vm5918
        %v5922 = vld [vmem:[#allocation7 + $0x3] sm:$0x3]
        %v5923 = vsel %vm5921, %v5915, %v5922
        %5924 = vst [vmem:[#allocation7 + $0x3] sm:$0x3] %v5923
        %v5925 = vpack.c.bf16 %v5854, %v5853
        %v5927 = vrot.slane %v5925, 3
        %v5930 = vsel %vm1754, %v5925, %v5927
        %v5932 = vld [vmem:[#allocation7 + $0x5] sm:$0x3]
        %v5933 = vsel %vm5868, %v5930, %v5932
        %5934 = vst [vmem:[#allocation7 + $0x5] sm:$0x3] %v5933
        %v5935 = vld [vmem:[#allocation7] sm:$0x7f]
        %v5936 = vld [vmem:[%s5] sm:$0xff]
        %v5937 = vld [vmem:[%s5 + $0x8] sm:$0xff]
        %v5938 = vld [vmem:[%s5 + $0x10] sm:$0xff]
        %v5939 = vld [vmem:[%s5 + $0x18] sm:$0xff]
        %v5940 = vld [vmem:[%s5 + $0x20] sm:$0xff]
        %v5941 = vld [vmem:[%s5 + $0x28] sm:$0xff]
        %v5942 = vld [vmem:[%s5 + $0x30] sm:$0xff]
        %v5943 = vld [vmem:[%s5 + $0x38] sm:$0xff]
        %v5944 = vld [vmem:[%s5 + $0x40] sm:$0xff]
        %v5945 = vld [vmem:[%s5 + $0x48] sm:$0xff]
        %v5946 = vld [vmem:[%s5 + $0x50] sm:$0xff]
        %v5947 = vld [vmem:[%s5 + $0x58] sm:$0xff]
        %v5948 = vld [vmem:[%s5 + $0x60] sm:$0xff]
        %v5949 = vld [vmem:[%s5 + $0x68] sm:$0xff]
        %v5950 = vld [vmem:[%s5 + $0x70] sm:$0xff]
        %v5951 = vld [vmem:[%s5 + $0x78] sm:$0xff]
        %v5952 = vld [vmem:[%s5 + $0x80] sm:$0xff]
        %v5953 = vld [vmem:[%s5 + $0x88] sm:$0xff]
        %v5954 = vld [vmem:[%s5 + $0x90] sm:$0xff]
        %v5955 = vld [vmem:[%s5 + $0x98] sm:$0xff]
        %v5956 = vld [vmem:[%s5 + $0xa0] sm:$0xff]
        %v5957 = vld [vmem:[%s5 + $0xa8] sm:$0xff]
        %v5958 = vld [vmem:[%s5 + $0xb0] sm:$0xff]
        %v5959 = vld [vmem:[%s5 + $0xb8] sm:$0xff]
        %v5960 = vld [vmem:[%s5 + $0xc0] sm:$0xff]
        %v5961 = vld [vmem:[%s5 + $0xc8] sm:$0xff]
        %v5962 = vld [vmem:[%s5 + $0xd0] sm:$0xff]
        %v5963 = vld [vmem:[%s5 + $0xd8] sm:$0xff]
        %v5964 = vld [vmem:[%s5 + $0xe0] sm:$0xff]
        %v5965 = vld [vmem:[%s5 + $0xe8] sm:$0xff]
        %v5966 = vld [vmem:[%s5 + $0xf0] sm:$0xff]
        %v5967 = vld [vmem:[%s5 + $0xf8] sm:$0xff]
        %v5968 = vld [vmem:[%s5 + $0x100] sm:$0xff]
        %v5969 = vld [vmem:[%s5 + $0x108] sm:$0xff]
        %v5970 = vld [vmem:[%s5 + $0x110] sm:$0xff]
        %v5971 = vld [vmem:[%s5 + $0x118] sm:$0xff]
        %v5972 = vld [vmem:[%s5 + $0x120] sm:$0xff]
        %v5973 = vld [vmem:[%s5 + $0x128] sm:$0xff]
        %v5974 = vld [vmem:[%s5 + $0x130] sm:$0xff]
        %v5975 = vld [vmem:[%s5 + $0x138] sm:$0xff]
        %v5976 = vld [vmem:[%s5 + $0x140] sm:$0xff]
        %v5977 = vld [vmem:[%s5 + $0x148] sm:$0xff]
        %v5978 = vld [vmem:[%s5 + $0x150] sm:$0xff]
        %v5979 = vld [vmem:[%s5 + $0x158] sm:$0xff]
        %v5980 = vld [vmem:[%s5 + $0x160] sm:$0xff]
        %v5981 = vld [vmem:[%s5 + $0x168] sm:$0xff]
        %v5982 = vld [vmem:[%s5 + $0x170] sm:$0xff]
        %v5983 = vld [vmem:[%s5 + $0x178] sm:$0xff]
        %v5984 = vld [vmem:[%s5 + $0x180] sm:$0xff]
        %v5985 = vld [vmem:[%s5 + $0x188] sm:$0xff]
        %v5986 = vld [vmem:[%s5 + $0x190] sm:$0xff]
        %v5987 = vld [vmem:[%s5 + $0x198] sm:$0xff]
        %v5988 = vld [vmem:[%s5 + $0x1a0] sm:$0xff]
        %v5989 = vld [vmem:[%s5 + $0x1a8] sm:$0xff]
        %v5990 = vld [vmem:[%s5 + $0x1b0] sm:$0xff]
        %v5991 = vld [vmem:[%s5 + $0x1b8] sm:$0xff]
        %v5992 = vld [vmem:[%s5 + $0x1c0] sm:$0xff]
        %v5993 = vld [vmem:[%s5 + $0x1c8] sm:$0xff]
        %v5994 = vld [vmem:[%s5 + $0x1d0] sm:$0xff]
        %v5995 = vld [vmem:[%s5 + $0x1d8] sm:$0xff]
        %v5996 = vld [vmem:[%s5 + $0x1e0] sm:$0xff]
        %v5997 = vld [vmem:[%s5 + $0x1e8] sm:$0xff]
        %v5998 = vld [vmem:[%s5 + $0x1f0] sm:$0xff]
        %v5999 = vld [vmem:[%s5 + $0x1f8] sm:$0xff]
        %v6000 = vld [vmem:[%s5 + $0x200] sm:$0xff]
        %v6001 = vld [vmem:[%s5 + $0x208] sm:$0xff]
        %v6002 = vld [vmem:[%s5 + $0x210] sm:$0xff]
        %v6003 = vld [vmem:[%s5 + $0x218] sm:$0xff]
        %v6004 = vld [vmem:[%s5 + $0x220] sm:$0xff]
        %v6005 = vld [vmem:[%s5 + $0x228] sm:$0xff]
        %v6006 = vld [vmem:[%s5 + $0x230] sm:$0xff]
        %v6007 = vld [vmem:[%s5 + $0x238] sm:$0xff]
        %v6008 = vld [vmem:[%s5 + $0x240] sm:$0xff]
        %v6009 = vld [vmem:[%s5 + $0x248] sm:$0xff]
        %v6010 = vld [vmem:[%s5 + $0x250] sm:$0xff]
        %v6011 = vld [vmem:[%s5 + $0x258] sm:$0xff]
        %v6012 = vld [vmem:[%s5 + $0x260] sm:$0xff]
        %v6013 = vld [vmem:[%s5 + $0x268] sm:$0xff]
        %v6014 = vld [vmem:[%s5 + $0x270] sm:$0xff]
        %v6015 = vld [vmem:[%s5 + $0x278] sm:$0xff]
        %v6016 = vld [vmem:[%s5 + $0x280] sm:$0xff]
        %v6017 = vld [vmem:[%s5 + $0x288] sm:$0xff]
        %v6018 = vld [vmem:[%s5 + $0x290] sm:$0xff]
        %v6019 = vld [vmem:[%s5 + $0x298] sm:$0xff]
        %v6020 = vld [vmem:[%s5 + $0x2a0] sm:$0xff]
        %v6021 = vld [vmem:[%s5 + $0x2a8] sm:$0xff]
        %v6022 = vld [vmem:[%s5 + $0x2b0] sm:$0xff]
        %v6023 = vld [vmem:[%s5 + $0x2b8] sm:$0xff]
        %v6024 = vld [vmem:[%s5 + $0x2c0] sm:$0xff]
        %v6025 = vld [vmem:[%s5 + $0x2c8] sm:$0xff]
        %v6026 = vld [vmem:[%s5 + $0x2d0] sm:$0xff]
        %v6027 = vld [vmem:[%s5 + $0x2d8] sm:$0xff]
        %v6028 = vld [vmem:[%s5 + $0x2e0] sm:$0xff]
        %v6029 = vld [vmem:[%s5 + $0x2e8] sm:$0xff]
        %v6030 = vld [vmem:[%s5 + $0x2f0] sm:$0xff]
        %v6031 = vld [vmem:[%s5 + $0x2f8] sm:$0xff]
        %v6032 = vld [vmem:[%s5 + $0x300] sm:$0xff]
        %v6033 = vld [vmem:[%s5 + $0x308] sm:$0xff]
        %v6034 = vld [vmem:[%s5 + $0x310] sm:$0xff]
        %v6035 = vld [vmem:[%s5 + $0x318] sm:$0xff]
        %v6036 = vld [vmem:[%s6] sm:$0x3]
        %6038 = vst [vmem:[#allocation1] ss:$9 sm:$0xff] %v5935
        %v6039 = vld [vmem:[#allocation1] sm:$0xff]
        %v6040 = vld [vmem:[#allocation1 + $0x9] sm:$0xff]
        %v6041 = vld [vmem:[#allocation1 + $0x12] sm:$0xff]
        %v6042 = vld [vmem:[#allocation1 + $0x1b] sm:$0xff]
        %v6043 = vld [vmem:[#allocation1 + $0x24] sm:$0xff]
        %v6044 = vld [vmem:[#allocation1 + $0x2d] sm:$0xff]
        %v6045 = vld [vmem:[#allocation1 + $0x36] sm:$0xff]
        %v6152 = vunpack.c.l.b16 %v5936
        %v6153 = vunpack.c.h.b16 %v5936
        %v6154 = vunpack.c.l.b16 %v5937
        %v6155 = vunpack.c.h.b16 %v5937
        %v6156 = vunpack.c.l.b16 %v5938
        %v6157 = vunpack.c.h.b16 %v5938
        %v6158 = vunpack.c.l.b16 %v5939
        %v6159 = vunpack.c.h.b16 %v5939
        %v6160 = vunpack.c.l.b16 %v5940
        %v6161 = vunpack.c.h.b16 %v5940
        %v6162 = vunpack.c.l.b16 %v5941
        %v6163 = vunpack.c.h.b16 %v5941
        %v6164 = vunpack.c.l.b16 %v5942
        %v6165 = vunpack.c.h.b16 %v5942
        %v6166 = vunpack.c.l.b16 %v5943
        %v6167 = vunpack.c.h.b16 %v5943
        %v6168 = vunpack.c.l.b16 %v5944
        %v6169 = vunpack.c.h.b16 %v5944
        %v6170 = vunpack.c.l.b16 %v5945
        %v6171 = vunpack.c.h.b16 %v5945
        %v6172 = vunpack.c.l.b16 %v5946
        %v6173 = vunpack.c.h.b16 %v5946
        %v6174 = vunpack.c.l.b16 %v5947
        %v6175 = vunpack.c.h.b16 %v5947
        %v6176 = vunpack.c.l.b16 %v5948
        %v6177 = vunpack.c.h.b16 %v5948
        %v6178 = vunpack.c.l.b16 %v5949
        %v6179 = vunpack.c.h.b16 %v5949
        %v6180 = vunpack.c.l.b16 %v5950
        %v6181 = vunpack.c.h.b16 %v5950
        %v6182 = vunpack.c.l.b16 %v5951
        %v6183 = vunpack.c.h.b16 %v5951
        %v6184 = vunpack.c.l.b16 %v5952
        %v6185 = vunpack.c.h.b16 %v5952
        %v6186 = vunpack.c.l.b16 %v5953
        %v6187 = vunpack.c.h.b16 %v5953
        %v6188 = vunpack.c.l.b16 %v5954
        %v6189 = vunpack.c.h.b16 %v5954
        %v6190 = vunpack.c.l.b16 %v5955
        %v6191 = vunpack.c.h.b16 %v5955
        %v6192 = vunpack.c.l.b16 %v5956
        %v6193 = vunpack.c.h.b16 %v5956
        %v6194 = vunpack.c.l.b16 %v5957
        %v6195 = vunpack.c.h.b16 %v5957
        %v6196 = vunpack.c.l.b16 %v5958
        %v6197 = vunpack.c.h.b16 %v5958
        %v6198 = vunpack.c.l.b16 %v5959
        %v6199 = vunpack.c.h.b16 %v5959
        %v6200 = vunpack.c.l.b16 %v5960
        %v6201 = vunpack.c.h.b16 %v5960
        %v6202 = vunpack.c.l.b16 %v5961
        %v6203 = vunpack.c.h.b16 %v5961
        %v6204 = vunpack.c.l.b16 %v5962
        %v6205 = vunpack.c.h.b16 %v5962
        %v6206 = vunpack.c.l.b16 %v5963
        %v6207 = vunpack.c.h.b16 %v5963
        %v6208 = vunpack.c.l.b16 %v5964
        %v6209 = vunpack.c.h.b16 %v5964
        %v6210 = vunpack.c.l.b16 %v5965
        %v6211 = vunpack.c.h.b16 %v5965
        %v6212 = vunpack.c.l.b16 %v5966
        %v6213 = vunpack.c.h.b16 %v5966
        %v6214 = vunpack.c.l.b16 %v5967
        %v6215 = vunpack.c.h.b16 %v5967
        %v6216 = vunpack.c.l.b16 %v5968
        %v6217 = vunpack.c.h.b16 %v5968
        %v6218 = vunpack.c.l.b16 %v5969
        %v6219 = vunpack.c.h.b16 %v5969
        %v6220 = vunpack.c.l.b16 %v5970
        %v6221 = vunpack.c.h.b16 %v5970
        %v6222 = vunpack.c.l.b16 %v5971
        %v6223 = vunpack.c.h.b16 %v5971
        %v6224 = vunpack.c.l.b16 %v5972
        %v6225 = vunpack.c.h.b16 %v5972
        %v6226 = vunpack.c.l.b16 %v5973
        %v6227 = vunpack.c.h.b16 %v5973
        %v6228 = vunpack.c.l.b16 %v5974
        %v6229 = vunpack.c.h.b16 %v5974
        %v6230 = vunpack.c.l.b16 %v5975
        %v6231 = vunpack.c.h.b16 %v5975
        %v6232 = vunpack.c.l.b16 %v5976
        %v6233 = vunpack.c.h.b16 %v5976
        %v6234 = vunpack.c.l.b16 %v5977
        %v6235 = vunpack.c.h.b16 %v5977
        %v6236 = vunpack.c.l.b16 %v5978
        %v6237 = vunpack.c.h.b16 %v5978
        %v6238 = vunpack.c.l.b16 %v5979
        %v6239 = vunpack.c.h.b16 %v5979
        %v6240 = vunpack.c.l.b16 %v5980
        %v6241 = vunpack.c.h.b16 %v5980
        %v6242 = vunpack.c.l.b16 %v5981
        %v6243 = vunpack.c.h.b16 %v5981
        %v6244 = vunpack.c.l.b16 %v5982
        %v6245 = vunpack.c.h.b16 %v5982
        %v6246 = vunpack.c.l.b16 %v5983
        %v6247 = vunpack.c.h.b16 %v5983
        %v6248 = vunpack.c.l.b16 %v5984
        %v6249 = vunpack.c.h.b16 %v5984
        %v6250 = vunpack.c.l.b16 %v5985
        %v6251 = vunpack.c.h.b16 %v5985
        %v6252 = vunpack.c.l.b16 %v5986
        %v6253 = vunpack.c.h.b16 %v5986
        %v6254 = vunpack.c.l.b16 %v5987
        %v6255 = vunpack.c.h.b16 %v5987
        %v6256 = vunpack.c.l.b16 %v5988
        %v6257 = vunpack.c.h.b16 %v5988
        %v6258 = vunpack.c.l.b16 %v5989
        %v6259 = vunpack.c.h.b16 %v5989
        %v6260 = vunpack.c.l.b16 %v5990
        %v6261 = vunpack.c.h.b16 %v5990
        %v6262 = vunpack.c.l.b16 %v5991
        %v6263 = vunpack.c.h.b16 %v5991
        %v6264 = vunpack.c.l.b16 %v5992
        %v6265 = vunpack.c.h.b16 %v5992
        %v6266 = vunpack.c.l.b16 %v5993
        %v6267 = vunpack.c.h.b16 %v5993
        %v6268 = vunpack.c.l.b16 %v5994
        %v6269 = vunpack.c.h.b16 %v5994
        %v6270 = vunpack.c.l.b16 %v5995
        %v6271 = vunpack.c.h.b16 %v5995
        %v6272 = vunpack.c.l.b16 %v5996
        %v6273 = vunpack.c.h.b16 %v5996
        %v6274 = vunpack.c.l.b16 %v5997
        %v6275 = vunpack.c.h.b16 %v5997
        %v6276 = vunpack.c.l.b16 %v5998
        %v6277 = vunpack.c.h.b16 %v5998
        %v6278 = vunpack.c.l.b16 %v5999
        %v6279 = vunpack.c.h.b16 %v5999
        %v6280 = vunpack.c.l.b16 %v6000
        %v6281 = vunpack.c.h.b16 %v6000
        %v6282 = vunpack.c.l.b16 %v6001
        %v6283 = vunpack.c.h.b16 %v6001
        %v6284 = vunpack.c.l.b16 %v6002
        %v6285 = vunpack.c.h.b16 %v6002
        %v6286 = vunpack.c.l.b16 %v6003
        %v6287 = vunpack.c.h.b16 %v6003
        %v6288 = vunpack.c.l.b16 %v6004
        %v6289 = vunpack.c.h.b16 %v6004
        %v6290 = vunpack.c.l.b16 %v6005
        %v6291 = vunpack.c.h.b16 %v6005
        %v6292 = vunpack.c.l.b16 %v6006
        %v6293 = vunpack.c.h.b16 %v6006
        %v6294 = vunpack.c.l.b16 %v6007
        %v6295 = vunpack.c.h.b16 %v6007
        %v6296 = vunpack.c.l.b16 %v6008
        %v6297 = vunpack.c.h.b16 %v6008
        %v6298 = vunpack.c.l.b16 %v6009
        %v6299 = vunpack.c.h.b16 %v6009
        %v6300 = vunpack.c.l.b16 %v6010
        %v6301 = vunpack.c.h.b16 %v6010
        %v6302 = vunpack.c.l.b16 %v6011
        %v6303 = vunpack.c.h.b16 %v6011
        %v6304 = vunpack.c.l.b16 %v6012
        %v6305 = vunpack.c.h.b16 %v6012
        %v6306 = vunpack.c.l.b16 %v6013
        %v6307 = vunpack.c.h.b16 %v6013
        %v6308 = vunpack.c.l.b16 %v6014
        %v6309 = vunpack.c.h.b16 %v6014
        %v6310 = vunpack.c.l.b16 %v6015
        %v6311 = vunpack.c.h.b16 %v6015
        %v6312 = vunpack.c.l.b16 %v6016
        %v6313 = vunpack.c.h.b16 %v6016
        %v6314 = vunpack.c.l.b16 %v6017
        %v6315 = vunpack.c.h.b16 %v6017
        %v6316 = vunpack.c.l.b16 %v6018
        %v6317 = vunpack.c.h.b16 %v6018
        %v6318 = vunpack.c.l.b16 %v6019
        %v6319 = vunpack.c.h.b16 %v6019
        %v6320 = vunpack.c.l.b16 %v6020
        %v6321 = vunpack.c.h.b16 %v6020
        %v6322 = vunpack.c.l.b16 %v6021
        %v6323 = vunpack.c.h.b16 %v6021
        %v6324 = vunpack.c.l.b16 %v6022
        %v6325 = vunpack.c.h.b16 %v6022
        %v6326 = vunpack.c.l.b16 %v6023
        %v6327 = vunpack.c.h.b16 %v6023
        %v6328 = vunpack.c.l.b16 %v6024
        %v6329 = vunpack.c.h.b16 %v6024
        %v6330 = vunpack.c.l.b16 %v6025
        %v6331 = vunpack.c.h.b16 %v6025
        %v6332 = vunpack.c.l.b16 %v6026
        %v6333 = vunpack.c.h.b16 %v6026
        %v6334 = vunpack.c.l.b16 %v6027
        %v6335 = vunpack.c.h.b16 %v6027
        %v6336 = vunpack.c.l.b16 %v6028
        %v6337 = vunpack.c.h.b16 %v6028
        %v6338 = vunpack.c.l.b16 %v6029
        %v6339 = vunpack.c.h.b16 %v6029
        %v6340 = vunpack.c.l.b16 %v6030
        %v6341 = vunpack.c.h.b16 %v6030
        %v6342 = vunpack.c.l.b16 %v6031
        %v6343 = vunpack.c.h.b16 %v6031
        %v6344 = vunpack.c.l.b16 %v6032
        %v6345 = vunpack.c.h.b16 %v6032
        %v6346 = vunpack.c.l.b16 %v6033
        %v6347 = vunpack.c.h.b16 %v6033
        %v6348 = vunpack.c.l.b16 %v6034
        %v6349 = vunpack.c.h.b16 %v6034
        %v6350 = vunpack.c.l.b16 %v6035
        %v6351 = vunpack.c.h.b16 %v6035
        %v6352 = vpack.c.b16 %v6154, %v6152
        %v6353 = vpack.c.b16 %v6155, %v6153
        %v6354 = vpack.c.b16 %v6158, %v6156
        %v6355 = vpack.c.b16 %v6159, %v6157
        %v6356 = vpack.c.b16 %v6162, %v6160
        %v6357 = vpack.c.b16 %v6163, %v6161
        %v6358 = vpack.c.b16 %v6166, %v6164
        %v6359 = vpack.c.b16 %v6167, %v6165
        %v6360 = vpack.c.b16 %v6170, %v6168
        %v6361 = vpack.c.b16 %v6171, %v6169
        %v6362 = vpack.c.b16 %v6174, %v6172
        %v6363 = vpack.c.b16 %v6175, %v6173
        %v6364 = vpack.c.b16 %v6178, %v6176
        %v6365 = vpack.c.b16 %v6179, %v6177
        %v6366 = vpack.c.b16 %v6182, %v6180
        %v6367 = vpack.c.b16 %v6183, %v6181
        %v6368 = vpack.c.b16 %v6186, %v6184
        %v6369 = vpack.c.b16 %v6187, %v6185
        %v6370 = vpack.c.b16 %v6190, %v6188
        %v6371 = vpack.c.b16 %v6191, %v6189
        %v6372 = vpack.c.b16 %v6194, %v6192
        %v6373 = vpack.c.b16 %v6195, %v6193
        %v6374 = vpack.c.b16 %v6198, %v6196
        %v6375 = vpack.c.b16 %v6199, %v6197
        %v6376 = vpack.c.b16 %v6202, %v6200
        %v6377 = vpack.c.b16 %v6203, %v6201
        %v6378 = vpack.c.b16 %v6206, %v6204
        %v6379 = vpack.c.b16 %v6207, %v6205
        %v6380 = vpack.c.b16 %v6210, %v6208
        %v6381 = vpack.c.b16 %v6211, %v6209
        %v6382 = vpack.c.b16 %v6214, %v6212
        %v6383 = vpack.c.b16 %v6215, %v6213
        %v6384 = vpack.c.b16 %v6218, %v6216
        %v6385 = vpack.c.b16 %v6219, %v6217
        %v6386 = vpack.c.b16 %v6222, %v6220
        %v6387 = vpack.c.b16 %v6223, %v6221
        %v6388 = vpack.c.b16 %v6226, %v6224
        %v6389 = vpack.c.b16 %v6227, %v6225
        %v6390 = vpack.c.b16 %v6230, %v6228
        %v6391 = vpack.c.b16 %v6231, %v6229
        %v6392 = vpack.c.b16 %v6234, %v6232
        %v6393 = vpack.c.b16 %v6235, %v6233
        %v6394 = vpack.c.b16 %v6238, %v6236
        %v6395 = vpack.c.b16 %v6239, %v6237
        %v6396 = vpack.c.b16 %v6242, %v6240
        %v6397 = vpack.c.b16 %v6243, %v6241
        %v6398 = vpack.c.b16 %v6246, %v6244
        %v6399 = vpack.c.b16 %v6247, %v6245
        %v6400 = vpack.c.b16 %v6250, %v6248
        %v6401 = vpack.c.b16 %v6251, %v6249
        %v6402 = vpack.c.b16 %v6254, %v6252
        %v6403 = vpack.c.b16 %v6255, %v6253
        %v6404 = vpack.c.b16 %v6258, %v6256
        %v6405 = vpack.c.b16 %v6259, %v6257
        %v6406 = vpack.c.b16 %v6262, %v6260
        %v6407 = vpack.c.b16 %v6263, %v6261
        %v6408 = vpack.c.b16 %v6266, %v6264
        %v6409 = vpack.c.b16 %v6267, %v6265
        %v6410 = vpack.c.b16 %v6270, %v6268
        %v6411 = vpack.c.b16 %v6271, %v6269
        %v6412 = vpack.c.b16 %v6274, %v6272
        %v6413 = vpack.c.b16 %v6275, %v6273
        %v6414 = vpack.c.b16 %v6278, %v6276
        %v6415 = vpack.c.b16 %v6279, %v6277
        %v6416 = vpack.c.b16 %v6282, %v6280
        %v6417 = vpack.c.b16 %v6283, %v6281
        %v6418 = vpack.c.b16 %v6286, %v6284
        %v6419 = vpack.c.b16 %v6287, %v6285
        %v6420 = vpack.c.b16 %v6290, %v6288
        %v6421 = vpack.c.b16 %v6291, %v6289
        %v6422 = vpack.c.b16 %v6294, %v6292
        %v6423 = vpack.c.b16 %v6295, %v6293
        %v6424 = vpack.c.b16 %v6298, %v6296
        %v6425 = vpack.c.b16 %v6299, %v6297
        %v6426 = vpack.c.b16 %v6302, %v6300
        %v6427 = vpack.c.b16 %v6303, %v6301
        %v6428 = vpack.c.b16 %v6306, %v6304
        %v6429 = vpack.c.b16 %v6307, %v6305
        %v6430 = vpack.c.b16 %v6310, %v6308
        %v6431 = vpack.c.b16 %v6311, %v6309
        %v6432 = vpack.c.b16 %v6314, %v6312
        %v6433 = vpack.c.b16 %v6315, %v6313
        %v6434 = vpack.c.b16 %v6318, %v6316
        %v6435 = vpack.c.b16 %v6319, %v6317
        %v6436 = vpack.c.b16 %v6322, %v6320
        %v6437 = vpack.c.b16 %v6323, %v6321
        %v6438 = vpack.c.b16 %v6326, %v6324
        %v6439 = vpack.c.b16 %v6327, %v6325
        %v6440 = vpack.c.b16 %v6330, %v6328
        %v6441 = vpack.c.b16 %v6331, %v6329
        %v6442 = vpack.c.b16 %v6334, %v6332
        %v6443 = vpack.c.b16 %v6335, %v6333
        %v6444 = vpack.c.b16 %v6338, %v6336
        %v6445 = vpack.c.b16 %v6339, %v6337
        %v6446 = vpack.c.b16 %v6342, %v6340
        %v6447 = vpack.c.b16 %v6343, %v6341
        %v6448 = vpack.c.b16 %v6346, %v6344
        %v6449 = vpack.c.b16 %v6347, %v6345
        %v6450 = vpack.c.b16 %v6350, %v6348
        %v6451 = vpack.c.b16 %v6351, %v6349
        %v6553 = vperm.slane %v6036, 0
        %v6554 = vperm.slane %v6036, 1
        %v6557 = vsel %vm981, %v6045, 0
        %6559 = vmatpush.bf16.msra.mxu0 %v6366
        %6560 = vmatpush.bf16.msra.mxu0 %v6364
        %6561 = vmatpush.bf16.msra.mxu0 %v6362
        %6562 = vmatpush.bf16.msra.mxu0 %v6360
        %6563 = vmatpush.bf16.msra.mxu0 %v6358
        %6564 = vmatpush.bf16.msra.mxu0 %v6356
        %6565 = vmatpush.bf16.msra.mxu0 %v6354
        %6566 = vmatpush.bf16.msra.mxu0 %v6352
        %6567 = vmatmul.bf16.gmra.mxu0 %v6039
        %v6568 = vpop.f32.mrf.mxu0
        %v6569 = vadd.f32 %v6553, %v6568
        %v6570 = vpop.f32.mrf.mxu0
        %6571 = vdwg.mxu0
        %6572 = vmatpush.bf16.msra.mxu0 %v6382
        %6573 = vmatpush.bf16.msra.mxu0 %v6380
        %6574 = vmatpush.bf16.msra.mxu0 %v6378
        %6575 = vmatpush.bf16.msra.mxu0 %v6376
        %6576 = vmatpush.bf16.msra.mxu0 %v6374
        %6577 = vmatpush.bf16.msra.mxu0 %v6372
        %6578 = vmatpush.bf16.msra.mxu0 %v6370
        %6579 = vmatpush.bf16.msra.mxu0 %v6368
        %6580 = vmatmul.bf16.gmra.mxu0 %v6040
        %v6581 = vpop.f32.mrf.mxu0
        %v6582 = vadd.f32 %v6569, %v6581
        %v6583 = vpop.f32.mrf.mxu0
        %6584 = vdwg.mxu0
        %6585 = vmatpush.bf16.msra.mxu0 %v6398
        %6586 = vmatpush.bf16.msra.mxu0 %v6396
        %6587 = vmatpush.bf16.msra.mxu0 %v6394
        %6588 = vmatpush.bf16.msra.mxu0 %v6392
        %6589 = vmatpush.bf16.msra.mxu0 %v6390
        %6590 = vmatpush.bf16.msra.mxu0 %v6388
        %6591 = vmatpush.bf16.msra.mxu0 %v6386
        %6592 = vmatpush.bf16.msra.mxu0 %v6384
        %6593 = vmatmul.bf16.gmra.mxu0 %v6041
        %v6594 = vpop.f32.mrf.mxu0
        %v6595 = vadd.f32 %v6582, %v6594
        %v6596 = vpop.f32.mrf.mxu0
        %6597 = vdwg.mxu0
        %6598 = vmatpush.bf16.msra.mxu0 %v6414
        %6599 = vmatpush.bf16.msra.mxu0 %v6412
        %6600 = vmatpush.bf16.msra.mxu0 %v6410
        %6601 = vmatpush.bf16.msra.mxu0 %v6408
        %6602 = vmatpush.bf16.msra.mxu0 %v6406
        %6603 = vmatpush.bf16.msra.mxu0 %v6404
        %6604 = vmatpush.bf16.msra.mxu0 %v6402
        %6605 = vmatpush.bf16.msra.mxu0 %v6400
        %6606 = vmatmul.bf16.gmra.mxu0 %v6042
        %v6607 = vpop.f32.mrf.mxu0
        %v6608 = vadd.f32 %v6595, %v6607
        %v6609 = vpop.f32.mrf.mxu0
        %6610 = vdwg.mxu0
        %6611 = vmatpush.bf16.msra.mxu0 %v6430
        %6612 = vmatpush.bf16.msra.mxu0 %v6428
        %6613 = vmatpush.bf16.msra.mxu0 %v6426
        %6614 = vmatpush.bf16.msra.mxu0 %v6424
        %6615 = vmatpush.bf16.msra.mxu0 %v6422
        %6616 = vmatpush.bf16.msra.mxu0 %v6420
        %6617 = vmatpush.bf16.msra.mxu0 %v6418
        %6618 = vmatpush.bf16.msra.mxu0 %v6416
        %6619 = vmatmul.bf16.gmra.mxu0 %v6043
        %v6620 = vpop.f32.mrf.mxu0
        %v6621 = vadd.f32 %v6608, %v6620
        %v6622 = vpop.f32.mrf.mxu0
        %6623 = vdwg.mxu0
        %6624 = vmatpush.bf16.msra.mxu0 %v6446
        %6625 = vmatpush.bf16.msra.mxu0 %v6444
        %6626 = vmatpush.bf16.msra.mxu0 %v6442
        %6627 = vmatpush.bf16.msra.mxu0 %v6440
        %6628 = vmatpush.bf16.msra.mxu0 %v6438
        %6629 = vmatpush.bf16.msra.mxu0 %v6436
        %6630 = vmatpush.bf16.msra.mxu0 %v6434
        %6631 = vmatpush.bf16.msra.mxu0 %v6432
        %6632 = vmatmul.bf16.gmra.mxu0 %v6044
        %v6633 = vpop.f32.mrf.mxu0
        %v6634 = vadd.f32 %v6621, %v6633
        %v6635 = vpop.f32.mrf.mxu0
        %6636 = vdwg.mxu0
        %6637 = vmatpush.bf16.msra.mxu0 0
        %6638 = vmatpush.bf16.msra.mxu0 0
        %6639 = vmatpush.bf16.msra.mxu0 0
        %6640 = vmatpush.bf16.msra.mxu0 0
        %6641 = vmatpush.bf16.msra.mxu0 0
        %6642 = vmatpush.bf16.msra.mxu0 0
        %6643 = vmatpush.bf16.msra.mxu0 %v6450
        %6644 = vmatpush.bf16.msra.mxu0 %v6448
        %6645 = vmatmul.bf16.gmra.mxu0 %v6557
        %v6646 = vpop.f32.mrf.mxu0
        %v6647 = vadd.f32 %v6634, %v6646
        %v6648 = vpop.f32.mrf.mxu0
        %6649 = vdwg.mxu0
        %6650 = vmatpush.bf16.msra.mxu0 %v6367
        %6651 = vmatpush.bf16.msra.mxu0 %v6365
        %6652 = vmatpush.bf16.msra.mxu0 %v6363
        %6653 = vmatpush.bf16.msra.mxu0 %v6361
        %6654 = vmatpush.bf16.msra.mxu0 %v6359
        %6655 = vmatpush.bf16.msra.mxu0 %v6357
        %6656 = vmatpush.bf16.msra.mxu0 %v6355
        %6657 = vmatpush.bf16.msra.mxu0 %v6353
        %6658 = vmatmul.bf16.gmra.mxu0 %v6039
        %v6659 = vpop.f32.mrf.mxu0
        %v6660 = vadd.f32 %v6554, %v6659
        %v6661 = vpop.f32.mrf.mxu0
        %6662 = vdwg.mxu0
        %6663 = vmatpush.bf16.msra.mxu0 %v6383
        %6664 = vmatpush.bf16.msra.mxu0 %v6381
        %6665 = vmatpush.bf16.msra.mxu0 %v6379
        %6666 = vmatpush.bf16.msra.mxu0 %v6377
        %6667 = vmatpush.bf16.msra.mxu0 %v6375
        %6668 = vmatpush.bf16.msra.mxu0 %v6373
        %6669 = vmatpush.bf16.msra.mxu0 %v6371
        %6670 = vmatpush.bf16.msra.mxu0 %v6369
        %6671 = vmatmul.bf16.gmra.mxu0 %v6040
        %v6672 = vpop.f32.mrf.mxu0
        %v6673 = vadd.f32 %v6660, %v6672
        %v6674 = vpop.f32.mrf.mxu0
        %6675 = vdwg.mxu0
        %6676 = vmatpush.bf16.msra.mxu0 %v6399
        %6677 = vmatpush.bf16.msra.mxu0 %v6397
        %6678 = vmatpush.bf16.msra.mxu0 %v6395
        %6679 = vmatpush.bf16.msra.mxu0 %v6393
        %6680 = vmatpush.bf16.msra.mxu0 %v6391
        %6681 = vmatpush.bf16.msra.mxu0 %v6389
        %6682 = vmatpush.bf16.msra.mxu0 %v6387
        %6683 = vmatpush.bf16.msra.mxu0 %v6385
        %6684 = vmatmul.bf16.gmra.mxu0 %v6041
        %v6685 = vpop.f32.mrf.mxu0
        %v6686 = vadd.f32 %v6673, %v6685
        %v6687 = vpop.f32.mrf.mxu0
        %6688 = vdwg.mxu0
        %6689 = vmatpush.bf16.msra.mxu0 %v6415
        %6690 = vmatpush.bf16.msra.mxu0 %v6413
        %6691 = vmatpush.bf16.msra.mxu0 %v6411
        %6692 = vmatpush.bf16.msra.mxu0 %v6409
        %6693 = vmatpush.bf16.msra.mxu0 %v6407
        %6694 = vmatpush.bf16.msra.mxu0 %v6405
        %6695 = vmatpush.bf16.msra.mxu0 %v6403
        %6696 = vmatpush.bf16.msra.mxu0 %v6401
        %6697 = vmatmul.bf16.gmra.mxu0 %v6042
        %v6698 = vpop.f32.mrf.mxu0
        %v6699 = vadd.f32 %v6686, %v6698
        %v6700 = vpop.f32.mrf.mxu0
        %6701 = vdwg.mxu0
        %6702 = vmatpush.bf16.msra.mxu0 %v6431
        %6703 = vmatpush.bf16.msra.mxu0 %v6429
        %6704 = vmatpush.bf16.msra.mxu0 %v6427
        %6705 = vmatpush.bf16.msra.mxu0 %v6425
        %6706 = vmatpush.bf16.msra.mxu0 %v6423
        %6707 = vmatpush.bf16.msra.mxu0 %v6421
        %6708 = vmatpush.bf16.msra.mxu0 %v6419
        %6709 = vmatpush.bf16.msra.mxu0 %v6417
        %6710 = vmatmul.bf16.gmra.mxu0 %v6043
        %v6711 = vpop.f32.mrf.mxu0
        %v6712 = vadd.f32 %v6699, %v6711
        %v6713 = vpop.f32.mrf.mxu0
        %6714 = vdwg.mxu0
        %6715 = vmatpush.bf16.msra.mxu0 %v6447
        %6716 = vmatpush.bf16.msra.mxu0 %v6445
        %6717 = vmatpush.bf16.msra.mxu0 %v6443
        %6718 = vmatpush.bf16.msra.mxu0 %v6441
        %6719 = vmatpush.bf16.msra.mxu0 %v6439
        %6720 = vmatpush.bf16.msra.mxu0 %v6437
        %6721 = vmatpush.bf16.msra.mxu0 %v6435
        %6722 = vmatpush.bf16.msra.mxu0 %v6433
        %6723 = vmatmul.bf16.gmra.mxu0 %v6044
        %v6724 = vpop.f32.mrf.mxu0
        %v6725 = vadd.f32 %v6712, %v6724
        %v6726 = vpop.f32.mrf.mxu0
        %6727 = vdwg.mxu0
        %6728 = vmatpush.bf16.msra.mxu0 0
        %6729 = vmatpush.bf16.msra.mxu0 0
        %6730 = vmatpush.bf16.msra.mxu0 0
        %6731 = vmatpush.bf16.msra.mxu0 0
        %6732 = vmatpush.bf16.msra.mxu0 0
        %6733 = vmatpush.bf16.msra.mxu0 0
        %6734 = vmatpush.bf16.msra.mxu0 %v6451
        %6735 = vmatpush.bf16.msra.mxu0 %v6449
        %6736 = vmatmul.bf16.gmra.mxu0 %v6557
        %v6737 = vpop.f32.mrf.mxu0
        %v6738 = vadd.f32 %v6725, %v6737
        %v6739 = vpop.f32.mrf.mxu0
        %6740 = vdwg.mxu0
        %v6741 = vmax.f32 %v6647, 0.0
        %v6742 = vmax.f32 %v6738, 0.0
        %v6743 = vpack.c.bf16 %v6741, %v6741
        %v6744 = vpack.c.bf16 %v6742, %v6742
        %v6745 = vld [vmem:[%s7] sm:$0xf]
        %v6746 = vld [vmem:[%s7 + $0x4] sm:$0xf]
        %v6747 = vld [vmem:[%s7 + $0x8] sm:$0xf]
        %v6748 = vld [vmem:[%s7 + $0xc] sm:$0xf]
        %v6749 = vld [vmem:[%s7 + $0x10] sm:$0xf]
        %v6750 = vld [vmem:[%s7 + $0x14] sm:$0xf]
        %v6751 = vld [vmem:[%s7 + $0x18] sm:$0xf]
        %v6752 = vld [vmem:[%s7 + $0x1c] sm:$0xf]
        %v6753 = vld [vmem:[%s7 + $0x20] sm:$0xf]
        %v6754 = vld [vmem:[%s7 + $0x24] sm:$0xf]
        %v6755 = vld [vmem:[%s7 + $0x28] sm:$0xf]
        %v6756 = vld [vmem:[%s7 + $0x2c] sm:$0xf]
        %v6757 = vld [vmem:[%s7 + $0x30] sm:$0xf]
        %v6758 = vld [vmem:[%s7 + $0x34] sm:$0xf]
        %v6759 = vld [vmem:[%s7 + $0x38] sm:$0xf]
        %v6760 = vld [vmem:[%s7 + $0x3c] sm:$0xf]
        %v6761 = vld [vmem:[%s7 + $0x40] sm:$0xf]
        %v6762 = vld [vmem:[%s7 + $0x44] sm:$0xf]
        %v6763 = vld [vmem:[%s7 + $0x48] sm:$0xf]
        %v6764 = vld [vmem:[%s7 + $0x4c] sm:$0xf]
        %v6765 = vld [vmem:[%s7 + $0x50] sm:$0xf]
        %v6766 = vld [vmem:[%s7 + $0x54] sm:$0xf]
        %v6767 = vld [vmem:[%s7 + $0x58] sm:$0xf]
        %v6768 = vld [vmem:[%s7 + $0x5c] sm:$0xf]
        %v6769 = vld [vmem:[%s7 + $0x60] sm:$0xf]
        %v6770 = vld [vmem:[%s7 + $0x64] sm:$0xf]
        %v6771 = vld [vmem:[%s7 + $0x68] sm:$0xf]
        %v6772 = vld [vmem:[%s7 + $0x6c] sm:$0xf]
        %v6773 = vld [vmem:[%s7 + $0x70] sm:$0xf]
        %v6774 = vld [vmem:[%s7 + $0x74] sm:$0xf]
        %v6775 = vld [vmem:[%s7 + $0x78] sm:$0xf]
        %v6776 = vld [vmem:[%s7 + $0x7c] sm:$0xf]
        %v6777 = vld [vmem:[%s8] sm:$0x1]
        %v6810 = vunpack.c.l.b16 %v6745
        %v6811 = vunpack.c.l.b16 %v6746
        %v6812 = vunpack.c.l.b16 %v6747
        %v6813 = vunpack.c.l.b16 %v6748
        %v6814 = vunpack.c.l.b16 %v6749
        %v6815 = vunpack.c.l.b16 %v6750
        %v6816 = vunpack.c.l.b16 %v6751
        %v6817 = vunpack.c.l.b16 %v6752
        %v6818 = vunpack.c.l.b16 %v6753
        %v6819 = vunpack.c.l.b16 %v6754
        %v6820 = vunpack.c.l.b16 %v6755
        %v6821 = vunpack.c.l.b16 %v6756
        %v6822 = vunpack.c.l.b16 %v6757
        %v6823 = vunpack.c.l.b16 %v6758
        %v6824 = vunpack.c.l.b16 %v6759
        %v6825 = vunpack.c.l.b16 %v6760
        %v6826 = vunpack.c.l.b16 %v6761
        %v6827 = vunpack.c.l.b16 %v6762
        %v6828 = vunpack.c.l.b16 %v6763
        %v6829 = vunpack.c.l.b16 %v6764
        %v6830 = vunpack.c.l.b16 %v6765
        %v6831 = vunpack.c.l.b16 %v6766
        %v6832 = vunpack.c.l.b16 %v6767
        %v6833 = vunpack.c.l.b16 %v6768
        %v6834 = vunpack.c.l.b16 %v6769
        %v6835 = vunpack.c.l.b16 %v6770
        %v6836 = vunpack.c.l.b16 %v6771
        %v6837 = vunpack.c.l.b16 %v6772
        %v6838 = vunpack.c.l.b16 %v6773
        %v6839 = vunpack.c.l.b16 %v6774
        %v6840 = vunpack.c.l.b16 %v6775
        %v6841 = vunpack.c.l.b16 %v6776
        %v6842 = vpack.c.b16 %v6811, %v6810
        %v6843 = vpack.c.b16 %v6813, %v6812
        %v6844 = vpack.c.b16 %v6815, %v6814
        %v6845 = vpack.c.b16 %v6817, %v6816
        %v6846 = vpack.c.b16 %v6819, %v6818
        %v6847 = vpack.c.b16 %v6821, %v6820
        %v6848 = vpack.c.b16 %v6823, %v6822
        %v6849 = vpack.c.b16 %v6825, %v6824
        %v6850 = vpack.c.b16 %v6827, %v6826
        %v6851 = vpack.c.b16 %v6829, %v6828
        %v6852 = vpack.c.b16 %v6831, %v6830
        %v6853 = vpack.c.b16 %v6833, %v6832
        %v6854 = vpack.c.b16 %v6835, %v6834
        %v6855 = vpack.c.b16 %v6837, %v6836
        %v6856 = vpack.c.b16 %v6839, %v6838
        %v6857 = vpack.c.b16 %v6841, %v6840
        %6874 = vmatpush.bf16.msra.mxu0 %v6849
        %6875 = vmatpush.bf16.msra.mxu0 %v6848
        %6876 = vmatpush.bf16.msra.mxu0 %v6847
        %6877 = vmatpush.bf16.msra.mxu0 %v6846
        %6878 = vmatpush.bf16.msra.mxu0 %v6845
        %6879 = vmatpush.bf16.msra.mxu0 %v6844
        %6880 = vmatpush.bf16.msra.mxu0 %v6843
        %6881 = vmatpush.bf16.msra.mxu0 %v6842
        %6882 = vmatmul.bf16.gmra.mxu0 %v6743
        %v6883 = vpop.f32.mrf.mxu0
        %v6884 = vadd.f32 %v6777, %v6883
        %v6885 = vpop.f32.mrf.mxu0
        %6886 = vdwg.mxu0
        %6887 = vmatpush.bf16.msra.mxu0 %v6857
        %6888 = vmatpush.bf16.msra.mxu0 %v6856
        %6889 = vmatpush.bf16.msra.mxu0 %v6855
        %6890 = vmatpush.bf16.msra.mxu0 %v6854
        %6891 = vmatpush.bf16.msra.mxu0 %v6853
        %6892 = vmatpush.bf16.msra.mxu0 %v6852
        %6893 = vmatpush.bf16.msra.mxu0 %v6851
        %6894 = vmatpush.bf16.msra.mxu0 %v6850
        %6895 = vmatmul.bf16.gmra.mxu0 %v6744
        %v6896 = vpop.f32.mrf.mxu0
        %v6897 = vadd.f32 %v6884, %v6896
        %v6898 = vpop.f32.mrf.mxu0
        %6899 = vdwg.mxu0
        %6900 = vst [vmem:[%s324] sm:$0x1] %v6897
        %s6901 = sand.u32 %s225, 1
        %s6902 = scalar_lea.sflag [#allocation9], %s6901
        %s6903 = sand.u32 %s225, 1
        %s6904 = scalar_lea.vmem [#allocation8], %s6903
        // Predicated region
        $region57: #{cnn_forward.1} parent=55 // pred_check
          %p6905 = pneg %p235
        $region58: #{cnn_forward.1} parent=55 // pred_check_branch
          %6907 = sbr.rel (%p6905) target = $region60
        $region59: #{cnn_forward.1} parent=55 // pred_region
          %6909 = vsyncadd %s6902, 0
          %s6910 = scalar_lea.hbm %s9, %s23
          %s6912 = sshll.u32 %s6904, 4
          %s6913 = int_to_ptr.vmem [resolvable:$true] %s6912
          %s6914 = sshll.u32 %s6910, 4
          %s6915 = int_to_ptr.hbm [resolvable:$true] %s6914
          %6917 = dma.vmem_to_hbm [thread:$0]  %s6913, 16, %s6915, %s6902
        $region60: #{cnn_forward.1} parent=55 // pred_fallthru
          _
      $region56: #{cnn_forward.1} parent=5 // pred_fallthru
        _
      %p6918 = scmp.le.s32.totalorder 2, %s18
      // Predicated region
      $region61: #{cnn_forward.1} parent=5 // pred_check
        %p6919 = pneg %p6918
      $region62: #{cnn_forward.1} parent=5 // pred_check_branch
        %6921 = sbr.rel (%p6919) target = $region64
      $region63: #{cnn_forward.1} parent=5 // pred_region
        %s6922 = ssub.s32 %s18, 2
        // Predicated region
        $region65: #{cnn_forward.1} parent=63 // pred_check
          %p6923 = pneg %p241
        $region66: #{cnn_forward.1} parent=63 // pred_check_branch
          %6925 = sbr.rel (%p6923) target = $region68
        $region67: #{cnn_forward.1} parent=63 // pred_region
          %s6926 = sand.u32 %s226, 1
          %s6927 = scalar_lea.sflag [#allocation9], %s6926
          %s6928 = sand.u32 %s226, 1
          %s6929 = scalar_lea.vmem [#allocation8], %s6928
          %6931 = dma.done %s6927, 16
        $region68: #{cnn_forward.1} parent=63 // pred_fallthru
          _
      $region64: #{cnn_forward.1} parent=5 // pred_fallthru
        _
    $region6: #{cnn_forward.1} parent=1 // loop_footer
      %s22 = sadd.s32 1, %s18
    $region7: #{cnn_forward.1} parent=1 // loop_footer_branch
      %17 = sbr.rel target = $region3
    $region8: #{cnn_forward.1} parent=1 // loop_exit
      _
    %6932 = vsyncpa [#allocation9], 1
    %s6933 = scalar_lea.sflag [#allocation9], 1
    %6934 = vsyncpa %s6933, 1

</llo_original>
